<compile_context>
chip_gen: v7x
topology: tpu7x:2x2x1
jax: 0.10.0
libtpu: 0.0.40
codegen_flags: <defaults>
</compile_context>

<pallas_src>
import jax
import jax.numpy as jnp
import numpy as np
from jax.experimental import pallas as pl
from jax.experimental.pallas import tpu as pltpu

EPS = 1e-5


# ---------------------------------------------------------------------------
# Kernels
# ---------------------------------------------------------------------------
def _conv3x3_im2col(xv_bf16, w_ref, xpad_s):
    """3x3 'same' conv of one batch tile as a single im2col matmul.

    xv_bf16 : (Bt, H, W, Cin) bf16 value (already affine/ReLU'd if needed)
    w_ref   : (9*Cin, Cout) bf16 ref (HWIO weights flattened in (kh, kw, cin))
    xpad_s  : (Bt, H+2, W+2, Cin) bf16 VMEM scratch providing the zero halo
    returns : (Bt*H*W, Cout) f32 accumulator (kept 2-D; caller reshapes once)
    """
    Bt, Hp, Wp, Cin = xpad_s.shape
    H, W = Hp - 2, Wp - 2

    # Zero only the four 1-pixel border strips (NOT the whole scratch), then
    # write the interior once.  Re-zeroing the strips each step keeps the
    # scratch valid when the grid axis is sharded across TensorCores.
    zrow = jnp.zeros((Bt, 1, Wp, Cin), jnp.bfloat16)
    zcol = jnp.zeros((Bt, Hp, 1, Cin), jnp.bfloat16)
    xpad_s[:, 0:1, :, :] = zrow
    xpad_s[:, H + 1:H + 2, :, :] = zrow
    xpad_s[:, :, 0:1, :] = zcol
    xpad_s[:, :, W + 1:W + 2, :] = zcol
    xpad_s[:, 1:H + 1, 1:W + 1, :] = xv_bf16

    xp = xpad_s[...]
    # im2col: one (Bt*H*W, 9*Cin) @ (9*Cin, Cout) MXU matmul (K = 9*Cin).
    taps = [xp[:, kh:kh + H, kw:kw + W, :] for kh in range(3) for kw in range(3)]
    lhs = jnp.concatenate(taps, axis=-1).reshape(Bt * H * W, 9 * Cin)
    return jax.lax.dot_general(
        lhs, w_ref[...],
        dimension_numbers=(((1,), (0,)), ((), ())),
        preferred_element_type=jnp.float32)


def _store_conv_and_stats(acc, a_ref, stats_ref):
    """Store the conv tile and its per-tile BN partials (sum, sum of squares)."""
    Bt, H, W, Cout = a_ref.shape
    a_ref[...] = acc.reshape(Bt, H, W, Cout)
    s1 = jnp.sum(acc, axis=0, keepdims=True)          # (1, Cout), f32
    s2 = jnp.sum(acc * acc, axis=0, keepdims=True)    # (1, Cout), f32
    stats_ref[0:1, 0:1, :] = s1.reshape(1, 1, Cout)
    stats_ref[0:1, 1:2, :] = s2.reshape(1, 1, Cout)


def conv1_kernel(x_ref, w_ref, a_ref, stats_ref, xpad_s):
    acc = _conv3x3_im2col(x_ref[...].astype(jnp.bfloat16), w_ref, xpad_s)
    _store_conv_and_stats(acc, a_ref, stats_ref)


def conv2_kernel(a1_ref, scale_ref, shift_ref, w_ref, a_ref, stats_ref, xpad_s):
    # Fused BN1 (precomputed per-channel scale/shift) + ReLU, then conv2.
    y1 = jnp.maximum(a1_ref[...] * scale_ref[...] + shift_ref[...], 0.0)
    acc = _conv3x3_im2col(y1.astype(jnp.bfloat16), w_ref, xpad_s)
    _store_conv_and_stats(acc, a_ref, stats_ref)


def bn_residual_relu_kernel(a2_ref, x_ref, scale_ref, shift_ref, o_ref):
    # Fused BN2 (scale/shift FMA) + residual add + ReLU, lane-dense store.
    o_ref[...] = jnp.maximum(
        a2_ref[...] * scale_ref[...] + shift_ref[...] + x_ref[...], 0.0)


# ---------------------------------------------------------------------------
# Wrapper
# ---------------------------------------------------------------------------
def _bn_scale_shift(stats, gamma, beta, count):
    """Combine per-tile (sum, sumsq) partials into BN scale/shift vectors.

    Matches PyTorch BatchNorm2d training-mode forward: biased batch statistics
    over (N, H, W).  This is a tiny (T, 2, C) reduction done between the grid
    sweeps because every tile needs the full-batch statistics.
    """
    total = jnp.sum(stats, axis=0)                    # (2, C)
    mean = total[0] / count
    var = total[1] / count - mean * mean              # biased variance
    scale = gamma.astype(jnp.float32) * jax.lax.rsqrt(var + EPS)
    shift = beta.astype(jnp.float32) - mean * scale
    C = scale.shape[0]
    return scale.reshape(1, 1, 1, C), shift.reshape(1, 1, 1, C)


def basic_block_forward(x_nchw, params, *, batch_tile=2):
    """x_nchw: (N, C, H, W) float32. Returns (N, C, H, W) float32."""
    w1, g1, b1, w2, g2, b2 = params
    x = jnp.transpose(x_nchw, (0, 2, 3, 1)).astype(jnp.float32)    # NHWC
    N, H, W, C = x.shape
    Cout = w1.shape[3]
    assert C == Cout, "identity residual requires inplanes == planes"
    assert N % batch_tile == 0
    Bt = batch_tile
    T = N // Bt

    # HWIO -> (9*Cin, Cout), bf16, flattened once outside the kernels.
    w1_2d = w1.astype(jnp.bfloat16).reshape(9 * C, Cout)
    w2_2d = w2.astype(jnp.bfloat16).reshape(9 * C, Cout)

    cparams = pltpu.CompilerParams(
        dimension_semantics=("parallel",),            # v7x: 2 TCs split tiles
        vmem_limit_bytes=32 * 1024 * 1024,
    )

    tile_spec = pl.BlockSpec((Bt, H, W, C), lambda i: (i, 0, 0, 0))
    chan_spec = pl.BlockSpec((1, 1, 1, C), lambda i: (0, 0, 0, 0))
    stats_spec = pl.BlockSpec((1, 2, C), lambda i: (i, 0, 0))
    weight_spec = pl.BlockSpec((9 * C, C), lambda i: (0, 0))
    pad_scratch = pltpu.VMEM((Bt, H + 2, W + 2, C), jnp.bfloat16)

    # --- conv1 + per-tile BN1 partial stats --------------------------------
    a1, st1 = pl.pallas_call(
        conv1_kernel,
        grid=(T,),
        in_specs=[tile_spec, weight_spec],
        out_specs=(tile_spec, stats_spec),
        out_shape=(jax.ShapeDtypeStruct((N, H, W, C), jnp.float32),
                   jax.ShapeDtypeStruct((T, 2, C), jnp.float32)),
        scratch_shapes=[pad_scratch],
        compiler_params=cparams,
    )(x, w1_2d)
    scale1, shift1 = _bn_scale_shift(st1, g1, b1, N * H * W)

    # --- fused BN1+ReLU -> conv2 + per-tile BN2 partial stats ---------------
    a2, st2 = pl.pallas_call(
        conv2_kernel,
        grid=(T,),
        in_specs=[tile_spec, chan_spec, chan_spec, weight_spec],
        out_specs=(tile_spec, stats_spec),
        out_shape=(jax.ShapeDtypeStruct((N, H, W, C), jnp.float32),
                   jax.ShapeDtypeStruct((T, 2, C), jnp.float32)),
        scratch_shapes=[pad_scratch],
        compiler_params=cparams,
    )(a1, scale1, shift1, w2_2d)
    scale2, shift2 = _bn_scale_shift(st2, g2, b2, N * H * W)

    # --- fused BN2 + residual add + ReLU epilogue ---------------------------
    out = pl.pallas_call(
        bn_residual_relu_kernel,
        grid=(T,),
        in_specs=[tile_spec, tile_spec, chan_spec, chan_spec],
        out_specs=tile_spec,
        out_shape=jax.ShapeDtypeStruct((N, H, W, C), jnp.float32),
        compiler_params=cparams,
    )(a2, x, scale2, shift2)

    return jnp.transpose(out, (0, 3, 1, 2))                       # back to NCHW


# ---------------------------------------------------------------------------
# Pure-JAX (XLA) reference — same bf16-operand / f32-accumulate mixed precision
# as the kernels; used only for the correctness check.
# ---------------------------------------------------------------------------
def _bn_train_ref(x, gamma, beta):
    mean = jnp.mean(x, axis=(0, 1, 2), keepdims=True)
    var = jnp.mean((x - mean) ** 2, axis=(0, 1, 2), keepdims=True)
    return ((x - mean) * jax.lax.rsqrt(var + EPS) * gamma.reshape(1, 1, 1, -1)
            + beta.reshape(1, 1, 1, -1))


def reference_forward(x_nchw, params):
    w1, g1, b1, w2, g2, b2 = params
    x = jnp.transpose(x_nchw, (0, 2, 3, 1)).astype(jnp.float32)
    dn = jax.lax.conv_dimension_numbers(x.shape, w1.shape, ('NHWC', 'HWIO', 'NHWC'))
    a1 = jax.lax.conv_general_dilated(
        x.astype(jnp.bfloat16), w1.astype(jnp.bfloat16), (1, 1), 'SAME',
        dimension_numbers=dn, preferred_element_type=jnp.float32)
    y1 = jnp.maximum(_bn_train_ref(a1, g1, b1), 0.0)
    a2 = jax.lax.conv_general_dilated(
        y1.astype(jnp.bfloat16), w2.astype(jnp.bfloat16), (1, 1), 'SAME',
        dimension_numbers=dn, preferred_element_type=jnp.float32)
    y2 = _bn_train_ref(a2, g2, b2)
    out = jnp.maximum(y2 + x, 0.0)
    return jnp.transpose(out, (0, 3, 1, 2))


if __name__ == "__main__":
    key = jax.random.PRNGKey(0)
    # Module-consistent small shapes: planes = 128 (self.convsize), Connect-4
    # board spatial extent 6x7, small batch (tiled 2-per-grid-step).
    N, C, H, W = 8, 128, 6, 7
    ks = jax.random.split(key, 7)

    x = jax.random.normal(ks[0], (N, C, H, W), jnp.float32)
    w1 = 0.1 * jax.random.normal(ks[1], (3, 3, C, C), jnp.float32)   # HWIO
    w2 = 0.1 * jax.random.normal(ks[2], (3, 3, C, C), jnp.float32)
    g1 = 1.0 + 0.1 * jax.random.normal(ks[3], (C,), jnp.float32)
    b1 = 0.1 * jax.random.normal(ks[4], (C,), jnp.float32)
    g2 = 1.0 + 0.1 * jax.random.normal(ks[5], (C,), jnp.float32)
    b2 = 0.1 * jax.random.normal(ks[6], (C,), jnp.float32)
    params = (w1, g1, b1, w2, g2, b2)

    out = jax.block_until_ready(basic_block_forward(x, params, batch_tile=2))
    ref = jax.block_until_ready(reference_forward(x, params))

    assert out.shape == (N, C, H, W)
    if not np.allclose(np.asarray(out), np.asarray(ref), rtol=1e-2, atol=1e-2):
        raise AssertionError("Pallas BasicBlock output mismatch vs JAX reference")
    print("KERNEL_OK")
</pallas_src>

<mosaic_0001>
module attributes {stable_mosaic.version = 11 : i64} {
  func.func @conv1_kernel(%arg0: i32, %arg1: memref<2x6x7x128xf32, #tpu.memory_space<vmem>>, %arg2: memref<1152x128xbf16, #tpu.memory_space<vmem>>, %arg3: memref<2x6x7x128xf32, #tpu.memory_space<vmem>>, %arg4: memref<1x2x128xf32, #tpu.memory_space<vmem>>, %arg5: memref<2x8x9x128xbf16, #tpu.memory_space<vmem>>) attributes {dimension_semantics = [#tpu.dimension_semantics<parallel>], iteration_bounds = array<i64: 4>, scalar_prefetch = 0 : i64, scratch_operands = 1 : i64, tpu.core_type = #tpu.core_type<tc>, window_params = [{transform_indices = @transform_0, window_bounds = array<i64: 2, 6, 7, 128>}, {pipeline_mode = #tpu.pipeline_mode<synchronous>, transform_indices = @transform_1, window_bounds = array<i64: 1152, 128>}, {transform_indices = @transform_2, window_bounds = array<i64: 2, 6, 7, 128>}, {transform_indices = @transform_3, window_bounds = array<i64: 1, 2, 128>}]} {
    %c0 = arith.constant 0 : index
    %c0_0 = arith.constant 0 : index
    %c0_1 = arith.constant 0 : index
    %c0_2 = arith.constant 0 : index
    %0 = vector.load %arg1[%c0, %c0_0, %c0_1, %c0_2] : memref<2x6x7x128xf32, #tpu.memory_space<vmem>>, vector<2x6x7x128xf32>
    %1 = arith.truncf %0 : vector<2x6x7x128xf32> to vector<2x6x7x128xbf16>
    %cst = arith.constant 0.000000e+00 : bf16
    %2 = vector.broadcast %cst : bf16 to vector<2x1x9x128xbf16>
    %cst_3 = arith.constant 0.000000e+00 : bf16
    %3 = vector.broadcast %cst_3 : bf16 to vector<2x8x1x128xbf16>
    %c0_4 = arith.constant 0 : index
    %c0_5 = arith.constant 0 : index
    %c0_6 = arith.constant 0 : index
    %c0_7 = arith.constant 0 : index
    %4 = vector.load %arg5[%c0_4, %c0_5, %c0_6, %c0_7] : memref<2x8x9x128xbf16, #tpu.memory_space<vmem>>, vector<2x1x9x128xbf16>
    tpu.vector_store %arg5[%c0_4, %c0_5, %c0_6, %c0_7], %2 {strides = array<i32>} : memref<2x8x9x128xbf16, #tpu.memory_space<vmem>>, vector<2x1x9x128xbf16>,
    %c0_8 = arith.constant 0 : index
    %c7 = arith.constant 7 : index
    %c0_9 = arith.constant 0 : index
    %c0_10 = arith.constant 0 : index
    %5 = vector.load %arg5[%c0_8, %c7, %c0_9, %c0_10] : memref<2x8x9x128xbf16, #tpu.memory_space<vmem>>, vector<2x1x9x128xbf16>
    tpu.vector_store %arg5[%c0_8, %c7, %c0_9, %c0_10], %2 {strides = array<i32>} : memref<2x8x9x128xbf16, #tpu.memory_space<vmem>>, vector<2x1x9x128xbf16>,
    %c0_11 = arith.constant 0 : index
    %c0_12 = arith.constant 0 : index
    %c0_13 = arith.constant 0 : index
    %c0_14 = arith.constant 0 : index
    %6 = vector.load %arg5[%c0_11, %c0_12, %c0_13, %c0_14] : memref<2x8x9x128xbf16, #tpu.memory_space<vmem>>, vector<2x8x1x128xbf16>
    tpu.vector_store %arg5[%c0_11, %c0_12, %c0_13, %c0_14], %3 {strides = array<i32>} : memref<2x8x9x128xbf16, #tpu.memory_space<vmem>>, vector<2x8x1x128xbf16>,
    %c0_15 = arith.constant 0 : index
    %c0_16 = arith.constant 0 : index
    %c8 = arith.constant 8 : index
    %c0_17 = arith.constant 0 : index
    %7 = vector.load %arg5[%c0_15, %c0_16, %c8, %c0_17] : memref<2x8x9x128xbf16, #tpu.memory_space<vmem>>, vector<2x8x1x128xbf16>
    tpu.vector_store %arg5[%c0_15, %c0_16, %c8, %c0_17], %3 {strides = array<i32>} : memref<2x8x9x128xbf16, #tpu.memory_space<vmem>>, vector<2x8x1x128xbf16>,
    %c0_18 = arith.constant 0 : index
    %c1 = arith.constant 1 : index
    %c1_19 = arith.constant 1 : index
    %c0_20 = arith.constant 0 : index
    %8 = vector.load %arg5[%c0_18, %c1, %c1_19, %c0_20] : memref<2x8x9x128xbf16, #tpu.memory_space<vmem>>, vector<2x6x7x128xbf16>
    tpu.vector_store %arg5[%c0_18, %c1, %c1_19, %c0_20], %1 {strides = array<i32>} : memref<2x8x9x128xbf16, #tpu.memory_space<vmem>>, vector<2x6x7x128xbf16>,
    %c0_21 = arith.constant 0 : index
    %c0_22 = arith.constant 0 : index
    %c0_23 = arith.constant 0 : index
    %c0_24 = arith.constant 0 : index
    %9 = vector.load %arg5[%c0_21, %c0_22, %c0_23, %c0_24] : memref<2x8x9x128xbf16, #tpu.memory_space<vmem>>, vector<2x8x9x128xbf16>
    %10 = vector.extract_strided_slice %9 {offsets = [0, 0, 0, 0], sizes = [2, 6, 7, 128], strides = [1, 1, 1, 1]} : vector<2x8x9x128xbf16> to vector<2x6x7x128xbf16>
    %11 = vector.extract_strided_slice %9 {offsets = [0, 0, 1, 0], sizes = [2, 6, 7, 128], strides = [1, 1, 1, 1]} : vector<2x8x9x128xbf16> to vector<2x6x7x128xbf16>
    %12 = vector.extract_strided_slice %9 {offsets = [0, 0, 2, 0], sizes = [2, 6, 7, 128], strides = [1, 1, 1, 1]} : vector<2x8x9x128xbf16> to vector<2x6x7x128xbf16>
    %13 = vector.extract_strided_slice %9 {offsets = [0, 1, 0, 0], sizes = [2, 6, 7, 128], strides = [1, 1, 1, 1]} : vector<2x8x9x128xbf16> to vector<2x6x7x128xbf16>
    %14 = vector.extract_strided_slice %9 {offsets = [0, 1, 1, 0], sizes = [2, 6, 7, 128], strides = [1, 1, 1, 1]} : vector<2x8x9x128xbf16> to vector<2x6x7x128xbf16>
    %15 = vector.extract_strided_slice %9 {offsets = [0, 1, 2, 0], sizes = [2, 6, 7, 128], strides = [1, 1, 1, 1]} : vector<2x8x9x128xbf16> to vector<2x6x7x128xbf16>
    %16 = vector.extract_strided_slice %9 {offsets = [0, 2, 0, 0], sizes = [2, 6, 7, 128], strides = [1, 1, 1, 1]} : vector<2x8x9x128xbf16> to vector<2x6x7x128xbf16>
    %17 = vector.extract_strided_slice %9 {offsets = [0, 2, 1, 0], sizes = [2, 6, 7, 128], strides = [1, 1, 1, 1]} : vector<2x8x9x128xbf16> to vector<2x6x7x128xbf16>
    %18 = vector.extract_strided_slice %9 {offsets = [0, 2, 2, 0], sizes = [2, 6, 7, 128], strides = [1, 1, 1, 1]} : vector<2x8x9x128xbf16> to vector<2x6x7x128xbf16>
    %19 = tpu.concatenate %10, %11, %12, %13, %14, %15, %16, %17, %18 in 3 : vector<2x6x7x128xbf16>, vector<2x6x7x128xbf16>, vector<2x6x7x128xbf16>, vector<2x6x7x128xbf16>, vector<2x6x7x128xbf16>, vector<2x6x7x128xbf16>, vector<2x6x7x128xbf16>, vector<2x6x7x128xbf16>, vector<2x6x7x128xbf16> -> vector<2x6x7x1152xbf16>
    %20 = vector.shape_cast %19 : vector<2x6x7x1152xbf16> to vector<84x1152xbf16>
    %c0_25 = arith.constant 0 : index
    %c0_26 = arith.constant 0 : index
    %21 = vector.load %arg2[%c0_25, %c0_26] : memref<1152x128xbf16, #tpu.memory_space<vmem>>, vector<1152x128xbf16>
    %cst_27 = arith.constant dense<0.000000e+00> : vector<84x128xf32>
    %22 = tpu.matmul %20, %21, %cst_27 {dimension_numbers = #tpu.dot_dimension_numbers<[1], [0], [0], [1], [0, 0, 1, 1], [], []>} : vector<84x1152xbf16>, vector<1152x128xbf16>, vector<84x128xf32> -> vector<84x128xf32>
    %23 = vector.shape_cast %22 : vector<84x128xf32> to vector<2x6x7x128xf32>
    %c0_28 = arith.constant 0 : index
    %c0_29 = arith.constant 0 : index
    %c0_30 = arith.constant 0 : index
    %c0_31 = arith.constant 0 : index
    %24 = vector.load %arg3[%c0_28, %c0_29, %c0_30, %c0_31] : memref<2x6x7x128xf32, #tpu.memory_space<vmem>>, vector<2x6x7x128xf32>
    tpu.vector_store %arg3[%c0_28, %c0_29, %c0_30, %c0_31], %23 {strides = array<i32>} : memref<2x6x7x128xf32, #tpu.memory_space<vmem>>, vector<2x6x7x128xf32>,
    %cst_32 = arith.constant dense<0.000000e+00> : vector<128xf32>
    %25 = vector.multi_reduction <add>, %22, %cst_32 [0] : vector<84x128xf32> to vector<128xf32>
    %26 = vector.shape_cast %25 : vector<128xf32> to vector<1x128xf32>
    %27 = arith.mulf %22, %22 : vector<84x128xf32>
    %cst_33 = arith.constant dense<0.000000e+00> : vector<128xf32>
    %28 = vector.multi_reduction <add>, %27, %cst_33 [0] : vector<84x128xf32> to vector<128xf32>
    %29 = vector.shape_cast %28 : vector<128xf32> to vector<1x128xf32>
    %30 = vector.shape_cast %26 : vector<1x128xf32> to vector<1x1x128xf32>
    %c0_34 = arith.constant 0 : index
    %c0_35 = arith.constant 0 : index
    %c0_36 = arith.constant 0 : index
    %31 = vector.load %arg4[%c0_34, %c0_35, %c0_36] : memref<1x2x128xf32, #tpu.memory_space<vmem>>, vector<1x1x128xf32>
    tpu.vector_store %arg4[%c0_34, %c0_35, %c0_36], %30 {strides = array<i32>} : memref<1x2x128xf32, #tpu.memory_space<vmem>>, vector<1x1x128xf32>,
    %32 = vector.shape_cast %29 : vector<1x128xf32> to vector<1x1x128xf32>
    %c0_37 = arith.constant 0 : index
    %c1_38 = arith.constant 1 : index
    %c0_39 = arith.constant 0 : index
    %33 = vector.load %arg4[%c0_37, %c1_38, %c0_39] : memref<1x2x128xf32, #tpu.memory_space<vmem>>, vector<1x1x128xf32>
    tpu.vector_store %arg4[%c0_37, %c1_38, %c0_39], %32 {strides = array<i32>} : memref<1x2x128xf32, #tpu.memory_space<vmem>>, vector<1x1x128xf32>,
    return
  }
  func.func @transform_0(%arg0: i32) -> (i32, i32, i32, i32) {
    %c0_i32 = arith.constant 0 : i32
    %c0_i32_0 = arith.constant 0 : i32
    %c0_i32_1 = arith.constant 0 : i32
    %c0_i32_2 = arith.constant 0 : i32
    return %arg0, %c0_i32, %c0_i32_0, %c0_i32_1 : i32, i32, i32, i32
  }
  func.func @transform_1(%arg0: i32) -> (i32, i32) {
    %c0_i32 = arith.constant 0 : i32
    %c0_i32_0 = arith.constant 0 : i32
    %c0_i32_1 = arith.constant 0 : i32
    return %c0_i32, %c0_i32_0 : i32, i32
  }
  func.func @transform_2(%arg0: i32) -> (i32, i32, i32, i32) {
    %c0_i32 = arith.constant 0 : i32
    %c0_i32_0 = arith.constant 0 : i32
    %c0_i32_1 = arith.constant 0 : i32
    %c0_i32_2 = arith.constant 0 : i32
    return %arg0, %c0_i32, %c0_i32_0, %c0_i32_1 : i32, i32, i32, i32
  }
  func.func @transform_3(%arg0: i32) -> (i32, i32, i32) {
    %c0_i32 = arith.constant 0 : i32
    %c0_i32_0 = arith.constant 0 : i32
    %c0_i32_1 = arith.constant 0 : i32
    return %arg0, %c0_i32, %c0_i32_0 : i32, i32, i32
  }
}

</mosaic_0001>

<llo_original>
// kernel: tpu_custom_call.1
$region0: #{tpu_custom_call.1}
  #allocation0 [shape = 'u32[]', space=smem, size = 0x4, offset = 0x4, fixed_abs, tag = 'smem constant byte address 0x4 - core index']
  #allocation1 [shape = 'u32[144,128]{1,0:T(1,128)}', space=vmem, size = 0x12000, scoped, tag = 'internal scratch']
  #allocation2 [shape = 'bf16[2,8,9,128]{3,2,1,0:T(8,128)(2,1)}', space=vmem, size = 0x10000, scoped, tag = 'scratch operand']
  %s0 = inlined_call_operand.vmem [shape: f32[8,6,7,128], index: 0, kind: input, shape index: {}]
  %s1 = inlined_call_operand.vmem [shape: bf16[1152,128], index: 1, kind: input, shape index: {}]
  %s2 = inlined_call_operand.vmem [shape: f32[8,6,7,128], index: 2, kind: output, shape index: {0}]
  %s3 = inlined_call_operand.hbm [shape: f32[4,2,128], index: 3, kind: output, shape index: {1}]
  %4 = xla_tuple %s2, %s3
  %s5 = sld [smem:[#allocation0]]
  $region49: #{tpu_custom_call.1} parent=0
    _
  %s7 = ssub.s32 1, %s5
  %s8 = scalar_select 0, %s7, %s5
  $region1: #{tpu_custom_call.1} parent=0
    #allocation3 [shape = 'u8[2048]{0}', space=vmem, size = 0x800, scoped, tag = 'output window, operand 1']
    #allocation4 [shape = 's32[2]{0}', space=sflag, size = 0x8, scoped, tag = 'scoped memory for tpu_custom_call.1']
    %9 = vsyncpa [#allocation4], 0
    %s10 = scalar_lea.sflag [#allocation4], 1
    %11 = vsyncpa %s10, 0
    loop: start=0, step=1, limit=6
    $region2: #{tpu_custom_call.1} parent=1 // loop_pre_header
      _
    $region3: #{tpu_custom_call.1} parent=1 // loop_header
      %s13 = sphi 0, %s17
      %p14 = scmp.ge.s32.totalorder %s13, 6
      %s23 = sphi 0, %s25
      %s26 = sphi 0, %s23
      %s27 = sphi 0, %s26
      %s43 = sphi 0, %s27
      %s47 = sphi 0, %s47
      %s49 = sphi 0, %s47
      %s50 = sphi 0, %s49
      %s64 = sphi 0, %s50
      %s70 = sphi 0, %s72
      %s73 = sphi 0, %s70
      %s74 = sphi 0, %s73
      %s90 = sphi 0, %s74
      %s96 = sphi 0, %s98
      %s99 = sphi 0, %s96
      %s100 = sphi 0, %s99
      %s116 = sphi 0, %s100
    $region4: #{tpu_custom_call.1} parent=1 // loop_header_branch
      %16 = sbr.rel (%p14) target = $region8
    $region5: #{tpu_custom_call.1} parent=1 // loop_body
      %s18 = ssub.s32 %s13, 1
      %s19 = ssub.s32 %s13, 2
      %s20 = sadd.s32 %s13, 1
      %s21 = ssub.s32 %s13, %s20
      %p22 = scmp.eq.s32.totalorder %s21, 0
      %s24 = sadd.s32 %s23, 1
      %s25 = scalar_select %p22, %s23, %s24
      %p28 = pneg %p22
      %p29 = scmp.eq.s32.totalorder %s13, 3
      %p30 = por %p28, %p29
      %p31 = scmp.ne.s32.totalorder %s23, %s26
      %p32 = scmp.eq.s32.totalorder %s13, 0
      %p33 = por %p31, %p32
      %p34 = scmp.ne.s32.totalorder %s23, %s26
      %p35 = scmp.eq.s32.totalorder %s18, 3
      %p36 = por %p34, %p35
      %p37 = scmp.ne.s32.totalorder %s26, %s27
      %p38 = scmp.eq.s32.totalorder %s18, 0
      %p39 = por %p37, %p38
      %p40 = scmp.ne.s32.totalorder %s26, %s27
      %p41 = scmp.eq.s32.totalorder %s19, 3
      %p42 = por %p40, %p41
      %p44 = scmp.ne.s32.totalorder %s27, %s43
      %p45 = scmp.eq.s32.totalorder %s19, 0
      %p46 = por %p44, %p45
      %s48 = sadd.s32 %s47, 1
      %p51 = scmp.eq.s32.totalorder %s13, 3
      %p52 = scmp.ne.s32.totalorder %s47, %s49
      %p53 = scmp.eq.s32.totalorder %s13, 0
      %p54 = por %p52, %p53
      %p55 = scmp.ne.s32.totalorder %s47, %s49
      %p56 = scmp.eq.s32.totalorder %s18, 3
      %p57 = por %p55, %p56
      %p58 = scmp.ne.s32.totalorder %s49, %s50
      %p59 = scmp.eq.s32.totalorder %s18, 0
      %p60 = por %p58, %p59
      %p61 = scmp.ne.s32.totalorder %s49, %s50
      %p62 = scmp.eq.s32.totalorder %s19, 3
      %p63 = por %p61, %p62
      %p65 = scmp.ne.s32.totalorder %s50, %s64
      %p66 = scmp.eq.s32.totalorder %s19, 0
      %p67 = por %p65, %p66
      %s68 = ssub.s32 %s13, %s20
      %p69 = scmp.eq.s32.totalorder %s68, 0
      %s71 = sadd.s32 %s70, 1
      %s72 = scalar_select %p69, %s70, %s71
      %p75 = pneg %p69
      %p76 = scmp.eq.s32.totalorder %s13, 3
      %p77 = por %p75, %p76
      %p78 = scmp.ne.s32.totalorder %s70, %s73
      %p79 = scmp.eq.s32.totalorder %s13, 0
      %p80 = por %p78, %p79
      %p81 = scmp.ne.s32.totalorder %s70, %s73
      %p82 = scmp.eq.s32.totalorder %s18, 3
      %p83 = por %p81, %p82
      %p84 = scmp.ne.s32.totalorder %s73, %s74
      %p85 = scmp.eq.s32.totalorder %s18, 0
      %p86 = por %p84, %p85
      %p87 = scmp.ne.s32.totalorder %s73, %s74
      %p88 = scmp.eq.s32.totalorder %s19, 3
      %p89 = por %p87, %p88
      %p91 = scmp.ne.s32.totalorder %s74, %s90
      %p92 = scmp.eq.s32.totalorder %s19, 0
      %p93 = por %p91, %p92
      %s94 = ssub.s32 %s13, %s20
      %p95 = scmp.eq.s32.totalorder %s94, 0
      %s97 = sadd.s32 %s96, 1
      %s98 = scalar_select %p95, %s96, %s97
      %p101 = pneg %p95
      %p102 = scmp.eq.s32.totalorder %s13, 3
      %p103 = por %p101, %p102
      %p104 = scmp.ne.s32.totalorder %s96, %s99
      %p105 = scmp.eq.s32.totalorder %s13, 0
      %p106 = por %p104, %p105
      %p107 = scmp.ne.s32.totalorder %s96, %s99
      %p108 = scmp.eq.s32.totalorder %s18, 3
      %p109 = por %p107, %p108
      %p110 = scmp.ne.s32.totalorder %s99, %s100
      %p111 = scmp.eq.s32.totalorder %s18, 0
      %p112 = por %p110, %p111
      %p113 = scmp.ne.s32.totalorder %s99, %s100
      %p114 = scmp.eq.s32.totalorder %s19, 3
      %p115 = por %p113, %p114
      %p117 = scmp.ne.s32.totalorder %s100, %s116
      %p118 = scmp.eq.s32.totalorder %s19, 0
      %p119 = por %p117, %p118
      %p120 = scmp.le.s32.totalorder 1, %s13
      %p121 = scmp.lt.s32.totalorder %s13, 5
      %p122 = pnand %p120, %p121
      %p123 = pneg %p122
      // Predicated region
      $region9: #{tpu_custom_call.1} parent=5 // pred_check
        _
      $region10: #{tpu_custom_call.1} parent=5 // pred_check_branch
        %125 = sbr.rel (%p122) target = $region12
      $region11: #{tpu_custom_call.1} parent=5 // pred_region
        %s126 = ssub.s32 %s13, 1
        // Predicated region
        $region13: #{tpu_custom_call.1} parent=11 // pred_check
          %p127 = pneg %p60
        $region14: #{tpu_custom_call.1} parent=11 // pred_check_branch
          %129 = sbr.rel (%p127) target = $region16
        $region15: #{tpu_custom_call.1} parent=11 // pred_region
          _
        $region16: #{tpu_custom_call.1} parent=11 // pred_fallthru
          _
      $region12: #{tpu_custom_call.1} parent=5 // pred_fallthru
        _
      %p130 = scmp.lt.s32.totalorder %s13, 4
      // Predicated region
      $region17: #{tpu_custom_call.1} parent=5 // pred_check
        %p131 = pneg %p130
      $region18: #{tpu_custom_call.1} parent=5 // pred_check_branch
        %133 = sbr.rel (%p131) target = $region20
      $region19: #{tpu_custom_call.1} parent=5 // pred_region
        // Predicated region
        $region21: #{tpu_custom_call.1} parent=19 // pred_check
          %p134 = pneg %p33
        $region22: #{tpu_custom_call.1} parent=19 // pred_check_branch
          %136 = sbr.rel (%p134) target = $region24
        $region23: #{tpu_custom_call.1} parent=19 // pred_region
          %s137 = smul.u32 2, %s13
          %p138 = scmp.lt.s32.totalorder %s137, 7
          %s139 = scalar_select %p138, %s137, 7
          %s140 = smul.addr %s139, 6
          %s141 = smul.addr %s140, 8
          %s142 = scalar_lea.vmem %s0, %s141
          %s143 = smul.u32 2, %s13
        $region24: #{tpu_custom_call.1} parent=19 // pred_fallthru
          _
      $region20: #{tpu_custom_call.1} parent=5 // pred_fallthru
        _
      %p144 = scmp.le.s32.totalorder 1, %s13
      %p145 = scmp.lt.s32.totalorder %s13, 5
      %p146 = pnand %p144, %p145
      %p147 = pneg %p146
      // Predicated region
      $region25: #{tpu_custom_call.1} parent=5 // pred_check
        _
      $region26: #{tpu_custom_call.1} parent=5 // pred_check_branch
        %149 = sbr.rel (%p146) target = $region28
      $region27: #{tpu_custom_call.1} parent=5 // pred_region
        %s150 = ssub.s32 %s13, 1
        %s151 = smul.u32 2, %s18
        %p152 = scmp.lt.s32.totalorder %s151, 7
        %s153 = scalar_select %p152, %s151, 7
        %s154 = smul.addr %s153, 6
        %s155 = smul.addr %s154, 8
        %s156 = scalar_lea.vmem %s0, %s155
        %p157 = pneg %p39
        %p158 = pneg %p36
        %p159 = pneg %p60
        %p160 = pneg %p57
        %p161 = pneg %p86
        %p162 = pneg %p83
        %s163 = smul.u32 2, %s18
        %p164 = scmp.lt.s32.totalorder %s163, 7
        %s165 = scalar_select %p164, %s163, 7
        %s166 = smul.addr %s165, 6
        %s167 = smul.addr %s166, 8
        %s168 = scalar_lea.vmem %s2, %s167
        %p169 = pneg %p112
        %p170 = pneg %p109
        %s171 = sand.u32 %s99, 1
        %s172 = scalar_lea.sflag [#allocation4], %s171
        %s173 = sand.u32 %s99, 1
        %s174 = smul.addr %s173, 2
        %s175 = scalar_lea.vmem [#allocation3], %s174
        %s176 = smul.u32 2, %s18
        %p177 = scmp.lt.s32.totalorder %s176, 7
        %s178 = scalar_select %p177, %s176, 7
        %s179 = smul.addr %s178, 6
        %s180 = smul.addr %s179, 8
        %s181 = scalar_lea.vmem %s0, %s180
        %s182 = smul.u32 2, %s18
        %s183 = smul.u32 2, %s18
        %p184 = scmp.lt.s32.totalorder %s183, 7
        %s185 = scalar_select %p184, %s183, 7
        %s186 = smul.addr %s185, 6
        %s187 = smul.addr %s186, 8
        %s188 = scalar_lea.vmem %s2, %s187
        %s189 = smul.u32 2, %s18
        %v191 = vld [vmem:[%s181] sm:$0x7f]
        %v192 = vld [vmem:[%s181 + $0x8] sm:$0x7f]
        %v193 = vld [vmem:[%s181 + $0x10] sm:$0x7f]
        %v194 = vld [vmem:[%s181 + $0x18] sm:$0x7f]
        %v195 = vld [vmem:[%s181 + $0x20] sm:$0x7f]
        %v196 = vld [vmem:[%s181 + $0x28] sm:$0x7f]
        %v197 = vld [vmem:[%s181 + $0x30] sm:$0x7f]
        %v198 = vld [vmem:[%s181 + $0x38] sm:$0x7f]
        %v199 = vld [vmem:[%s181 + $0x40] sm:$0x7f]
        %v200 = vld [vmem:[%s181 + $0x48] sm:$0x7f]
        %v201 = vld [vmem:[%s181 + $0x50] sm:$0x7f]
        %v202 = vld [vmem:[%s181 + $0x58] sm:$0x7f]
        %v203 = vpack.c.bf16 %v191, %v191
        %v204 = vpack.c.bf16 %v192, %v192
        %v205 = vpack.c.bf16 %v193, %v193
        %v206 = vpack.c.bf16 %v194, %v194
        %v207 = vpack.c.bf16 %v195, %v195
        %v208 = vpack.c.bf16 %v196, %v196
        %v209 = vpack.c.bf16 %v197, %v197
        %v210 = vpack.c.bf16 %v198, %v198
        %v211 = vpack.c.bf16 %v199, %v199
        %v212 = vpack.c.bf16 %v200, %v200
        %v213 = vpack.c.bf16 %v201, %v201
        %v214 = vpack.c.bf16 %v202, %v202
        %215 = vst [vmem:[#allocation2] sm:$0xf] 0
        %vm216 = vcmask 1040384
        %vm217 = vsmask.f32 256
        %vm218 = vmand %vm216, %vm217
        %v219 = vld [vmem:[#allocation2 + $0x4] sm:$0x1]
        %v220 = vsel %vm218, 0, %v219
        %221 = vst [vmem:[#allocation2 + $0x4] sm:$0x1] %v220
        %222 = vst [vmem:[#allocation2 + $0x40] sm:$0xf] 0
        %v223 = vld [vmem:[#allocation2 + $0x44] sm:$0x1]
        %v224 = vsel %vm218, 0, %v223
        %225 = vst [vmem:[#allocation2 + $0x44] sm:$0x1] %v224
        %s226 = scalar_lea.vmem [#allocation2], 56
        %227 = vst [vmem:[%s226] sm:$0xf] 0
        %v228 = vld [vmem:[%s226 + $0x4] sm:$0x1]
        %v229 = vsel %vm218, 0, %v228
        %230 = vst [vmem:[%s226 + $0x4] sm:$0x1] %v229
        %231 = vst [vmem:[%s226 + $0x40] sm:$0xf] 0
        %v232 = vld [vmem:[%s226 + $0x44] sm:$0x1]
        %v233 = vsel %vm218, 0, %v232
        %234 = vst [vmem:[%s226 + $0x44] sm:$0x1] %v233
        %v235 = vld [vmem:[#allocation2] sm:$0x1]
        %v236 = vsel %vm218, 0, %v235
        %237 = vst [vmem:[#allocation2] sm:$0x1] %v236
        %v238 = vld [vmem:[#allocation2 + $0x8] sm:$0x1]
        %v239 = vsel %vm218, 0, %v238
        %240 = vst [vmem:[#allocation2 + $0x8] sm:$0x1] %v239
        %v241 = vld [vmem:[#allocation2 + $0x10] sm:$0x1]
        %v242 = vsel %vm218, 0, %v241
        %243 = vst [vmem:[#allocation2 + $0x10] sm:$0x1] %v242
        %v244 = vld [vmem:[#allocation2 + $0x18] sm:$0x1]
        %v245 = vsel %vm218, 0, %v244
        %246 = vst [vmem:[#allocation2 + $0x18] sm:$0x1] %v245
        %v247 = vld [vmem:[#allocation2 + $0x20] sm:$0x1]
        %v248 = vsel %vm218, 0, %v247
        %249 = vst [vmem:[#allocation2 + $0x20] sm:$0x1] %v248
        %v250 = vld [vmem:[#allocation2 + $0x28] sm:$0x1]
        %v251 = vsel %vm218, 0, %v250
        %252 = vst [vmem:[#allocation2 + $0x28] sm:$0x1] %v251
        %v253 = vld [vmem:[#allocation2 + $0x30] sm:$0x1]
        %v254 = vsel %vm218, 0, %v253
        %255 = vst [vmem:[#allocation2 + $0x30] sm:$0x1] %v254
        %v256 = vld [vmem:[#allocation2 + $0x38] sm:$0x1]
        %v257 = vsel %vm218, 0, %v256
        %258 = vst [vmem:[#allocation2 + $0x38] sm:$0x1] %v257
        %v259 = vld [vmem:[#allocation2 + $0x40] sm:$0x1]
        %v260 = vsel %vm218, 0, %v259
        %261 = vst [vmem:[#allocation2 + $0x40] sm:$0x1] %v260
        %v262 = vld [vmem:[#allocation2 + $0x48] sm:$0x1]
        %v263 = vsel %vm218, 0, %v262
        %264 = vst [vmem:[#allocation2 + $0x48] sm:$0x1] %v263
        %v265 = vld [vmem:[#allocation2 + $0x50] sm:$0x1]
        %v266 = vsel %vm218, 0, %v265
        %267 = vst [vmem:[#allocation2 + $0x50] sm:$0x1] %v266
        %v268 = vld [vmem:[#allocation2 + $0x58] sm:$0x1]
        %v269 = vsel %vm218, 0, %v268
        %270 = vst [vmem:[#allocation2 + $0x58] sm:$0x1] %v269
        %v271 = vld [vmem:[#allocation2 + $0x60] sm:$0x1]
        %v272 = vsel %vm218, 0, %v271
        %273 = vst [vmem:[#allocation2 + $0x60] sm:$0x1] %v272
        %v274 = vld [vmem:[#allocation2 + $0x68] sm:$0x1]
        %v275 = vsel %vm218, 0, %v274
        %276 = vst [vmem:[#allocation2 + $0x68] sm:$0x1] %v275
        %v277 = vld [vmem:[#allocation2 + $0x70] sm:$0x1]
        %v278 = vsel %vm218, 0, %v277
        %279 = vst [vmem:[#allocation2 + $0x70] sm:$0x1] %v278
        %v280 = vld [vmem:[#allocation2 + $0x78] sm:$0x1]
        %v281 = vsel %vm218, 0, %v280
        %282 = vst [vmem:[#allocation2 + $0x78] sm:$0x1] %v281
        %v283 = vld [vmem:[#allocation2 + $0x4] sm:$0x1]
        %v284 = vsel %vm218, 0, %v283
        %285 = vst [vmem:[#allocation2 + $0x4] sm:$0x1] %v284
        %v286 = vld [vmem:[#allocation2 + $0xc] sm:$0x1]
        %v287 = vsel %vm218, 0, %v286
        %288 = vst [vmem:[#allocation2 + $0xc] sm:$0x1] %v287
        %v289 = vld [vmem:[#allocation2 + $0x14] sm:$0x1]
        %v290 = vsel %vm218, 0, %v289
        %291 = vst [vmem:[#allocation2 + $0x14] sm:$0x1] %v290
        %v292 = vld [vmem:[#allocation2 + $0x1c] sm:$0x1]
        %v293 = vsel %vm218, 0, %v292
        %294 = vst [vmem:[#allocation2 + $0x1c] sm:$0x1] %v293
        %v295 = vld [vmem:[#allocation2 + $0x24] sm:$0x1]
        %v296 = vsel %vm218, 0, %v295
        %297 = vst [vmem:[#allocation2 + $0x24] sm:$0x1] %v296
        %v298 = vld [vmem:[#allocation2 + $0x2c] sm:$0x1]
        %v299 = vsel %vm218, 0, %v298
        %300 = vst [vmem:[#allocation2 + $0x2c] sm:$0x1] %v299
        %v301 = vld [vmem:[#allocation2 + $0x34] sm:$0x1]
        %v302 = vsel %vm218, 0, %v301
        %303 = vst [vmem:[#allocation2 + $0x34] sm:$0x1] %v302
        %v304 = vld [vmem:[#allocation2 + $0x3c] sm:$0x1]
        %v305 = vsel %vm218, 0, %v304
        %306 = vst [vmem:[#allocation2 + $0x3c] sm:$0x1] %v305
        %v307 = vld [vmem:[#allocation2 + $0x44] sm:$0x1]
        %v308 = vsel %vm218, 0, %v307
        %309 = vst [vmem:[#allocation2 + $0x44] sm:$0x1] %v308
        %v310 = vld [vmem:[#allocation2 + $0x4c] sm:$0x1]
        %v311 = vsel %vm218, 0, %v310
        %312 = vst [vmem:[#allocation2 + $0x4c] sm:$0x1] %v311
        %v313 = vld [vmem:[#allocation2 + $0x54] sm:$0x1]
        %v314 = vsel %vm218, 0, %v313
        %315 = vst [vmem:[#allocation2 + $0x54] sm:$0x1] %v314
        %v316 = vld [vmem:[#allocation2 + $0x5c] sm:$0x1]
        %v317 = vsel %vm218, 0, %v316
        %318 = vst [vmem:[#allocation2 + $0x5c] sm:$0x1] %v317
        %v319 = vld [vmem:[#allocation2 + $0x64] sm:$0x1]
        %v320 = vsel %vm218, 0, %v319
        %321 = vst [vmem:[#allocation2 + $0x64] sm:$0x1] %v320
        %v322 = vld [vmem:[#allocation2 + $0x6c] sm:$0x1]
        %v323 = vsel %vm218, 0, %v322
        %324 = vst [vmem:[#allocation2 + $0x6c] sm:$0x1] %v323
        %v325 = vld [vmem:[#allocation2 + $0x74] sm:$0x1]
        %v326 = vsel %vm218, 0, %v325
        %327 = vst [vmem:[#allocation2 + $0x74] sm:$0x1] %v326
        %v328 = vld [vmem:[#allocation2 + $0x7c] sm:$0x1]
        %v329 = vsel %vm218, 0, %v328
        %330 = vst [vmem:[#allocation2 + $0x7c] sm:$0x1] %v329
        %v343 = vunpack.c.l.b16 %v203
        %v344 = vunpack.c.l.b16 %v204
        %v345 = vunpack.c.l.b16 %v205
        %v346 = vunpack.c.l.b16 %v206
        %v347 = vunpack.c.l.b16 %v207
        %v348 = vunpack.c.l.b16 %v208
        %v349 = vunpack.c.l.b16 %v209
        %v350 = vunpack.c.l.b16 %v210
        %v351 = vunpack.c.l.b16 %v211
        %v352 = vunpack.c.l.b16 %v212
        %v353 = vunpack.c.l.b16 %v213
        %v354 = vunpack.c.l.b16 %v214
        %v355 = vpack.c.b16 %v343, %v343
        %v356 = vpack.c.b16 %v344, %v344
        %v357 = vpack.c.b16 %v345, %v345
        %v358 = vpack.c.b16 %v346, %v346
        %v359 = vpack.c.b16 %v347, %v347
        %v360 = vpack.c.b16 %v348, %v348
        %v361 = vpack.c.b16 %v349, %v349
        %v362 = vpack.c.b16 %v350, %v350
        %v363 = vpack.c.b16 %v351, %v351
        %v364 = vpack.c.b16 %v352, %v352
        %v365 = vpack.c.b16 %v353, %v353
        %v366 = vpack.c.b16 %v354, %v354
        %v368 = vshrl.u32 %v355, 16
        %v370 = vrot.slane %v368, 7
        %v371 = vshll.u32 %v355, 16
        %v373 = vor.u32 %v370, %v371
        %v375 = vshrl.u32 %v356, 16
        %v377 = vrot.slane %v375, 7
        %v378 = vshll.u32 %v356, 16
        %v380 = vor.u32 %v377, %v378
        %v382 = vshrl.u32 %v357, 16
        %v384 = vrot.slane %v382, 7
        %v385 = vshll.u32 %v357, 16
        %v387 = vor.u32 %v384, %v385
        %v389 = vshrl.u32 %v358, 16
        %v391 = vrot.slane %v389, 7
        %v392 = vshll.u32 %v358, 16
        %v394 = vor.u32 %v391, %v392
        %v396 = vshrl.u32 %v359, 16
        %v398 = vrot.slane %v396, 7
        %v399 = vshll.u32 %v359, 16
        %v401 = vor.u32 %v398, %v399
        %v403 = vshrl.u32 %v360, 16
        %v405 = vrot.slane %v403, 7
        %v406 = vshll.u32 %v360, 16
        %v408 = vor.u32 %v405, %v406
        %v410 = vshrl.u32 %v361, 16
        %v412 = vrot.slane %v410, 7
        %v413 = vshll.u32 %v361, 16
        %v415 = vor.u32 %v412, %v413
        %v417 = vshrl.u32 %v362, 16
        %v419 = vrot.slane %v417, 7
        %v420 = vshll.u32 %v362, 16
        %v422 = vor.u32 %v419, %v420
        %v424 = vshrl.u32 %v363, 16
        %v426 = vrot.slane %v424, 7
        %v427 = vshll.u32 %v363, 16
        %v429 = vor.u32 %v426, %v427
        %v431 = vshrl.u32 %v364, 16
        %v433 = vrot.slane %v431, 7
        %v434 = vshll.u32 %v364, 16
        %v436 = vor.u32 %v433, %v434
        %v438 = vshrl.u32 %v365, 16
        %v440 = vrot.slane %v438, 7
        %v441 = vshll.u32 %v365, 16
        %v443 = vor.u32 %v440, %v441
        %v445 = vshrl.u32 %v366, 16
        %v447 = vrot.slane %v445, 7
        %v448 = vshll.u32 %v366, 16
        %v450 = vor.u32 %v447, %v448
        %s463 = scalar_lea.vmem [#allocation2], 8
        %vm464 = vcmask 1043456
        %vm465 = vsmask.f32 7938
        %vm466 = vmand %vm464, %vm465
        %v467 = vld [vmem:[%s463] sm:$0xf]
        %v468 = vsel %vm466, %v373, %v467
        %469 = vst [vmem:[%s463] sm:$0xf] %v468
        %v470 = vld [vmem:[%s463 + $0x8] sm:$0xf]
        %v471 = vsel %vm466, %v380, %v470
        %472 = vst [vmem:[%s463 + $0x8] sm:$0xf] %v471
        %v473 = vld [vmem:[%s463 + $0x10] sm:$0xf]
        %v474 = vsel %vm466, %v387, %v473
        %475 = vst [vmem:[%s463 + $0x10] sm:$0xf] %v474
        %v476 = vld [vmem:[%s463 + $0x18] sm:$0xf]
        %v477 = vsel %vm466, %v394, %v476
        %478 = vst [vmem:[%s463 + $0x18] sm:$0xf] %v477
        %v479 = vld [vmem:[%s463 + $0x20] sm:$0xf]
        %v480 = vsel %vm466, %v401, %v479
        %481 = vst [vmem:[%s463 + $0x20] sm:$0xf] %v480
        %v482 = vld [vmem:[%s463 + $0x28] sm:$0xf]
        %v483 = vsel %vm466, %v408, %v482
        %484 = vst [vmem:[%s463 + $0x28] sm:$0xf] %v483
        %v485 = vld [vmem:[%s463 + $0x40] sm:$0xf]
        %v486 = vsel %vm466, %v415, %v485
        %487 = vst [vmem:[%s463 + $0x40] sm:$0xf] %v486
        %v488 = vld [vmem:[%s463 + $0x48] sm:$0xf]
        %v489 = vsel %vm466, %v422, %v488
        %490 = vst [vmem:[%s463 + $0x48] sm:$0xf] %v489
        %v491 = vld [vmem:[%s463 + $0x50] sm:$0xf]
        %v492 = vsel %vm466, %v429, %v491
        %493 = vst [vmem:[%s463 + $0x50] sm:$0xf] %v492
        %v494 = vld [vmem:[%s463 + $0x58] sm:$0xf]
        %v495 = vsel %vm466, %v436, %v494
        %496 = vst [vmem:[%s463 + $0x58] sm:$0xf] %v495
        %v497 = vld [vmem:[%s463 + $0x60] sm:$0xf]
        %v498 = vsel %vm466, %v443, %v497
        %499 = vst [vmem:[%s463 + $0x60] sm:$0xf] %v498
        %v500 = vld [vmem:[%s463 + $0x68] sm:$0xf]
        %v501 = vsel %vm466, %v450, %v500
        %502 = vst [vmem:[%s463 + $0x68] sm:$0xf] %v501
        %v503 = vld [vmem:[#allocation2] sm:$0xf]
        %v504 = vld [vmem:[#allocation2 + $0x4] sm:$0x1]
        %v505 = vld [vmem:[#allocation2 + $0x8] sm:$0xf]
        %v506 = vld [vmem:[#allocation2 + $0xc] sm:$0x1]
        %v507 = vld [vmem:[#allocation2 + $0x10] sm:$0xf]
        %v508 = vld [vmem:[#allocation2 + $0x14] sm:$0x1]
        %v509 = vld [vmem:[#allocation2 + $0x18] sm:$0xf]
        %v510 = vld [vmem:[#allocation2 + $0x1c] sm:$0x1]
        %v511 = vld [vmem:[#allocation2 + $0x20] sm:$0xf]
        %v512 = vld [vmem:[#allocation2 + $0x24] sm:$0x1]
        %v513 = vld [vmem:[#allocation2 + $0x28] sm:$0xf]
        %v514 = vld [vmem:[#allocation2 + $0x2c] sm:$0x1]
        %v515 = vld [vmem:[#allocation2 + $0x30] sm:$0xf]
        %v516 = vld [vmem:[#allocation2 + $0x34] sm:$0x1]
        %v517 = vld [vmem:[#allocation2 + $0x38] sm:$0xf]
        %v518 = vld [vmem:[#allocation2 + $0x3c] sm:$0x1]
        %v519 = vld [vmem:[#allocation2 + $0x40] sm:$0xf]
        %v520 = vld [vmem:[#allocation2 + $0x44] sm:$0x1]
        %v521 = vld [vmem:[#allocation2 + $0x48] sm:$0xf]
        %v522 = vld [vmem:[#allocation2 + $0x4c] sm:$0x1]
        %v523 = vld [vmem:[#allocation2 + $0x50] sm:$0xf]
        %v524 = vld [vmem:[#allocation2 + $0x54] sm:$0x1]
        %v525 = vld [vmem:[#allocation2 + $0x58] sm:$0xf]
        %v526 = vld [vmem:[#allocation2 + $0x5c] sm:$0x1]
        %v527 = vld [vmem:[#allocation2 + $0x60] sm:$0xf]
        %v528 = vld [vmem:[#allocation2 + $0x64] sm:$0x1]
        %v529 = vld [vmem:[#allocation2 + $0x68] sm:$0xf]
        %v530 = vld [vmem:[#allocation2 + $0x6c] sm:$0x1]
        %v531 = vld [vmem:[#allocation2 + $0x70] sm:$0xf]
        %v532 = vld [vmem:[#allocation2 + $0x74] sm:$0x1]
        %v533 = vld [vmem:[#allocation2 + $0x78] sm:$0xf]
        %v534 = vld [vmem:[#allocation2 + $0x7c] sm:$0x1]
        %v547 = vunpack.c.l.b16 %v503
        %v548 = vunpack.c.l.b16 %v505
        %v549 = vunpack.c.l.b16 %v507
        %v550 = vunpack.c.l.b16 %v509
        %v551 = vunpack.c.l.b16 %v511
        %v552 = vunpack.c.l.b16 %v513
        %v553 = vunpack.c.l.b16 %v519
        %v554 = vunpack.c.l.b16 %v521
        %v555 = vunpack.c.l.b16 %v523
        %v556 = vunpack.c.l.b16 %v525
        %v557 = vunpack.c.l.b16 %v527
        %v558 = vunpack.c.l.b16 %v529
        %v559 = vpack.c.b16 %v547, %v547
        %v560 = vpack.c.b16 %v548, %v548
        %v561 = vpack.c.b16 %v549, %v549
        %v562 = vpack.c.b16 %v550, %v550
        %v563 = vpack.c.b16 %v551, %v551
        %v564 = vpack.c.b16 %v552, %v552
        %v565 = vpack.c.b16 %v553, %v553
        %v566 = vpack.c.b16 %v554, %v554
        %v567 = vpack.c.b16 %v555, %v555
        %v568 = vpack.c.b16 %v556, %v556
        %v569 = vpack.c.b16 %v557, %v557
        %v570 = vpack.c.b16 %v558, %v558
        %v572 = vshrl.u32 %v559, 16
        %v574 = vshll.u32 %v559, 16
        %v576 = vrot.slane %v574, 1
        %v577 = vor.u32 %v572, %v576
        %v579 = vshrl.u32 %v560, 16
        %v581 = vshll.u32 %v560, 16
        %v583 = vrot.slane %v581, 1
        %v584 = vor.u32 %v579, %v583
        %v586 = vshrl.u32 %v561, 16
        %v588 = vshll.u32 %v561, 16
        %v590 = vrot.slane %v588, 1
        %v591 = vor.u32 %v586, %v590
        %v593 = vshrl.u32 %v562, 16
        %v595 = vshll.u32 %v562, 16
        %v597 = vrot.slane %v595, 1
        %v598 = vor.u32 %v593, %v597
        %v600 = vshrl.u32 %v563, 16
        %v602 = vshll.u32 %v563, 16
        %v604 = vrot.slane %v602, 1
        %v605 = vor.u32 %v600, %v604
        %v607 = vshrl.u32 %v564, 16
        %v609 = vshll.u32 %v564, 16
        %v611 = vrot.slane %v609, 1
        %v612 = vor.u32 %v607, %v611
        %v614 = vshrl.u32 %v565, 16
        %v616 = vshll.u32 %v565, 16
        %v618 = vrot.slane %v616, 1
        %v619 = vor.u32 %v614, %v618
        %v621 = vshrl.u32 %v566, 16
        %v623 = vshll.u32 %v566, 16
        %v625 = vrot.slane %v623, 1
        %v626 = vor.u32 %v621, %v625
        %v628 = vshrl.u32 %v567, 16
        %v630 = vshll.u32 %v567, 16
        %v632 = vrot.slane %v630, 1
        %v633 = vor.u32 %v628, %v632
        %v635 = vshrl.u32 %v568, 16
        %v637 = vshll.u32 %v568, 16
        %v639 = vrot.slane %v637, 1
        %v640 = vor.u32 %v635, %v639
        %v642 = vshrl.u32 %v569, 16
        %v644 = vshll.u32 %v569, 16
        %v646 = vrot.slane %v644, 1
        %v647 = vor.u32 %v642, %v646
        %v649 = vshrl.u32 %v570, 16
        %v651 = vshll.u32 %v570, 16
        %v653 = vrot.slane %v651, 1
        %v654 = vor.u32 %v649, %v653
        %v667 = vunpack.c.l.b16 %v504
        %v668 = vunpack.c.l.b16 %v506
        %v669 = vunpack.c.l.b16 %v508
        %v670 = vunpack.c.l.b16 %v510
        %v671 = vunpack.c.l.b16 %v512
        %v672 = vunpack.c.l.b16 %v514
        %v673 = vunpack.c.l.b16 %v520
        %v674 = vunpack.c.l.b16 %v522
        %v675 = vunpack.c.l.b16 %v524
        %v676 = vunpack.c.l.b16 %v526
        %v677 = vunpack.c.l.b16 %v528
        %v678 = vunpack.c.l.b16 %v530
        %v679 = vpack.c.b16 %v667, %v547
        %v680 = vpack.c.b16 %v668, %v548
        %v681 = vpack.c.b16 %v669, %v549
        %v682 = vpack.c.b16 %v670, %v550
        %v683 = vpack.c.b16 %v671, %v551
        %v684 = vpack.c.b16 %v672, %v552
        %v685 = vpack.c.b16 %v673, %v553
        %v686 = vpack.c.b16 %v674, %v554
        %v687 = vpack.c.b16 %v675, %v555
        %v688 = vpack.c.b16 %v676, %v556
        %v689 = vpack.c.b16 %v677, %v557
        %v690 = vpack.c.b16 %v678, %v558
        %v691 = vrot.slane %v679, 1
        %v692 = vrot.slane %v680, 1
        %v693 = vrot.slane %v681, 1
        %v694 = vrot.slane %v682, 1
        %v695 = vrot.slane %v683, 1
        %v696 = vrot.slane %v684, 1
        %v697 = vrot.slane %v685, 1
        %v698 = vrot.slane %v686, 1
        %v699 = vrot.slane %v687, 1
        %v700 = vrot.slane %v688, 1
        %v701 = vrot.slane %v689, 1
        %v702 = vrot.slane %v690, 1
        %v705 = vunpack.c.l.b16 %v515
        %v706 = vunpack.c.l.b16 %v531
        %v707 = vpack.c.b16 %v705, %v705
        %v708 = vpack.c.b16 %v706, %v706
        %v710 = vshrl.u32 %v707, 16
        %v712 = vshll.u32 %v707, 16
        %v714 = vrot.slane %v712, 1
        %v715 = vor.u32 %v710, %v714
        %v717 = vshrl.u32 %v708, 16
        %v719 = vshll.u32 %v708, 16
        %v721 = vrot.slane %v719, 1
        %v722 = vor.u32 %v717, %v721
        %v725 = vunpack.c.l.b16 %v516
        %v726 = vunpack.c.l.b16 %v532
        %v727 = vpack.c.b16 %v725, %v705
        %v728 = vpack.c.b16 %v726, %v706
        %v729 = vrot.slane %v727, 1
        %v730 = vrot.slane %v728, 1
        %v733 = vunpack.c.l.b16 %v517
        %v734 = vunpack.c.l.b16 %v533
        %v735 = vpack.c.b16 %v733, %v733
        %v736 = vpack.c.b16 %v734, %v734
        %v738 = vshrl.u32 %v735, 16
        %v740 = vshll.u32 %v735, 16
        %v742 = vrot.slane %v740, 1
        %v743 = vor.u32 %v738, %v742
        %v745 = vshrl.u32 %v736, 16
        %v747 = vshll.u32 %v736, 16
        %v749 = vrot.slane %v747, 1
        %v750 = vor.u32 %v745, %v749
        %v753 = vunpack.c.l.b16 %v518
        %v754 = vunpack.c.l.b16 %v534
        %v755 = vpack.c.b16 %v753, %v733
        %v756 = vpack.c.b16 %v754, %v734
        %v757 = vrot.slane %v755, 1
        %v758 = vrot.slane %v756, 1
        %v759 = vcombine.low %v503, %v577
        %v760 = vcombine.low %v691, %v505
        %v761 = vcombine.low %v584, %v692
        %v762 = vcombine.low %v507, %v591
        %v764 = vunpack.c.l.s4 1966171168
        %v765 = vunpack.c.0.s8 %v764
        %v766 = vlaneseq
        %v767 = vshrl.u32 %v766, 7
        %v768 = vsub.s32 %v765, %v767
        %v769 = vrot.slane %v759, %v768
        %v771 = vunpack.c.l.s4 1966171168
        %v772 = vunpack.c.0.s8 %v771
        %v773 = vlaneseq
        %v774 = vshrl.u32 %v773, 7
        %v775 = vsub.s32 %v772, %v774
        %v776 = vrot.slane %v760, %v775
        %v778 = vunpack.c.l.s4 1966171168
        %v779 = vunpack.c.0.s8 %v778
        %v780 = vlaneseq
        %v781 = vshrl.u32 %v780, 7
        %v782 = vsub.s32 %v779, %v781
        %v783 = vrot.slane %v761, %v782
        %v785 = vunpack.c.l.s4 1966171168
        %v786 = vunpack.c.0.s8 %v785
        %v787 = vlaneseq
        %v788 = vshrl.u32 %v787, 7
        %v789 = vsub.s32 %v786, %v788
        %v790 = vrot.slane %v762, %v789
        %v791 = vcombine.low %v769, %v776
        %v792 = vcombine.high %v769, %v776
        %v793 = vcombine.low %v783, %v790
        %v794 = vcombine.high %v783, %v790
        %v796 = vunpack.c.l.s4 1966171168
        %v797 = vunpack.c.0.s8 %v796
        %v798 = vlaneseq
        %v799 = vshrl.u32 %v798, 7
        %v800 = vsub.s32 %v797, %v799
        %v801 = vrot.slane %v791, %v800
        %v803 = vunpack.c.l.s4 1966171168
        %v804 = vunpack.c.0.s8 %v803
        %v805 = vlaneseq
        %v806 = vshrl.u32 %v805, 7
        %v807 = vsub.s32 %v804, %v806
        %v808 = vrot.slane %v792, %v807
        %v810 = vunpack.c.l.s4 1966171168
        %v811 = vunpack.c.0.s8 %v810
        %v812 = vlaneseq
        %v813 = vshrl.u32 %v812, 7
        %v814 = vsub.s32 %v811, %v813
        %v815 = vrot.slane %v793, %v814
        %v817 = vunpack.c.l.s4 1966171168
        %v818 = vunpack.c.0.s8 %v817
        %v819 = vlaneseq
        %v820 = vshrl.u32 %v819, 7
        %v821 = vsub.s32 %v818, %v820
        %v822 = vrot.slane %v794, %v821
        %v823 = vcombine.low %v801, %v815
        %v824 = vcombine.high %v801, %v815
        %v825 = vcombine.low %v808, %v822
        %v826 = vcombine.high %v808, %v822
        %v828 = vunpack.c.l.s4 1966171168
        %v829 = vunpack.c.0.s8 %v828
        %v830 = vlaneseq
        %v831 = vshrl.u32 %v830, 7
        %v832 = vsub.s32 %v829, %v831
        %v833 = vrot.slane %v693, %v832
        %v834 = vcombine.high %v833, %v833
        %v836 = vunpack.c.l.s4 1966171168
        %v837 = vunpack.c.0.s8 %v836
        %v838 = vlaneseq
        %v839 = vshrl.u32 %v838, 7
        %v840 = vsub.s32 %v837, %v839
        %v841 = vrot.slane %v833, %v840
        %v843 = vunpack.c.l.s4 1966171168
        %v844 = vunpack.c.0.s8 %v843
        %v845 = vlaneseq
        %v846 = vshrl.u32 %v845, 7
        %v847 = vsub.s32 %v844, %v846
        %v848 = vrot.slane %v834, %v847
        %v849 = vcombine.high %v841, %v841
        %v850 = vcombine.high %v848, %v848
        %v851 = vcombine.low %v505, %v584
        %v852 = vcombine.low %v692, %v507
        %v853 = vcombine.low %v591, %v693
        %v854 = vcombine.low %v509, %v598
        %v856 = vunpack.c.l.s4 1966171168
        %v857 = vunpack.c.0.s8 %v856
        %v858 = vlaneseq
        %v859 = vshrl.u32 %v858, 7
        %v860 = vsub.s32 %v857, %v859
        %v861 = vrot.slane %v851, %v860
        %v863 = vunpack.c.l.s4 1966171168
        %v864 = vunpack.c.0.s8 %v863
        %v865 = vlaneseq
        %v866 = vshrl.u32 %v865, 7
        %v867 = vsub.s32 %v864, %v866
        %v868 = vrot.slane %v852, %v867
        %v870 = vunpack.c.l.s4 1966171168
        %v871 = vunpack.c.0.s8 %v870
        %v872 = vlaneseq
        %v873 = vshrl.u32 %v872, 7
        %v874 = vsub.s32 %v871, %v873
        %v875 = vrot.slane %v853, %v874
        %v877 = vunpack.c.l.s4 1966171168
        %v878 = vunpack.c.0.s8 %v877
        %v879 = vlaneseq
        %v880 = vshrl.u32 %v879, 7
        %v881 = vsub.s32 %v878, %v880
        %v882 = vrot.slane %v854, %v881
        %v883 = vcombine.low %v861, %v868
        %v884 = vcombine.high %v861, %v868
        %v885 = vcombine.low %v875, %v882
        %v886 = vcombine.high %v875, %v882
        %v888 = vunpack.c.l.s4 1966171168
        %v889 = vunpack.c.0.s8 %v888
        %v890 = vlaneseq
        %v891 = vshrl.u32 %v890, 7
        %v892 = vsub.s32 %v889, %v891
        %v893 = vrot.slane %v883, %v892
        %v895 = vunpack.c.l.s4 1966171168
        %v896 = vunpack.c.0.s8 %v895
        %v897 = vlaneseq
        %v898 = vshrl.u32 %v897, 7
        %v899 = vsub.s32 %v896, %v898
        %v900 = vrot.slane %v884, %v899
        %v902 = vunpack.c.l.s4 1966171168
        %v903 = vunpack.c.0.s8 %v902
        %v904 = vlaneseq
        %v905 = vshrl.u32 %v904, 7
        %v906 = vsub.s32 %v903, %v905
        %v907 = vrot.slane %v885, %v906
        %v909 = vunpack.c.l.s4 1966171168
        %v910 = vunpack.c.0.s8 %v909
        %v911 = vlaneseq
        %v912 = vshrl.u32 %v911, 7
        %v913 = vsub.s32 %v910, %v912
        %v914 = vrot.slane %v886, %v913
        %v915 = vcombine.low %v893, %v907
        %v916 = vcombine.high %v893, %v907
        %v917 = vcombine.low %v900, %v914
        %v918 = vcombine.high %v900, %v914
        %v920 = vunpack.c.l.s4 1966171168
        %v921 = vunpack.c.0.s8 %v920
        %v922 = vlaneseq
        %v923 = vshrl.u32 %v922, 7
        %v924 = vsub.s32 %v921, %v923
        %v925 = vrot.slane %v694, %v924
        %v926 = vcombine.high %v925, %v925
        %v928 = vunpack.c.l.s4 1966171168
        %v929 = vunpack.c.0.s8 %v928
        %v930 = vlaneseq
        %v931 = vshrl.u32 %v930, 7
        %v932 = vsub.s32 %v929, %v931
        %v933 = vrot.slane %v925, %v932
        %v935 = vunpack.c.l.s4 1966171168
        %v936 = vunpack.c.0.s8 %v935
        %v937 = vlaneseq
        %v938 = vshrl.u32 %v937, 7
        %v939 = vsub.s32 %v936, %v938
        %v940 = vrot.slane %v926, %v939
        %v941 = vcombine.high %v933, %v933
        %v942 = vcombine.high %v940, %v940
        %v943 = vcombine.low %v693, %v509
        %v944 = vcombine.low %v598, %v694
        %v945 = vcombine.low %v511, %v605
        %v947 = vunpack.c.l.s4 1966171168
        %v948 = vunpack.c.0.s8 %v947
        %v949 = vlaneseq
        %v950 = vshrl.u32 %v949, 7
        %v951 = vsub.s32 %v948, %v950
        %v952 = vrot.slane %v943, %v951
        %v954 = vunpack.c.l.s4 1966171168
        %v955 = vunpack.c.0.s8 %v954
        %v956 = vlaneseq
        %v957 = vshrl.u32 %v956, 7
        %v958 = vsub.s32 %v955, %v957
        %v959 = vrot.slane %v944, %v958
        %v961 = vunpack.c.l.s4 1966171168
        %v962 = vunpack.c.0.s8 %v961
        %v963 = vlaneseq
        %v964 = vshrl.u32 %v963, 7
        %v965 = vsub.s32 %v962, %v964
        %v966 = vrot.slane %v945, %v965
        %v967 = vcombine.low %v790, %v952
        %v968 = vcombine.high %v790, %v952
        %v969 = vcombine.low %v959, %v966
        %v970 = vcombine.high %v959, %v966
        %v972 = vunpack.c.l.s4 1966171168
        %v973 = vunpack.c.0.s8 %v972
        %v974 = vlaneseq
        %v975 = vshrl.u32 %v974, 7
        %v976 = vsub.s32 %v973, %v975
        %v977 = vrot.slane %v967, %v976
        %v979 = vunpack.c.l.s4 1966171168
        %v980 = vunpack.c.0.s8 %v979
        %v981 = vlaneseq
        %v982 = vshrl.u32 %v981, 7
        %v983 = vsub.s32 %v980, %v982
        %v984 = vrot.slane %v968, %v983
        %v986 = vunpack.c.l.s4 1966171168
        %v987 = vunpack.c.0.s8 %v986
        %v988 = vlaneseq
        %v989 = vshrl.u32 %v988, 7
        %v990 = vsub.s32 %v987, %v989
        %v991 = vrot.slane %v969, %v990
        %v993 = vunpack.c.l.s4 1966171168
        %v994 = vunpack.c.0.s8 %v993
        %v995 = vlaneseq
        %v996 = vshrl.u32 %v995, 7
        %v997 = vsub.s32 %v994, %v996
        %v998 = vrot.slane %v970, %v997
        %v999 = vcombine.low %v977, %v991
        %v1000 = vcombine.high %v977, %v991
        %v1001 = vcombine.low %v984, %v998
        %v1002 = vcombine.high %v984, %v998
        %v1004 = vunpack.c.l.s4 1966171168
        %v1005 = vunpack.c.0.s8 %v1004
        %v1006 = vlaneseq
        %v1007 = vshrl.u32 %v1006, 7
        %v1008 = vsub.s32 %v1005, %v1007
        %v1009 = vrot.slane %v695, %v1008
        %v1010 = vcombine.high %v1009, %v1009
        %v1012 = vunpack.c.l.s4 1966171168
        %v1013 = vunpack.c.0.s8 %v1012
        %v1014 = vlaneseq
        %v1015 = vshrl.u32 %v1014, 7
        %v1016 = vsub.s32 %v1013, %v1015
        %v1017 = vrot.slane %v1009, %v1016
        %v1019 = vunpack.c.l.s4 1966171168
        %v1020 = vunpack.c.0.s8 %v1019
        %v1021 = vlaneseq
        %v1022 = vshrl.u32 %v1021, 7
        %v1023 = vsub.s32 %v1020, %v1022
        %v1024 = vrot.slane %v1010, %v1023
        %v1025 = vcombine.high %v1017, %v1017
        %v1026 = vcombine.high %v1024, %v1024
        %v1027 = vcombine.low %v694, %v511
        %v1028 = vcombine.low %v605, %v695
        %v1029 = vcombine.low %v513, %v612
        %v1031 = vunpack.c.l.s4 1966171168
        %v1032 = vunpack.c.0.s8 %v1031
        %v1033 = vlaneseq
        %v1034 = vshrl.u32 %v1033, 7
        %v1035 = vsub.s32 %v1032, %v1034
        %v1036 = vrot.slane %v1027, %v1035
        %v1038 = vunpack.c.l.s4 1966171168
        %v1039 = vunpack.c.0.s8 %v1038
        %v1040 = vlaneseq
        %v1041 = vshrl.u32 %v1040, 7
        %v1042 = vsub.s32 %v1039, %v1041
        %v1043 = vrot.slane %v1028, %v1042
        %v1045 = vunpack.c.l.s4 1966171168
        %v1046 = vunpack.c.0.s8 %v1045
        %v1047 = vlaneseq
        %v1048 = vshrl.u32 %v1047, 7
        %v1049 = vsub.s32 %v1046, %v1048
        %v1050 = vrot.slane %v1029, %v1049
        %v1051 = vcombine.low %v882, %v1036
        %v1052 = vcombine.high %v882, %v1036
        %v1053 = vcombine.low %v1043, %v1050
        %v1054 = vcombine.high %v1043, %v1050
        %v1056 = vunpack.c.l.s4 1966171168
        %v1057 = vunpack.c.0.s8 %v1056
        %v1058 = vlaneseq
        %v1059 = vshrl.u32 %v1058, 7
        %v1060 = vsub.s32 %v1057, %v1059
        %v1061 = vrot.slane %v1051, %v1060
        %v1063 = vunpack.c.l.s4 1966171168
        %v1064 = vunpack.c.0.s8 %v1063
        %v1065 = vlaneseq
        %v1066 = vshrl.u32 %v1065, 7
        %v1067 = vsub.s32 %v1064, %v1066
        %v1068 = vrot.slane %v1052, %v1067
        %v1070 = vunpack.c.l.s4 1966171168
        %v1071 = vunpack.c.0.s8 %v1070
        %v1072 = vlaneseq
        %v1073 = vshrl.u32 %v1072, 7
        %v1074 = vsub.s32 %v1071, %v1073
        %v1075 = vrot.slane %v1053, %v1074
        %v1077 = vunpack.c.l.s4 1966171168
        %v1078 = vunpack.c.0.s8 %v1077
        %v1079 = vlaneseq
        %v1080 = vshrl.u32 %v1079, 7
        %v1081 = vsub.s32 %v1078, %v1080
        %v1082 = vrot.slane %v1054, %v1081
        %v1083 = vcombine.low %v1061, %v1075
        %v1084 = vcombine.high %v1061, %v1075
        %v1085 = vcombine.low %v1068, %v1082
        %v1086 = vcombine.high %v1068, %v1082
        %v1088 = vunpack.c.l.s4 1966171168
        %v1089 = vunpack.c.0.s8 %v1088
        %v1090 = vlaneseq
        %v1091 = vshrl.u32 %v1090, 7
        %v1092 = vsub.s32 %v1089, %v1091
        %v1093 = vrot.slane %v696, %v1092
        %v1094 = vcombine.high %v1093, %v1093
        %v1096 = vunpack.c.l.s4 1966171168
        %v1097 = vunpack.c.0.s8 %v1096
        %v1098 = vlaneseq
        %v1099 = vshrl.u32 %v1098, 7
        %v1100 = vsub.s32 %v1097, %v1099
        %v1101 = vrot.slane %v1093, %v1100
        %v1103 = vunpack.c.l.s4 1966171168
        %v1104 = vunpack.c.0.s8 %v1103
        %v1105 = vlaneseq
        %v1106 = vshrl.u32 %v1105, 7
        %v1107 = vsub.s32 %v1104, %v1106
        %v1108 = vrot.slane %v1094, %v1107
        %v1109 = vcombine.high %v1101, %v1101
        %v1110 = vcombine.high %v1108, %v1108
        %v1111 = vcombine.low %v695, %v513
        %v1112 = vcombine.low %v612, %v696
        %v1113 = vcombine.low %v515, %v715
        %v1115 = vunpack.c.l.s4 1966171168
        %v1116 = vunpack.c.0.s8 %v1115
        %v1117 = vlaneseq
        %v1118 = vshrl.u32 %v1117, 7
        %v1119 = vsub.s32 %v1116, %v1118
        %v1120 = vrot.slane %v1111, %v1119
        %v1122 = vunpack.c.l.s4 1966171168
        %v1123 = vunpack.c.0.s8 %v1122
        %v1124 = vlaneseq
        %v1125 = vshrl.u32 %v1124, 7
        %v1126 = vsub.s32 %v1123, %v1125
        %v1127 = vrot.slane %v1112, %v1126
        %v1129 = vunpack.c.l.s4 1966171168
        %v1130 = vunpack.c.0.s8 %v1129
        %v1131 = vlaneseq
        %v1132 = vshrl.u32 %v1131, 7
        %v1133 = vsub.s32 %v1130, %v1132
        %v1134 = vrot.slane %v1113, %v1133
        %v1135 = vcombine.low %v966, %v1120
        %v1136 = vcombine.high %v966, %v1120
        %v1137 = vcombine.low %v1127, %v1134
        %v1138 = vcombine.high %v1127, %v1134
        %v1140 = vunpack.c.l.s4 1966171168
        %v1141 = vunpack.c.0.s8 %v1140
        %v1142 = vlaneseq
        %v1143 = vshrl.u32 %v1142, 7
        %v1144 = vsub.s32 %v1141, %v1143
        %v1145 = vrot.slane %v1135, %v1144
        %v1147 = vunpack.c.l.s4 1966171168
        %v1148 = vunpack.c.0.s8 %v1147
        %v1149 = vlaneseq
        %v1150 = vshrl.u32 %v1149, 7
        %v1151 = vsub.s32 %v1148, %v1150
        %v1152 = vrot.slane %v1136, %v1151
        %v1154 = vunpack.c.l.s4 1966171168
        %v1155 = vunpack.c.0.s8 %v1154
        %v1156 = vlaneseq
        %v1157 = vshrl.u32 %v1156, 7
        %v1158 = vsub.s32 %v1155, %v1157
        %v1159 = vrot.slane %v1137, %v1158
        %v1161 = vunpack.c.l.s4 1966171168
        %v1162 = vunpack.c.0.s8 %v1161
        %v1163 = vlaneseq
        %v1164 = vshrl.u32 %v1163, 7
        %v1165 = vsub.s32 %v1162, %v1164
        %v1166 = vrot.slane %v1138, %v1165
        %v1167 = vcombine.low %v1145, %v1159
        %v1168 = vcombine.high %v1145, %v1159
        %v1169 = vcombine.low %v1152, %v1166
        %v1170 = vcombine.high %v1152, %v1166
        %v1172 = vunpack.c.l.s4 1966171168
        %v1173 = vunpack.c.0.s8 %v1172
        %v1174 = vlaneseq
        %v1175 = vshrl.u32 %v1174, 7
        %v1176 = vsub.s32 %v1173, %v1175
        %v1177 = vrot.slane %v729, %v1176
        %v1178 = vcombine.high %v1177, %v1177
        %v1180 = vunpack.c.l.s4 1966171168
        %v1181 = vunpack.c.0.s8 %v1180
        %v1182 = vlaneseq
        %v1183 = vshrl.u32 %v1182, 7
        %v1184 = vsub.s32 %v1181, %v1183
        %v1185 = vrot.slane %v1177, %v1184
        %v1187 = vunpack.c.l.s4 1966171168
        %v1188 = vunpack.c.0.s8 %v1187
        %v1189 = vlaneseq
        %v1190 = vshrl.u32 %v1189, 7
        %v1191 = vsub.s32 %v1188, %v1190
        %v1192 = vrot.slane %v1178, %v1191
        %v1193 = vcombine.high %v1185, %v1185
        %v1194 = vcombine.high %v1192, %v1192
        %v1195 = vcombine.low %v696, %v515
        %v1196 = vcombine.low %v715, %v729
        %v1197 = vcombine.low %v517, %v743
        %v1199 = vunpack.c.l.s4 1966171168
        %v1200 = vunpack.c.0.s8 %v1199
        %v1201 = vlaneseq
        %v1202 = vshrl.u32 %v1201, 7
        %v1203 = vsub.s32 %v1200, %v1202
        %v1204 = vrot.slane %v1195, %v1203
        %v1206 = vunpack.c.l.s4 1966171168
        %v1207 = vunpack.c.0.s8 %v1206
        %v1208 = vlaneseq
        %v1209 = vshrl.u32 %v1208, 7
        %v1210 = vsub.s32 %v1207, %v1209
        %v1211 = vrot.slane %v1196, %v1210
        %v1213 = vunpack.c.l.s4 1966171168
        %v1214 = vunpack.c.0.s8 %v1213
        %v1215 = vlaneseq
        %v1216 = vshrl.u32 %v1215, 7
        %v1217 = vsub.s32 %v1214, %v1216
        %v1218 = vrot.slane %v1197, %v1217
        %v1219 = vcombine.low %v1050, %v1204
        %v1220 = vcombine.high %v1050, %v1204
        %v1221 = vcombine.low %v1211, %v1218
        %v1222 = vcombine.high %v1211, %v1218
        %v1224 = vunpack.c.l.s4 1966171168
        %v1225 = vunpack.c.0.s8 %v1224
        %v1226 = vlaneseq
        %v1227 = vshrl.u32 %v1226, 7
        %v1228 = vsub.s32 %v1225, %v1227
        %v1229 = vrot.slane %v1219, %v1228
        %v1231 = vunpack.c.l.s4 1966171168
        %v1232 = vunpack.c.0.s8 %v1231
        %v1233 = vlaneseq
        %v1234 = vshrl.u32 %v1233, 7
        %v1235 = vsub.s32 %v1232, %v1234
        %v1236 = vrot.slane %v1220, %v1235
        %v1238 = vunpack.c.l.s4 1966171168
        %v1239 = vunpack.c.0.s8 %v1238
        %v1240 = vlaneseq
        %v1241 = vshrl.u32 %v1240, 7
        %v1242 = vsub.s32 %v1239, %v1241
        %v1243 = vrot.slane %v1221, %v1242
        %v1245 = vunpack.c.l.s4 1966171168
        %v1246 = vunpack.c.0.s8 %v1245
        %v1247 = vlaneseq
        %v1248 = vshrl.u32 %v1247, 7
        %v1249 = vsub.s32 %v1246, %v1248
        %v1250 = vrot.slane %v1222, %v1249
        %v1251 = vcombine.low %v1229, %v1243
        %v1252 = vcombine.high %v1229, %v1243
        %v1253 = vcombine.low %v1236, %v1250
        %v1254 = vcombine.high %v1236, %v1250
        %v1256 = vunpack.c.l.s4 1966171168
        %v1257 = vunpack.c.0.s8 %v1256
        %v1258 = vlaneseq
        %v1259 = vshrl.u32 %v1258, 7
        %v1260 = vsub.s32 %v1257, %v1259
        %v1261 = vrot.slane %v757, %v1260
        %v1262 = vcombine.high %v1261, %v1261
        %v1264 = vunpack.c.l.s4 1966171168
        %v1265 = vunpack.c.0.s8 %v1264
        %v1266 = vlaneseq
        %v1267 = vshrl.u32 %v1266, 7
        %v1268 = vsub.s32 %v1265, %v1267
        %v1269 = vrot.slane %v1261, %v1268
        %v1271 = vunpack.c.l.s4 1966171168
        %v1272 = vunpack.c.0.s8 %v1271
        %v1273 = vlaneseq
        %v1274 = vshrl.u32 %v1273, 7
        %v1275 = vsub.s32 %v1272, %v1274
        %v1276 = vrot.slane %v1262, %v1275
        %v1277 = vcombine.high %v1269, %v1269
        %v1278 = vcombine.high %v1276, %v1276
        %v1279 = vcombine.low %v519, %v619
        %v1280 = vcombine.low %v697, %v521
        %v1281 = vcombine.low %v626, %v698
        %v1282 = vcombine.low %v523, %v633
        %v1284 = vunpack.c.l.s4 1966171168
        %v1285 = vunpack.c.0.s8 %v1284
        %v1286 = vlaneseq
        %v1287 = vshrl.u32 %v1286, 7
        %v1288 = vsub.s32 %v1285, %v1287
        %v1289 = vrot.slane %v1279, %v1288
        %v1291 = vunpack.c.l.s4 1966171168
        %v1292 = vunpack.c.0.s8 %v1291
        %v1293 = vlaneseq
        %v1294 = vshrl.u32 %v1293, 7
        %v1295 = vsub.s32 %v1292, %v1294
        %v1296 = vrot.slane %v1280, %v1295
        %v1298 = vunpack.c.l.s4 1966171168
        %v1299 = vunpack.c.0.s8 %v1298
        %v1300 = vlaneseq
        %v1301 = vshrl.u32 %v1300, 7
        %v1302 = vsub.s32 %v1299, %v1301
        %v1303 = vrot.slane %v1281, %v1302
        %v1305 = vunpack.c.l.s4 1966171168
        %v1306 = vunpack.c.0.s8 %v1305
        %v1307 = vlaneseq
        %v1308 = vshrl.u32 %v1307, 7
        %v1309 = vsub.s32 %v1306, %v1308
        %v1310 = vrot.slane %v1282, %v1309
        %v1311 = vcombine.low %v1289, %v1296
        %v1312 = vcombine.high %v1289, %v1296
        %v1313 = vcombine.low %v1303, %v1310
        %v1314 = vcombine.high %v1303, %v1310
        %v1316 = vunpack.c.l.s4 1966171168
        %v1317 = vunpack.c.0.s8 %v1316
        %v1318 = vlaneseq
        %v1319 = vshrl.u32 %v1318, 7
        %v1320 = vsub.s32 %v1317, %v1319
        %v1321 = vrot.slane %v1311, %v1320
        %v1323 = vunpack.c.l.s4 1966171168
        %v1324 = vunpack.c.0.s8 %v1323
        %v1325 = vlaneseq
        %v1326 = vshrl.u32 %v1325, 7
        %v1327 = vsub.s32 %v1324, %v1326
        %v1328 = vrot.slane %v1312, %v1327
        %v1330 = vunpack.c.l.s4 1966171168
        %v1331 = vunpack.c.0.s8 %v1330
        %v1332 = vlaneseq
        %v1333 = vshrl.u32 %v1332, 7
        %v1334 = vsub.s32 %v1331, %v1333
        %v1335 = vrot.slane %v1313, %v1334
        %v1337 = vunpack.c.l.s4 1966171168
        %v1338 = vunpack.c.0.s8 %v1337
        %v1339 = vlaneseq
        %v1340 = vshrl.u32 %v1339, 7
        %v1341 = vsub.s32 %v1338, %v1340
        %v1342 = vrot.slane %v1314, %v1341
        %v1343 = vcombine.low %v1321, %v1335
        %v1344 = vcombine.high %v1321, %v1335
        %v1345 = vcombine.low %v1328, %v1342
        %v1346 = vcombine.high %v1328, %v1342
        %v1348 = vunpack.c.l.s4 1966171168
        %v1349 = vunpack.c.0.s8 %v1348
        %v1350 = vlaneseq
        %v1351 = vshrl.u32 %v1350, 7
        %v1352 = vsub.s32 %v1349, %v1351
        %v1353 = vrot.slane %v699, %v1352
        %v1354 = vcombine.high %v1353, %v1353
        %v1356 = vunpack.c.l.s4 1966171168
        %v1357 = vunpack.c.0.s8 %v1356
        %v1358 = vlaneseq
        %v1359 = vshrl.u32 %v1358, 7
        %v1360 = vsub.s32 %v1357, %v1359
        %v1361 = vrot.slane %v1353, %v1360
        %v1363 = vunpack.c.l.s4 1966171168
        %v1364 = vunpack.c.0.s8 %v1363
        %v1365 = vlaneseq
        %v1366 = vshrl.u32 %v1365, 7
        %v1367 = vsub.s32 %v1364, %v1366
        %v1368 = vrot.slane %v1354, %v1367
        %v1369 = vcombine.high %v1361, %v1361
        %v1370 = vcombine.high %v1368, %v1368
        %v1371 = vcombine.low %v521, %v626
        %v1372 = vcombine.low %v698, %v523
        %v1373 = vcombine.low %v633, %v699
        %v1374 = vcombine.low %v525, %v640
        %v1376 = vunpack.c.l.s4 1966171168
        %v1377 = vunpack.c.0.s8 %v1376
        %v1378 = vlaneseq
        %v1379 = vshrl.u32 %v1378, 7
        %v1380 = vsub.s32 %v1377, %v1379
        %v1381 = vrot.slane %v1371, %v1380
        %v1383 = vunpack.c.l.s4 1966171168
        %v1384 = vunpack.c.0.s8 %v1383
        %v1385 = vlaneseq
        %v1386 = vshrl.u32 %v1385, 7
        %v1387 = vsub.s32 %v1384, %v1386
        %v1388 = vrot.slane %v1372, %v1387
        %v1390 = vunpack.c.l.s4 1966171168
        %v1391 = vunpack.c.0.s8 %v1390
        %v1392 = vlaneseq
        %v1393 = vshrl.u32 %v1392, 7
        %v1394 = vsub.s32 %v1391, %v1393
        %v1395 = vrot.slane %v1373, %v1394
        %v1397 = vunpack.c.l.s4 1966171168
        %v1398 = vunpack.c.0.s8 %v1397
        %v1399 = vlaneseq
        %v1400 = vshrl.u32 %v1399, 7
        %v1401 = vsub.s32 %v1398, %v1400
        %v1402 = vrot.slane %v1374, %v1401
        %v1403 = vcombine.low %v1381, %v1388
        %v1404 = vcombine.high %v1381, %v1388
        %v1405 = vcombine.low %v1395, %v1402
        %v1406 = vcombine.high %v1395, %v1402
        %v1408 = vunpack.c.l.s4 1966171168
        %v1409 = vunpack.c.0.s8 %v1408
        %v1410 = vlaneseq
        %v1411 = vshrl.u32 %v1410, 7
        %v1412 = vsub.s32 %v1409, %v1411
        %v1413 = vrot.slane %v1403, %v1412
        %v1415 = vunpack.c.l.s4 1966171168
        %v1416 = vunpack.c.0.s8 %v1415
        %v1417 = vlaneseq
        %v1418 = vshrl.u32 %v1417, 7
        %v1419 = vsub.s32 %v1416, %v1418
        %v1420 = vrot.slane %v1404, %v1419
        %v1422 = vunpack.c.l.s4 1966171168
        %v1423 = vunpack.c.0.s8 %v1422
        %v1424 = vlaneseq
        %v1425 = vshrl.u32 %v1424, 7
        %v1426 = vsub.s32 %v1423, %v1425
        %v1427 = vrot.slane %v1405, %v1426
        %v1429 = vunpack.c.l.s4 1966171168
        %v1430 = vunpack.c.0.s8 %v1429
        %v1431 = vlaneseq
        %v1432 = vshrl.u32 %v1431, 7
        %v1433 = vsub.s32 %v1430, %v1432
        %v1434 = vrot.slane %v1406, %v1433
        %v1435 = vcombine.low %v1413, %v1427
        %v1436 = vcombine.high %v1413, %v1427
        %v1437 = vcombine.low %v1420, %v1434
        %v1438 = vcombine.high %v1420, %v1434
        %v1440 = vunpack.c.l.s4 1966171168
        %v1441 = vunpack.c.0.s8 %v1440
        %v1442 = vlaneseq
        %v1443 = vshrl.u32 %v1442, 7
        %v1444 = vsub.s32 %v1441, %v1443
        %v1445 = vrot.slane %v700, %v1444
        %v1446 = vcombine.high %v1445, %v1445
        %v1448 = vunpack.c.l.s4 1966171168
        %v1449 = vunpack.c.0.s8 %v1448
        %v1450 = vlaneseq
        %v1451 = vshrl.u32 %v1450, 7
        %v1452 = vsub.s32 %v1449, %v1451
        %v1453 = vrot.slane %v1445, %v1452
        %v1455 = vunpack.c.l.s4 1966171168
        %v1456 = vunpack.c.0.s8 %v1455
        %v1457 = vlaneseq
        %v1458 = vshrl.u32 %v1457, 7
        %v1459 = vsub.s32 %v1456, %v1458
        %v1460 = vrot.slane %v1446, %v1459
        %v1461 = vcombine.high %v1453, %v1453
        %v1462 = vcombine.high %v1460, %v1460
        %v1463 = vcombine.low %v699, %v525
        %v1464 = vcombine.low %v640, %v700
        %v1465 = vcombine.low %v527, %v647
        %v1467 = vunpack.c.l.s4 1966171168
        %v1468 = vunpack.c.0.s8 %v1467
        %v1469 = vlaneseq
        %v1470 = vshrl.u32 %v1469, 7
        %v1471 = vsub.s32 %v1468, %v1470
        %v1472 = vrot.slane %v1463, %v1471
        %v1474 = vunpack.c.l.s4 1966171168
        %v1475 = vunpack.c.0.s8 %v1474
        %v1476 = vlaneseq
        %v1477 = vshrl.u32 %v1476, 7
        %v1478 = vsub.s32 %v1475, %v1477
        %v1479 = vrot.slane %v1464, %v1478
        %v1481 = vunpack.c.l.s4 1966171168
        %v1482 = vunpack.c.0.s8 %v1481
        %v1483 = vlaneseq
        %v1484 = vshrl.u32 %v1483, 7
        %v1485 = vsub.s32 %v1482, %v1484
        %v1486 = vrot.slane %v1465, %v1485
        %v1487 = vcombine.low %v1310, %v1472
        %v1488 = vcombine.high %v1310, %v1472
        %v1489 = vcombine.low %v1479, %v1486
        %v1490 = vcombine.high %v1479, %v1486
        %v1492 = vunpack.c.l.s4 1966171168
        %v1493 = vunpack.c.0.s8 %v1492
        %v1494 = vlaneseq
        %v1495 = vshrl.u32 %v1494, 7
        %v1496 = vsub.s32 %v1493, %v1495
        %v1497 = vrot.slane %v1487, %v1496
        %v1499 = vunpack.c.l.s4 1966171168
        %v1500 = vunpack.c.0.s8 %v1499
        %v1501 = vlaneseq
        %v1502 = vshrl.u32 %v1501, 7
        %v1503 = vsub.s32 %v1500, %v1502
        %v1504 = vrot.slane %v1488, %v1503
        %v1506 = vunpack.c.l.s4 1966171168
        %v1507 = vunpack.c.0.s8 %v1506
        %v1508 = vlaneseq
        %v1509 = vshrl.u32 %v1508, 7
        %v1510 = vsub.s32 %v1507, %v1509
        %v1511 = vrot.slane %v1489, %v1510
        %v1513 = vunpack.c.l.s4 1966171168
        %v1514 = vunpack.c.0.s8 %v1513
        %v1515 = vlaneseq
        %v1516 = vshrl.u32 %v1515, 7
        %v1517 = vsub.s32 %v1514, %v1516
        %v1518 = vrot.slane %v1490, %v1517
        %v1519 = vcombine.low %v1497, %v1511
        %v1520 = vcombine.high %v1497, %v1511
        %v1521 = vcombine.low %v1504, %v1518
        %v1522 = vcombine.high %v1504, %v1518
        %v1524 = vunpack.c.l.s4 1966171168
        %v1525 = vunpack.c.0.s8 %v1524
        %v1526 = vlaneseq
        %v1527 = vshrl.u32 %v1526, 7
        %v1528 = vsub.s32 %v1525, %v1527
        %v1529 = vrot.slane %v701, %v1528
        %v1530 = vcombine.high %v1529, %v1529
        %v1532 = vunpack.c.l.s4 1966171168
        %v1533 = vunpack.c.0.s8 %v1532
        %v1534 = vlaneseq
        %v1535 = vshrl.u32 %v1534, 7
        %v1536 = vsub.s32 %v1533, %v1535
        %v1537 = vrot.slane %v1529, %v1536
        %v1539 = vunpack.c.l.s4 1966171168
        %v1540 = vunpack.c.0.s8 %v1539
        %v1541 = vlaneseq
        %v1542 = vshrl.u32 %v1541, 7
        %v1543 = vsub.s32 %v1540, %v1542
        %v1544 = vrot.slane %v1530, %v1543
        %v1545 = vcombine.high %v1537, %v1537
        %v1546 = vcombine.high %v1544, %v1544
        %v1547 = vcombine.low %v700, %v527
        %v1548 = vcombine.low %v647, %v701
        %v1549 = vcombine.low %v529, %v654
        %v1551 = vunpack.c.l.s4 1966171168
        %v1552 = vunpack.c.0.s8 %v1551
        %v1553 = vlaneseq
        %v1554 = vshrl.u32 %v1553, 7
        %v1555 = vsub.s32 %v1552, %v1554
        %v1556 = vrot.slane %v1547, %v1555
        %v1558 = vunpack.c.l.s4 1966171168
        %v1559 = vunpack.c.0.s8 %v1558
        %v1560 = vlaneseq
        %v1561 = vshrl.u32 %v1560, 7
        %v1562 = vsub.s32 %v1559, %v1561
        %v1563 = vrot.slane %v1548, %v1562
        %v1565 = vunpack.c.l.s4 1966171168
        %v1566 = vunpack.c.0.s8 %v1565
        %v1567 = vlaneseq
        %v1568 = vshrl.u32 %v1567, 7
        %v1569 = vsub.s32 %v1566, %v1568
        %v1570 = vrot.slane %v1549, %v1569
        %v1571 = vcombine.low %v1402, %v1556
        %v1572 = vcombine.high %v1402, %v1556
        %v1573 = vcombine.low %v1563, %v1570
        %v1574 = vcombine.high %v1563, %v1570
        %v1576 = vunpack.c.l.s4 1966171168
        %v1577 = vunpack.c.0.s8 %v1576
        %v1578 = vlaneseq
        %v1579 = vshrl.u32 %v1578, 7
        %v1580 = vsub.s32 %v1577, %v1579
        %v1581 = vrot.slane %v1571, %v1580
        %v1583 = vunpack.c.l.s4 1966171168
        %v1584 = vunpack.c.0.s8 %v1583
        %v1585 = vlaneseq
        %v1586 = vshrl.u32 %v1585, 7
        %v1587 = vsub.s32 %v1584, %v1586
        %v1588 = vrot.slane %v1572, %v1587
        %v1590 = vunpack.c.l.s4 1966171168
        %v1591 = vunpack.c.0.s8 %v1590
        %v1592 = vlaneseq
        %v1593 = vshrl.u32 %v1592, 7
        %v1594 = vsub.s32 %v1591, %v1593
        %v1595 = vrot.slane %v1573, %v1594
        %v1597 = vunpack.c.l.s4 1966171168
        %v1598 = vunpack.c.0.s8 %v1597
        %v1599 = vlaneseq
        %v1600 = vshrl.u32 %v1599, 7
        %v1601 = vsub.s32 %v1598, %v1600
        %v1602 = vrot.slane %v1574, %v1601
        %v1603 = vcombine.low %v1581, %v1595
        %v1604 = vcombine.high %v1581, %v1595
        %v1605 = vcombine.low %v1588, %v1602
        %v1606 = vcombine.high %v1588, %v1602
        %v1608 = vunpack.c.l.s4 1966171168
        %v1609 = vunpack.c.0.s8 %v1608
        %v1610 = vlaneseq
        %v1611 = vshrl.u32 %v1610, 7
        %v1612 = vsub.s32 %v1609, %v1611
        %v1613 = vrot.slane %v702, %v1612
        %v1614 = vcombine.high %v1613, %v1613
        %v1616 = vunpack.c.l.s4 1966171168
        %v1617 = vunpack.c.0.s8 %v1616
        %v1618 = vlaneseq
        %v1619 = vshrl.u32 %v1618, 7
        %v1620 = vsub.s32 %v1617, %v1619
        %v1621 = vrot.slane %v1613, %v1620
        %v1623 = vunpack.c.l.s4 1966171168
        %v1624 = vunpack.c.0.s8 %v1623
        %v1625 = vlaneseq
        %v1626 = vshrl.u32 %v1625, 7
        %v1627 = vsub.s32 %v1624, %v1626
        %v1628 = vrot.slane %v1614, %v1627
        %v1629 = vcombine.high %v1621, %v1621
        %v1630 = vcombine.high %v1628, %v1628
        %v1631 = vcombine.low %v701, %v529
        %v1632 = vcombine.low %v654, %v702
        %v1633 = vcombine.low %v531, %v722
        %v1635 = vunpack.c.l.s4 1966171168
        %v1636 = vunpack.c.0.s8 %v1635
        %v1637 = vlaneseq
        %v1638 = vshrl.u32 %v1637, 7
        %v1639 = vsub.s32 %v1636, %v1638
        %v1640 = vrot.slane %v1631, %v1639
        %v1642 = vunpack.c.l.s4 1966171168
        %v1643 = vunpack.c.0.s8 %v1642
        %v1644 = vlaneseq
        %v1645 = vshrl.u32 %v1644, 7
        %v1646 = vsub.s32 %v1643, %v1645
        %v1647 = vrot.slane %v1632, %v1646
        %v1649 = vunpack.c.l.s4 1966171168
        %v1650 = vunpack.c.0.s8 %v1649
        %v1651 = vlaneseq
        %v1652 = vshrl.u32 %v1651, 7
        %v1653 = vsub.s32 %v1650, %v1652
        %v1654 = vrot.slane %v1633, %v1653
        %v1655 = vcombine.low %v1486, %v1640
        %v1656 = vcombine.high %v1486, %v1640
        %v1657 = vcombine.low %v1647, %v1654
        %v1658 = vcombine.high %v1647, %v1654
        %v1660 = vunpack.c.l.s4 1966171168
        %v1661 = vunpack.c.0.s8 %v1660
        %v1662 = vlaneseq
        %v1663 = vshrl.u32 %v1662, 7
        %v1664 = vsub.s32 %v1661, %v1663
        %v1665 = vrot.slane %v1655, %v1664
        %v1667 = vunpack.c.l.s4 1966171168
        %v1668 = vunpack.c.0.s8 %v1667
        %v1669 = vlaneseq
        %v1670 = vshrl.u32 %v1669, 7
        %v1671 = vsub.s32 %v1668, %v1670
        %v1672 = vrot.slane %v1656, %v1671
        %v1674 = vunpack.c.l.s4 1966171168
        %v1675 = vunpack.c.0.s8 %v1674
        %v1676 = vlaneseq
        %v1677 = vshrl.u32 %v1676, 7
        %v1678 = vsub.s32 %v1675, %v1677
        %v1679 = vrot.slane %v1657, %v1678
        %v1681 = vunpack.c.l.s4 1966171168
        %v1682 = vunpack.c.0.s8 %v1681
        %v1683 = vlaneseq
        %v1684 = vshrl.u32 %v1683, 7
        %v1685 = vsub.s32 %v1682, %v1684
        %v1686 = vrot.slane %v1658, %v1685
        %v1687 = vcombine.low %v1665, %v1679
        %v1688 = vcombine.high %v1665, %v1679
        %v1689 = vcombine.low %v1672, %v1686
        %v1690 = vcombine.high %v1672, %v1686
        %v1692 = vunpack.c.l.s4 1966171168
        %v1693 = vunpack.c.0.s8 %v1692
        %v1694 = vlaneseq
        %v1695 = vshrl.u32 %v1694, 7
        %v1696 = vsub.s32 %v1693, %v1695
        %v1697 = vrot.slane %v730, %v1696
        %v1698 = vcombine.high %v1697, %v1697
        %v1700 = vunpack.c.l.s4 1966171168
        %v1701 = vunpack.c.0.s8 %v1700
        %v1702 = vlaneseq
        %v1703 = vshrl.u32 %v1702, 7
        %v1704 = vsub.s32 %v1701, %v1703
        %v1705 = vrot.slane %v1697, %v1704
        %v1707 = vunpack.c.l.s4 1966171168
        %v1708 = vunpack.c.0.s8 %v1707
        %v1709 = vlaneseq
        %v1710 = vshrl.u32 %v1709, 7
        %v1711 = vsub.s32 %v1708, %v1710
        %v1712 = vrot.slane %v1698, %v1711
        %v1713 = vcombine.high %v1705, %v1705
        %v1714 = vcombine.high %v1712, %v1712
        %v1715 = vcombine.low %v702, %v531
        %v1716 = vcombine.low %v722, %v730
        %v1717 = vcombine.low %v533, %v750
        %v1719 = vunpack.c.l.s4 1966171168
        %v1720 = vunpack.c.0.s8 %v1719
        %v1721 = vlaneseq
        %v1722 = vshrl.u32 %v1721, 7
        %v1723 = vsub.s32 %v1720, %v1722
        %v1724 = vrot.slane %v1715, %v1723
        %v1726 = vunpack.c.l.s4 1966171168
        %v1727 = vunpack.c.0.s8 %v1726
        %v1728 = vlaneseq
        %v1729 = vshrl.u32 %v1728, 7
        %v1730 = vsub.s32 %v1727, %v1729
        %v1731 = vrot.slane %v1716, %v1730
        %v1733 = vunpack.c.l.s4 1966171168
        %v1734 = vunpack.c.0.s8 %v1733
        %v1735 = vlaneseq
        %v1736 = vshrl.u32 %v1735, 7
        %v1737 = vsub.s32 %v1734, %v1736
        %v1738 = vrot.slane %v1717, %v1737
        %v1739 = vcombine.low %v1570, %v1724
        %v1740 = vcombine.high %v1570, %v1724
        %v1741 = vcombine.low %v1731, %v1738
        %v1742 = vcombine.high %v1731, %v1738
        %v1744 = vunpack.c.l.s4 1966171168
        %v1745 = vunpack.c.0.s8 %v1744
        %v1746 = vlaneseq
        %v1747 = vshrl.u32 %v1746, 7
        %v1748 = vsub.s32 %v1745, %v1747
        %v1749 = vrot.slane %v1739, %v1748
        %v1751 = vunpack.c.l.s4 1966171168
        %v1752 = vunpack.c.0.s8 %v1751
        %v1753 = vlaneseq
        %v1754 = vshrl.u32 %v1753, 7
        %v1755 = vsub.s32 %v1752, %v1754
        %v1756 = vrot.slane %v1740, %v1755
        %v1758 = vunpack.c.l.s4 1966171168
        %v1759 = vunpack.c.0.s8 %v1758
        %v1760 = vlaneseq
        %v1761 = vshrl.u32 %v1760, 7
        %v1762 = vsub.s32 %v1759, %v1761
        %v1763 = vrot.slane %v1741, %v1762
        %v1765 = vunpack.c.l.s4 1966171168
        %v1766 = vunpack.c.0.s8 %v1765
        %v1767 = vlaneseq
        %v1768 = vshrl.u32 %v1767, 7
        %v1769 = vsub.s32 %v1766, %v1768
        %v1770 = vrot.slane %v1742, %v1769
        %v1771 = vcombine.low %v1749, %v1763
        %v1772 = vcombine.high %v1749, %v1763
        %v1773 = vcombine.low %v1756, %v1770
        %v1774 = vcombine.high %v1756, %v1770
        %v1776 = vunpack.c.l.s4 1966171168
        %v1777 = vunpack.c.0.s8 %v1776
        %v1778 = vlaneseq
        %v1779 = vshrl.u32 %v1778, 7
        %v1780 = vsub.s32 %v1777, %v1779
        %v1781 = vrot.slane %v758, %v1780
        %v1782 = vcombine.high %v1781, %v1781
        %v1784 = vunpack.c.l.s4 1966171168
        %v1785 = vunpack.c.0.s8 %v1784
        %v1786 = vlaneseq
        %v1787 = vshrl.u32 %v1786, 7
        %v1788 = vsub.s32 %v1785, %v1787
        %v1789 = vrot.slane %v1781, %v1788
        %v1791 = vunpack.c.l.s4 1966171168
        %v1792 = vunpack.c.0.s8 %v1791
        %v1793 = vlaneseq
        %v1794 = vshrl.u32 %v1793, 7
        %v1795 = vsub.s32 %v1792, %v1794
        %v1796 = vrot.slane %v1782, %v1795
        %v1797 = vcombine.high %v1789, %v1789
        %v1798 = vcombine.high %v1796, %v1796
        %v1799 = vunpack.i.l.s16 %v823
        %v1800 = vunpack.i.l.s16 %v841
        %v1801 = vunpack.i.h.s16 %v823
        %v1802 = vunpack.i.h.s16 %v841
        %v1803 = vunpack.i.l.s16 %v825
        %v1804 = vunpack.i.l.s16 %v848
        %v1805 = vunpack.i.h.s16 %v825
        %v1806 = vunpack.i.h.s16 %v848
        %v1807 = vunpack.i.l.s16 %v824
        %v1808 = vunpack.i.l.s16 %v849
        %v1809 = vunpack.i.h.s16 %v824
        %v1810 = vunpack.i.h.s16 %v849
        %v1811 = vunpack.i.l.s16 %v826
        %v1812 = vunpack.i.l.s16 %v850
        %v1813 = vunpack.i.l.s16 %v915
        %v1814 = vunpack.i.l.s16 %v933
        %v1815 = vunpack.i.h.s16 %v915
        %v1816 = vunpack.i.h.s16 %v933
        %v1817 = vunpack.i.l.s16 %v917
        %v1818 = vunpack.i.l.s16 %v940
        %v1819 = vunpack.i.h.s16 %v917
        %v1820 = vunpack.i.h.s16 %v940
        %v1821 = vunpack.i.l.s16 %v916
        %v1822 = vunpack.i.l.s16 %v941
        %v1823 = vunpack.i.h.s16 %v916
        %v1824 = vunpack.i.h.s16 %v941
        %v1825 = vunpack.i.l.s16 %v918
        %v1826 = vunpack.i.l.s16 %v942
        %v1827 = vunpack.i.l.s16 %v999
        %v1828 = vunpack.i.l.s16 %v1017
        %v1829 = vunpack.i.h.s16 %v999
        %v1830 = vunpack.i.h.s16 %v1017
        %v1831 = vunpack.i.l.s16 %v1001
        %v1832 = vunpack.i.l.s16 %v1024
        %v1833 = vunpack.i.h.s16 %v1001
        %v1834 = vunpack.i.h.s16 %v1024
        %v1835 = vunpack.i.l.s16 %v1000
        %v1836 = vunpack.i.l.s16 %v1025
        %v1837 = vunpack.i.h.s16 %v1000
        %v1838 = vunpack.i.h.s16 %v1025
        %v1839 = vunpack.i.l.s16 %v1002
        %v1840 = vunpack.i.l.s16 %v1026
        %v1841 = vunpack.i.l.s16 %v1083
        %v1842 = vunpack.i.l.s16 %v1101
        %v1843 = vunpack.i.h.s16 %v1083
        %v1844 = vunpack.i.h.s16 %v1101
        %v1845 = vunpack.i.l.s16 %v1085
        %v1846 = vunpack.i.l.s16 %v1108
        %v1847 = vunpack.i.h.s16 %v1085
        %v1848 = vunpack.i.h.s16 %v1108
        %v1849 = vunpack.i.l.s16 %v1084
        %v1850 = vunpack.i.l.s16 %v1109
        %v1851 = vunpack.i.h.s16 %v1084
        %v1852 = vunpack.i.h.s16 %v1109
        %v1853 = vunpack.i.l.s16 %v1086
        %v1854 = vunpack.i.l.s16 %v1110
        %v1855 = vunpack.i.l.s16 %v1167
        %v1856 = vunpack.i.l.s16 %v1185
        %v1857 = vunpack.i.h.s16 %v1167
        %v1858 = vunpack.i.h.s16 %v1185
        %v1859 = vunpack.i.l.s16 %v1169
        %v1860 = vunpack.i.l.s16 %v1192
        %v1861 = vunpack.i.h.s16 %v1169
        %v1862 = vunpack.i.h.s16 %v1192
        %v1863 = vunpack.i.l.s16 %v1168
        %v1864 = vunpack.i.l.s16 %v1193
        %v1865 = vunpack.i.h.s16 %v1168
        %v1866 = vunpack.i.h.s16 %v1193
        %v1867 = vunpack.i.l.s16 %v1170
        %v1868 = vunpack.i.l.s16 %v1194
        %v1869 = vunpack.i.l.s16 %v1251
        %v1870 = vunpack.i.l.s16 %v1269
        %v1871 = vunpack.i.h.s16 %v1251
        %v1872 = vunpack.i.h.s16 %v1269
        %v1873 = vunpack.i.l.s16 %v1253
        %v1874 = vunpack.i.l.s16 %v1276
        %v1875 = vunpack.i.h.s16 %v1253
        %v1876 = vunpack.i.h.s16 %v1276
        %v1877 = vunpack.i.l.s16 %v1252
        %v1878 = vunpack.i.l.s16 %v1277
        %v1879 = vunpack.i.h.s16 %v1252
        %v1880 = vunpack.i.h.s16 %v1277
        %v1881 = vunpack.i.l.s16 %v1254
        %v1882 = vunpack.i.l.s16 %v1278
        %v1883 = vunpack.i.l.s16 %v1343
        %v1884 = vunpack.i.l.s16 %v1361
        %v1885 = vunpack.i.h.s16 %v1343
        %v1886 = vunpack.i.h.s16 %v1361
        %v1887 = vunpack.i.l.s16 %v1345
        %v1888 = vunpack.i.l.s16 %v1368
        %v1889 = vunpack.i.h.s16 %v1345
        %v1890 = vunpack.i.h.s16 %v1368
        %v1891 = vunpack.i.l.s16 %v1344
        %v1892 = vunpack.i.l.s16 %v1369
        %v1893 = vunpack.i.h.s16 %v1344
        %v1894 = vunpack.i.h.s16 %v1369
        %v1895 = vunpack.i.l.s16 %v1346
        %v1896 = vunpack.i.l.s16 %v1370
        %v1897 = vunpack.i.l.s16 %v1435
        %v1898 = vunpack.i.l.s16 %v1453
        %v1899 = vunpack.i.h.s16 %v1435
        %v1900 = vunpack.i.h.s16 %v1453
        %v1901 = vunpack.i.l.s16 %v1437
        %v1902 = vunpack.i.l.s16 %v1460
        %v1903 = vunpack.i.h.s16 %v1437
        %v1904 = vunpack.i.h.s16 %v1460
        %v1905 = vunpack.i.l.s16 %v1436
        %v1906 = vunpack.i.l.s16 %v1461
        %v1907 = vunpack.i.h.s16 %v1436
        %v1908 = vunpack.i.h.s16 %v1461
        %v1909 = vunpack.i.l.s16 %v1438
        %v1910 = vunpack.i.l.s16 %v1462
        %v1911 = vunpack.i.l.s16 %v1519
        %v1912 = vunpack.i.l.s16 %v1537
        %v1913 = vunpack.i.h.s16 %v1519
        %v1914 = vunpack.i.h.s16 %v1537
        %v1915 = vunpack.i.l.s16 %v1521
        %v1916 = vunpack.i.l.s16 %v1544
        %v1917 = vunpack.i.h.s16 %v1521
        %v1918 = vunpack.i.h.s16 %v1544
        %v1919 = vunpack.i.l.s16 %v1520
        %v1920 = vunpack.i.l.s16 %v1545
        %v1921 = vunpack.i.h.s16 %v1520
        %v1922 = vunpack.i.h.s16 %v1545
        %v1923 = vunpack.i.l.s16 %v1522
        %v1924 = vunpack.i.l.s16 %v1546
        %v1925 = vunpack.i.l.s16 %v1603
        %v1926 = vunpack.i.l.s16 %v1621
        %v1927 = vunpack.i.h.s16 %v1603
        %v1928 = vunpack.i.h.s16 %v1621
        %v1929 = vunpack.i.l.s16 %v1605
        %v1930 = vunpack.i.l.s16 %v1628
        %v1931 = vunpack.i.h.s16 %v1605
        %v1932 = vunpack.i.h.s16 %v1628
        %v1933 = vunpack.i.l.s16 %v1604
        %v1934 = vunpack.i.l.s16 %v1629
        %v1935 = vunpack.i.h.s16 %v1604
        %v1936 = vunpack.i.h.s16 %v1629
        %v1937 = vunpack.i.l.s16 %v1606
        %v1938 = vunpack.i.l.s16 %v1630
        %v1939 = vunpack.i.l.s16 %v1687
        %v1940 = vunpack.i.l.s16 %v1705
        %v1941 = vunpack.i.h.s16 %v1687
        %v1942 = vunpack.i.h.s16 %v1705
        %v1943 = vunpack.i.l.s16 %v1689
        %v1944 = vunpack.i.l.s16 %v1712
        %v1945 = vunpack.i.h.s16 %v1689
        %v1946 = vunpack.i.h.s16 %v1712
        %v1947 = vunpack.i.l.s16 %v1688
        %v1948 = vunpack.i.l.s16 %v1713
        %v1949 = vunpack.i.h.s16 %v1688
        %v1950 = vunpack.i.h.s16 %v1713
        %v1951 = vunpack.i.l.s16 %v1690
        %v1952 = vunpack.i.l.s16 %v1714
        %v1953 = vunpack.i.l.s16 %v1771
        %v1954 = vunpack.i.l.s16 %v1789
        %v1955 = vunpack.i.h.s16 %v1771
        %v1956 = vunpack.i.h.s16 %v1789
        %v1957 = vunpack.i.l.s16 %v1773
        %v1958 = vunpack.i.l.s16 %v1796
        %v1959 = vunpack.i.h.s16 %v1773
        %v1960 = vunpack.i.h.s16 %v1796
        %v1961 = vunpack.i.l.s16 %v1772
        %v1962 = vunpack.i.l.s16 %v1797
        %v1963 = vunpack.i.h.s16 %v1772
        %v1964 = vunpack.i.h.s16 %v1797
        %v1965 = vunpack.i.l.s16 %v1774
        %v1966 = vunpack.i.l.s16 %v1798
        %v1967 = vld [vmem:[%s1] sm:$0xf]
        %v1968 = vld [vmem:[%s1 + $0x4] sm:$0xf]
        %v1969 = vld [vmem:[%s1 + $0x8] sm:$0xf]
        %v1970 = vld [vmem:[%s1 + $0xc] sm:$0xf]
        %v1971 = vld [vmem:[%s1 + $0x10] sm:$0xf]
        %v1972 = vld [vmem:[%s1 + $0x14] sm:$0xf]
        %v1973 = vld [vmem:[%s1 + $0x18] sm:$0xf]
        %v1974 = vld [vmem:[%s1 + $0x1c] sm:$0xf]
        %v1975 = vld [vmem:[%s1 + $0x20] sm:$0xf]
        %v1976 = vld [vmem:[%s1 + $0x24] sm:$0xf]
        %v1977 = vld [vmem:[%s1 + $0x28] sm:$0xf]
        %v1978 = vld [vmem:[%s1 + $0x2c] sm:$0xf]
        %v1979 = vld [vmem:[%s1 + $0x30] sm:$0xf]
        %v1980 = vld [vmem:[%s1 + $0x34] sm:$0xf]
        %v1981 = vld [vmem:[%s1 + $0x38] sm:$0xf]
        %v1982 = vld [vmem:[%s1 + $0x3c] sm:$0xf]
        %v1983 = vld [vmem:[%s1 + $0x40] sm:$0xf]
        %v1984 = vld [vmem:[%s1 + $0x44] sm:$0xf]
        %v1985 = vld [vmem:[%s1 + $0x48] sm:$0xf]
        %v1986 = vld [vmem:[%s1 + $0x4c] sm:$0xf]
        %v1987 = vld [vmem:[%s1 + $0x50] sm:$0xf]
        %v1988 = vld [vmem:[%s1 + $0x54] sm:$0xf]
        %v1989 = vld [vmem:[%s1 + $0x58] sm:$0xf]
        %v1990 = vld [vmem:[%s1 + $0x5c] sm:$0xf]
        %v1991 = vld [vmem:[%s1 + $0x60] sm:$0xf]
        %v1992 = vld [vmem:[%s1 + $0x64] sm:$0xf]
        %v1993 = vld [vmem:[%s1 + $0x68] sm:$0xf]
        %v1994 = vld [vmem:[%s1 + $0x6c] sm:$0xf]
        %v1995 = vld [vmem:[%s1 + $0x70] sm:$0xf]
        %v1996 = vld [vmem:[%s1 + $0x74] sm:$0xf]
        %v1997 = vld [vmem:[%s1 + $0x78] sm:$0xf]
        %v1998 = vld [vmem:[%s1 + $0x7c] sm:$0xf]
        %v1999 = vld [vmem:[%s1 + $0x80] sm:$0xf]
        %v2000 = vld [vmem:[%s1 + $0x84] sm:$0xf]
        %v2001 = vld [vmem:[%s1 + $0x88] sm:$0xf]
        %v2002 = vld [vmem:[%s1 + $0x8c] sm:$0xf]
        %v2003 = vld [vmem:[%s1 + $0x90] sm:$0xf]
        %v2004 = vld [vmem:[%s1 + $0x94] sm:$0xf]
        %v2005 = vld [vmem:[%s1 + $0x98] sm:$0xf]
        %v2006 = vld [vmem:[%s1 + $0x9c] sm:$0xf]
        %v2007 = vld [vmem:[%s1 + $0xa0] sm:$0xf]
        %v2008 = vld [vmem:[%s1 + $0xa4] sm:$0xf]
        %v2009 = vld [vmem:[%s1 + $0xa8] sm:$0xf]
        %v2010 = vld [vmem:[%s1 + $0xac] sm:$0xf]
        %v2011 = vld [vmem:[%s1 + $0xb0] sm:$0xf]
        %v2012 = vld [vmem:[%s1 + $0xb4] sm:$0xf]
        %v2013 = vld [vmem:[%s1 + $0xb8] sm:$0xf]
        %v2014 = vld [vmem:[%s1 + $0xbc] sm:$0xf]
        %v2015 = vld [vmem:[%s1 + $0xc0] sm:$0xf]
        %v2016 = vld [vmem:[%s1 + $0xc4] sm:$0xf]
        %v2017 = vld [vmem:[%s1 + $0xc8] sm:$0xf]
        %v2018 = vld [vmem:[%s1 + $0xcc] sm:$0xf]
        %v2019 = vld [vmem:[%s1 + $0xd0] sm:$0xf]
        %v2020 = vld [vmem:[%s1 + $0xd4] sm:$0xf]
        %v2021 = vld [vmem:[%s1 + $0xd8] sm:$0xf]
        %v2022 = vld [vmem:[%s1 + $0xdc] sm:$0xf]
        %v2023 = vld [vmem:[%s1 + $0xe0] sm:$0xf]
        %v2024 = vld [vmem:[%s1 + $0xe4] sm:$0xf]
        %v2025 = vld [vmem:[%s1 + $0xe8] sm:$0xf]
        %v2026 = vld [vmem:[%s1 + $0xec] sm:$0xf]
        %v2027 = vld [vmem:[%s1 + $0xf0] sm:$0xf]
        %v2028 = vld [vmem:[%s1 + $0xf4] sm:$0xf]
        %v2029 = vld [vmem:[%s1 + $0xf8] sm:$0xf]
        %v2030 = vld [vmem:[%s1 + $0xfc] sm:$0xf]
        %v2031 = vld [vmem:[%s1 + $0x100] sm:$0xf]
        %v2032 = vld [vmem:[%s1 + $0x104] sm:$0xf]
        %v2033 = vld [vmem:[%s1 + $0x108] sm:$0xf]
        %v2034 = vld [vmem:[%s1 + $0x10c] sm:$0xf]
        %v2035 = vld [vmem:[%s1 + $0x110] sm:$0xf]
        %v2036 = vld [vmem:[%s1 + $0x114] sm:$0xf]
        %v2037 = vld [vmem:[%s1 + $0x118] sm:$0xf]
        %v2038 = vld [vmem:[%s1 + $0x11c] sm:$0xf]
        %v2039 = vld [vmem:[%s1 + $0x120] sm:$0xf]
        %v2040 = vld [vmem:[%s1 + $0x124] sm:$0xf]
        %v2041 = vld [vmem:[%s1 + $0x128] sm:$0xf]
        %v2042 = vld [vmem:[%s1 + $0x12c] sm:$0xf]
        %v2043 = vld [vmem:[%s1 + $0x130] sm:$0xf]
        %v2044 = vld [vmem:[%s1 + $0x134] sm:$0xf]
        %v2045 = vld [vmem:[%s1 + $0x138] sm:$0xf]
        %v2046 = vld [vmem:[%s1 + $0x13c] sm:$0xf]
        %v2047 = vld [vmem:[%s1 + $0x140] sm:$0xf]
        %v2048 = vld [vmem:[%s1 + $0x144] sm:$0xf]
        %v2049 = vld [vmem:[%s1 + $0x148] sm:$0xf]
        %v2050 = vld [vmem:[%s1 + $0x14c] sm:$0xf]
        %v2051 = vld [vmem:[%s1 + $0x150] sm:$0xf]
        %v2052 = vld [vmem:[%s1 + $0x154] sm:$0xf]
        %v2053 = vld [vmem:[%s1 + $0x158] sm:$0xf]
        %v2054 = vld [vmem:[%s1 + $0x15c] sm:$0xf]
        %v2055 = vld [vmem:[%s1 + $0x160] sm:$0xf]
        %v2056 = vld [vmem:[%s1 + $0x164] sm:$0xf]
        %v2057 = vld [vmem:[%s1 + $0x168] sm:$0xf]
        %v2058 = vld [vmem:[%s1 + $0x16c] sm:$0xf]
        %v2059 = vld [vmem:[%s1 + $0x170] sm:$0xf]
        %v2060 = vld [vmem:[%s1 + $0x174] sm:$0xf]
        %v2061 = vld [vmem:[%s1 + $0x178] sm:$0xf]
        %v2062 = vld [vmem:[%s1 + $0x17c] sm:$0xf]
        %v2063 = vld [vmem:[%s1 + $0x180] sm:$0xf]
        %v2064 = vld [vmem:[%s1 + $0x184] sm:$0xf]
        %v2065 = vld [vmem:[%s1 + $0x188] sm:$0xf]
        %v2066 = vld [vmem:[%s1 + $0x18c] sm:$0xf]
        %v2067 = vld [vmem:[%s1 + $0x190] sm:$0xf]
        %v2068 = vld [vmem:[%s1 + $0x194] sm:$0xf]
        %v2069 = vld [vmem:[%s1 + $0x198] sm:$0xf]
        %v2070 = vld [vmem:[%s1 + $0x19c] sm:$0xf]
        %v2071 = vld [vmem:[%s1 + $0x1a0] sm:$0xf]
        %v2072 = vld [vmem:[%s1 + $0x1a4] sm:$0xf]
        %v2073 = vld [vmem:[%s1 + $0x1a8] sm:$0xf]
        %v2074 = vld [vmem:[%s1 + $0x1ac] sm:$0xf]
        %v2075 = vld [vmem:[%s1 + $0x1b0] sm:$0xf]
        %v2076 = vld [vmem:[%s1 + $0x1b4] sm:$0xf]
        %v2077 = vld [vmem:[%s1 + $0x1b8] sm:$0xf]
        %v2078 = vld [vmem:[%s1 + $0x1bc] sm:$0xf]
        %v2079 = vld [vmem:[%s1 + $0x1c0] sm:$0xf]
        %v2080 = vld [vmem:[%s1 + $0x1c4] sm:$0xf]
        %v2081 = vld [vmem:[%s1 + $0x1c8] sm:$0xf]
        %v2082 = vld [vmem:[%s1 + $0x1cc] sm:$0xf]
        %v2083 = vld [vmem:[%s1 + $0x1d0] sm:$0xf]
        %v2084 = vld [vmem:[%s1 + $0x1d4] sm:$0xf]
        %v2085 = vld [vmem:[%s1 + $0x1d8] sm:$0xf]
        %v2086 = vld [vmem:[%s1 + $0x1dc] sm:$0xf]
        %v2087 = vld [vmem:[%s1 + $0x1e0] sm:$0xf]
        %v2088 = vld [vmem:[%s1 + $0x1e4] sm:$0xf]
        %v2089 = vld [vmem:[%s1 + $0x1e8] sm:$0xf]
        %v2090 = vld [vmem:[%s1 + $0x1ec] sm:$0xf]
        %v2091 = vld [vmem:[%s1 + $0x1f0] sm:$0xf]
        %v2092 = vld [vmem:[%s1 + $0x1f4] sm:$0xf]
        %v2093 = vld [vmem:[%s1 + $0x1f8] sm:$0xf]
        %v2094 = vld [vmem:[%s1 + $0x1fc] sm:$0xf]
        %v2095 = vld [vmem:[%s1 + $0x200] sm:$0xf]
        %v2096 = vld [vmem:[%s1 + $0x204] sm:$0xf]
        %v2097 = vld [vmem:[%s1 + $0x208] sm:$0xf]
        %v2098 = vld [vmem:[%s1 + $0x20c] sm:$0xf]
        %v2099 = vld [vmem:[%s1 + $0x210] sm:$0xf]
        %v2100 = vld [vmem:[%s1 + $0x214] sm:$0xf]
        %v2101 = vld [vmem:[%s1 + $0x218] sm:$0xf]
        %v2102 = vld [vmem:[%s1 + $0x21c] sm:$0xf]
        %v2103 = vld [vmem:[%s1 + $0x220] sm:$0xf]
        %v2104 = vld [vmem:[%s1 + $0x224] sm:$0xf]
        %v2105 = vld [vmem:[%s1 + $0x228] sm:$0xf]
        %v2106 = vld [vmem:[%s1 + $0x22c] sm:$0xf]
        %v2107 = vld [vmem:[%s1 + $0x230] sm:$0xf]
        %v2108 = vld [vmem:[%s1 + $0x234] sm:$0xf]
        %v2109 = vld [vmem:[%s1 + $0x238] sm:$0xf]
        %v2110 = vld [vmem:[%s1 + $0x23c] sm:$0xf]
        %v2111 = vpack.i.b16 %v1801, %v1799
        %v2112 = vpack.i.b16 %v1802, %v1800
        %v2113 = vpack.i.b16 %v1805, %v1803
        %v2114 = vpack.i.b16 %v1806, %v1804
        %v2115 = vpack.i.b16 %v1809, %v1807
        %v2116 = vpack.i.b16 %v1810, %v1808
        %v2117 = vpack.i.b16 %v1813, %v1811
        %v2118 = vpack.i.b16 %v1814, %v1812
        %v2119 = vpack.i.b16 %v1817, %v1815
        %v2120 = vpack.i.b16 %v1818, %v1816
        %v2121 = vpack.i.b16 %v1821, %v1819
        %v2122 = vpack.i.b16 %v1822, %v1820
        %v2123 = vpack.i.b16 %v1825, %v1823
        %v2124 = vpack.i.b16 %v1826, %v1824
        %v2125 = vpack.i.b16 %v1829, %v1827
        %v2126 = vpack.i.b16 %v1830, %v1828
        %v2127 = vpack.i.b16 %v1833, %v1831
        %v2128 = vpack.i.b16 %v1834, %v1832
        %v2129 = vpack.i.b16 %v1837, %v1835
        %v2130 = vpack.i.b16 %v1838, %v1836
        %v2131 = vpack.i.b16 %v1841, %v1839
        %v2132 = vpack.i.b16 %v1842, %v1840
        %v2133 = vpack.i.b16 %v1845, %v1843
        %v2134 = vpack.i.b16 %v1846, %v1844
        %v2135 = vpack.i.b16 %v1849, %v1847
        %v2136 = vpack.i.b16 %v1850, %v1848
        %v2137 = vpack.i.b16 %v1853, %v1851
        %v2138 = vpack.i.b16 %v1854, %v1852
        %v2139 = vpack.i.b16 %v1857, %v1855
        %v2140 = vpack.i.b16 %v1858, %v1856
        %v2141 = vpack.i.b16 %v1861, %v1859
        %v2142 = vpack.i.b16 %v1862, %v1860
        %v2143 = vpack.i.b16 %v1865, %v1863
        %v2144 = vpack.i.b16 %v1866, %v1864
        %v2145 = vpack.i.b16 %v1869, %v1867
        %v2146 = vpack.i.b16 %v1870, %v1868
        %v2147 = vpack.i.b16 %v1873, %v1871
        %v2148 = vpack.i.b16 %v1874, %v1872
        %v2149 = vpack.i.b16 %v1877, %v1875
        %v2150 = vpack.i.b16 %v1878, %v1876
        %v2151 = vpack.i.b16 %v1881, %v1879
        %v2152 = vpack.i.b16 %v1882, %v1880
        %v2153 = vpack.i.b16 %v1885, %v1883
        %v2154 = vpack.i.b16 %v1886, %v1884
        %v2155 = vpack.i.b16 %v1889, %v1887
        %v2156 = vpack.i.b16 %v1890, %v1888
        %v2157 = vpack.i.b16 %v1893, %v1891
        %v2158 = vpack.i.b16 %v1894, %v1892
        %v2159 = vpack.i.b16 %v1897, %v1895
        %v2160 = vpack.i.b16 %v1898, %v1896
        %v2161 = vpack.i.b16 %v1901, %v1899
        %v2162 = vpack.i.b16 %v1902, %v1900
        %v2163 = vpack.i.b16 %v1905, %v1903
        %v2164 = vpack.i.b16 %v1906, %v1904
        %v2165 = vpack.i.b16 %v1909, %v1907
        %v2166 = vpack.i.b16 %v1910, %v1908
        %v2167 = vpack.i.b16 %v1913, %v1911
        %v2168 = vpack.i.b16 %v1914, %v1912
        %v2169 = vpack.i.b16 %v1917, %v1915
        %v2170 = vpack.i.b16 %v1918, %v1916
        %v2171 = vpack.i.b16 %v1921, %v1919
        %v2172 = vpack.i.b16 %v1922, %v1920
        %v2173 = vpack.i.b16 %v1925, %v1923
        %v2174 = vpack.i.b16 %v1926, %v1924
        %v2175 = vpack.i.b16 %v1929, %v1927
        %v2176 = vpack.i.b16 %v1930, %v1928
        %v2177 = vpack.i.b16 %v1933, %v1931
        %v2178 = vpack.i.b16 %v1934, %v1932
        %v2179 = vpack.i.b16 %v1937, %v1935
        %v2180 = vpack.i.b16 %v1938, %v1936
        %v2181 = vpack.i.b16 %v1941, %v1939
        %v2182 = vpack.i.b16 %v1942, %v1940
        %v2183 = vpack.i.b16 %v1945, %v1943
        %v2184 = vpack.i.b16 %v1946, %v1944
        %v2185 = vpack.i.b16 %v1949, %v1947
        %v2186 = vpack.i.b16 %v1950, %v1948
        %v2187 = vpack.i.b16 %v1953, %v1951
        %v2188 = vpack.i.b16 %v1954, %v1952
        %v2189 = vpack.i.b16 %v1957, %v1955
        %v2190 = vpack.i.b16 %v1958, %v1956
        %v2191 = vpack.i.b16 %v1961, %v1959
        %v2192 = vpack.i.b16 %v1962, %v1960
        %v2193 = vpack.i.b16 %v1965, %v1963
        %v2194 = vpack.i.b16 %v1966, %v1964
        %v2195 = vcombine.low %v2111, %v2113
        %v2196 = vcombine.high %v2111, %v2113
        %v2197 = vcombine.low %v2115, %v2117
        %v2198 = vcombine.high %v2115, %v2117
        %v2199 = vcombine.low %v2119, %v2121
        %v2200 = vcombine.high %v2119, %v2121
        %v2201 = vcombine.low %v2123, %v2125
        %v2202 = vcombine.high %v2123, %v2125
        %v2204 = vunpack.c.l.s4 1966171168
        %v2205 = vunpack.c.0.s8 %v2204
        %v2206 = vlaneseq
        %v2207 = vshrl.u32 %v2206, 7
        %v2208 = vsub.s32 %v2205, %v2207
        %v2209 = vrot.slane %v2195, %v2208
        %v2211 = vunpack.c.l.s4 1966171168
        %v2212 = vunpack.c.0.s8 %v2211
        %v2213 = vlaneseq
        %v2214 = vshrl.u32 %v2213, 7
        %v2215 = vsub.s32 %v2212, %v2214
        %v2216 = vrot.slane %v2196, %v2215
        %v2218 = vunpack.c.l.s4 1966171168
        %v2219 = vunpack.c.0.s8 %v2218
        %v2220 = vlaneseq
        %v2221 = vshrl.u32 %v2220, 7
        %v2222 = vsub.s32 %v2219, %v2221
        %v2223 = vrot.slane %v2197, %v2222
        %v2225 = vunpack.c.l.s4 1966171168
        %v2226 = vunpack.c.0.s8 %v2225
        %v2227 = vlaneseq
        %v2228 = vshrl.u32 %v2227, 7
        %v2229 = vsub.s32 %v2226, %v2228
        %v2230 = vrot.slane %v2198, %v2229
        %v2232 = vunpack.c.l.s4 1966171168
        %v2233 = vunpack.c.0.s8 %v2232
        %v2234 = vlaneseq
        %v2235 = vshrl.u32 %v2234, 7
        %v2236 = vsub.s32 %v2233, %v2235
        %v2237 = vrot.slane %v2199, %v2236
        %v2239 = vunpack.c.l.s4 1966171168
        %v2240 = vunpack.c.0.s8 %v2239
        %v2241 = vlaneseq
        %v2242 = vshrl.u32 %v2241, 7
        %v2243 = vsub.s32 %v2240, %v2242
        %v2244 = vrot.slane %v2200, %v2243
        %v2246 = vunpack.c.l.s4 1966171168
        %v2247 = vunpack.c.0.s8 %v2246
        %v2248 = vlaneseq
        %v2249 = vshrl.u32 %v2248, 7
        %v2250 = vsub.s32 %v2247, %v2249
        %v2251 = vrot.slane %v2201, %v2250
        %v2253 = vunpack.c.l.s4 1966171168
        %v2254 = vunpack.c.0.s8 %v2253
        %v2255 = vlaneseq
        %v2256 = vshrl.u32 %v2255, 7
        %v2257 = vsub.s32 %v2254, %v2256
        %v2258 = vrot.slane %v2202, %v2257
        %v2259 = vcombine.low %v2209, %v2223
        %v2260 = vcombine.high %v2209, %v2223
        %v2261 = vcombine.low %v2216, %v2230
        %v2262 = vcombine.high %v2216, %v2230
        %v2263 = vcombine.low %v2237, %v2251
        %v2264 = vcombine.high %v2237, %v2251
        %v2265 = vcombine.low %v2244, %v2258
        %v2266 = vcombine.high %v2244, %v2258
        %v2268 = vunpack.c.l.s4 1966171168
        %v2269 = vunpack.c.0.s8 %v2268
        %v2270 = vlaneseq
        %v2271 = vshrl.u32 %v2270, 7
        %v2272 = vsub.s32 %v2269, %v2271
        %v2273 = vrot.slane %v2259, %v2272
        %v2275 = vunpack.c.l.s4 1966171168
        %v2276 = vunpack.c.0.s8 %v2275
        %v2277 = vlaneseq
        %v2278 = vshrl.u32 %v2277, 7
        %v2279 = vsub.s32 %v2276, %v2278
        %v2280 = vrot.slane %v2261, %v2279
        %v2282 = vunpack.c.l.s4 1966171168
        %v2283 = vunpack.c.0.s8 %v2282
        %v2284 = vlaneseq
        %v2285 = vshrl.u32 %v2284, 7
        %v2286 = vsub.s32 %v2283, %v2285
        %v2287 = vrot.slane %v2260, %v2286
        %v2289 = vunpack.c.l.s4 1966171168
        %v2290 = vunpack.c.0.s8 %v2289
        %v2291 = vlaneseq
        %v2292 = vshrl.u32 %v2291, 7
        %v2293 = vsub.s32 %v2290, %v2292
        %v2294 = vrot.slane %v2262, %v2293
        %v2296 = vunpack.c.l.s4 1966171168
        %v2297 = vunpack.c.0.s8 %v2296
        %v2298 = vlaneseq
        %v2299 = vshrl.u32 %v2298, 7
        %v2300 = vsub.s32 %v2297, %v2299
        %v2301 = vrot.slane %v2263, %v2300
        %v2303 = vunpack.c.l.s4 1966171168
        %v2304 = vunpack.c.0.s8 %v2303
        %v2305 = vlaneseq
        %v2306 = vshrl.u32 %v2305, 7
        %v2307 = vsub.s32 %v2304, %v2306
        %v2308 = vrot.slane %v2265, %v2307
        %v2310 = vunpack.c.l.s4 1966171168
        %v2311 = vunpack.c.0.s8 %v2310
        %v2312 = vlaneseq
        %v2313 = vshrl.u32 %v2312, 7
        %v2314 = vsub.s32 %v2311, %v2313
        %v2315 = vrot.slane %v2264, %v2314
        %v2317 = vunpack.c.l.s4 1966171168
        %v2318 = vunpack.c.0.s8 %v2317
        %v2319 = vlaneseq
        %v2320 = vshrl.u32 %v2319, 7
        %v2321 = vsub.s32 %v2318, %v2320
        %v2322 = vrot.slane %v2266, %v2321
        %v2323 = vcombine.low %v2273, %v2301
        %v2324 = vcombine.high %v2273, %v2301
        %v2325 = vcombine.low %v2280, %v2308
        %v2326 = vcombine.high %v2280, %v2308
        %v2327 = vcombine.low %v2287, %v2315
        %v2328 = vcombine.high %v2287, %v2315
        %v2329 = vcombine.low %v2294, %v2322
        %v2330 = vcombine.high %v2294, %v2322
        %v2331 = vcombine.low %v2112, %v2114
        %v2332 = vcombine.low %v2116, %v2118
        %v2333 = vcombine.low %v2120, %v2122
        %v2334 = vcombine.low %v2124, %v2126
        %v2336 = vunpack.c.l.s4 1966171168
        %v2337 = vunpack.c.0.s8 %v2336
        %v2338 = vlaneseq
        %v2339 = vshrl.u32 %v2338, 7
        %v2340 = vsub.s32 %v2337, %v2339
        %v2341 = vrot.slane %v2331, %v2340
        %v2343 = vunpack.c.l.s4 1966171168
        %v2344 = vunpack.c.0.s8 %v2343
        %v2345 = vlaneseq
        %v2346 = vshrl.u32 %v2345, 7
        %v2347 = vsub.s32 %v2344, %v2346
        %v2348 = vrot.slane %v2332, %v2347
        %v2350 = vunpack.c.l.s4 1966171168
        %v2351 = vunpack.c.0.s8 %v2350
        %v2352 = vlaneseq
        %v2353 = vshrl.u32 %v2352, 7
        %v2354 = vsub.s32 %v2351, %v2353
        %v2355 = vrot.slane %v2333, %v2354
        %v2357 = vunpack.c.l.s4 1966171168
        %v2358 = vunpack.c.0.s8 %v2357
        %v2359 = vlaneseq
        %v2360 = vshrl.u32 %v2359, 7
        %v2361 = vsub.s32 %v2358, %v2360
        %v2362 = vrot.slane %v2334, %v2361
        %v2363 = vcombine.low %v2341, %v2348
        %v2364 = vcombine.low %v2355, %v2362
        %v2366 = vunpack.c.l.s4 1966171168
        %v2367 = vunpack.c.0.s8 %v2366
        %v2368 = vlaneseq
        %v2369 = vshrl.u32 %v2368, 7
        %v2370 = vsub.s32 %v2367, %v2369
        %v2371 = vrot.slane %v2363, %v2370
        %v2373 = vunpack.c.l.s4 1966171168
        %v2374 = vunpack.c.0.s8 %v2373
        %v2375 = vlaneseq
        %v2376 = vshrl.u32 %v2375, 7
        %v2377 = vsub.s32 %v2374, %v2376
        %v2378 = vrot.slane %v2364, %v2377
        %v2379 = vcombine.low %v2371, %v2378
        %v2380 = vcombine.low %v2127, %v2129
        %v2381 = vcombine.high %v2127, %v2129
        %v2382 = vcombine.low %v2131, %v2133
        %v2383 = vcombine.high %v2131, %v2133
        %v2384 = vcombine.low %v2135, %v2137
        %v2385 = vcombine.high %v2135, %v2137
        %v2386 = vcombine.low %v2139, %v2141
        %v2387 = vcombine.high %v2139, %v2141
        %v2389 = vunpack.c.l.s4 1966171168
        %v2390 = vunpack.c.0.s8 %v2389
        %v2391 = vlaneseq
        %v2392 = vshrl.u32 %v2391, 7
        %v2393 = vsub.s32 %v2390, %v2392
        %v2394 = vrot.slane %v2380, %v2393
        %v2396 = vunpack.c.l.s4 1966171168
        %v2397 = vunpack.c.0.s8 %v2396
        %v2398 = vlaneseq
        %v2399 = vshrl.u32 %v2398, 7
        %v2400 = vsub.s32 %v2397, %v2399
        %v2401 = vrot.slane %v2381, %v2400
        %v2403 = vunpack.c.l.s4 1966171168
        %v2404 = vunpack.c.0.s8 %v2403
        %v2405 = vlaneseq
        %v2406 = vshrl.u32 %v2405, 7
        %v2407 = vsub.s32 %v2404, %v2406
        %v2408 = vrot.slane %v2382, %v2407
        %v2410 = vunpack.c.l.s4 1966171168
        %v2411 = vunpack.c.0.s8 %v2410
        %v2412 = vlaneseq
        %v2413 = vshrl.u32 %v2412, 7
        %v2414 = vsub.s32 %v2411, %v2413
        %v2415 = vrot.slane %v2383, %v2414
        %v2417 = vunpack.c.l.s4 1966171168
        %v2418 = vunpack.c.0.s8 %v2417
        %v2419 = vlaneseq
        %v2420 = vshrl.u32 %v2419, 7
        %v2421 = vsub.s32 %v2418, %v2420
        %v2422 = vrot.slane %v2384, %v2421
        %v2424 = vunpack.c.l.s4 1966171168
        %v2425 = vunpack.c.0.s8 %v2424
        %v2426 = vlaneseq
        %v2427 = vshrl.u32 %v2426, 7
        %v2428 = vsub.s32 %v2425, %v2427
        %v2429 = vrot.slane %v2385, %v2428
        %v2431 = vunpack.c.l.s4 1966171168
        %v2432 = vunpack.c.0.s8 %v2431
        %v2433 = vlaneseq
        %v2434 = vshrl.u32 %v2433, 7
        %v2435 = vsub.s32 %v2432, %v2434
        %v2436 = vrot.slane %v2386, %v2435
        %v2438 = vunpack.c.l.s4 1966171168
        %v2439 = vunpack.c.0.s8 %v2438
        %v2440 = vlaneseq
        %v2441 = vshrl.u32 %v2440, 7
        %v2442 = vsub.s32 %v2439, %v2441
        %v2443 = vrot.slane %v2387, %v2442
        %v2444 = vcombine.low %v2394, %v2408
        %v2445 = vcombine.high %v2394, %v2408
        %v2446 = vcombine.low %v2401, %v2415
        %v2447 = vcombine.high %v2401, %v2415
        %v2448 = vcombine.low %v2422, %v2436
        %v2449 = vcombine.high %v2422, %v2436
        %v2450 = vcombine.low %v2429, %v2443
        %v2451 = vcombine.high %v2429, %v2443
        %v2453 = vunpack.c.l.s4 1966171168
        %v2454 = vunpack.c.0.s8 %v2453
        %v2455 = vlaneseq
        %v2456 = vshrl.u32 %v2455, 7
        %v2457 = vsub.s32 %v2454, %v2456
        %v2458 = vrot.slane %v2444, %v2457
        %v2460 = vunpack.c.l.s4 1966171168
        %v2461 = vunpack.c.0.s8 %v2460
        %v2462 = vlaneseq
        %v2463 = vshrl.u32 %v2462, 7
        %v2464 = vsub.s32 %v2461, %v2463
        %v2465 = vrot.slane %v2446, %v2464
        %v2467 = vunpack.c.l.s4 1966171168
        %v2468 = vunpack.c.0.s8 %v2467
        %v2469 = vlaneseq
        %v2470 = vshrl.u32 %v2469, 7
        %v2471 = vsub.s32 %v2468, %v2470
        %v2472 = vrot.slane %v2445, %v2471
        %v2474 = vunpack.c.l.s4 1966171168
        %v2475 = vunpack.c.0.s8 %v2474
        %v2476 = vlaneseq
        %v2477 = vshrl.u32 %v2476, 7
        %v2478 = vsub.s32 %v2475, %v2477
        %v2479 = vrot.slane %v2447, %v2478
        %v2481 = vunpack.c.l.s4 1966171168
        %v2482 = vunpack.c.0.s8 %v2481
        %v2483 = vlaneseq
        %v2484 = vshrl.u32 %v2483, 7
        %v2485 = vsub.s32 %v2482, %v2484
        %v2486 = vrot.slane %v2448, %v2485
        %v2488 = vunpack.c.l.s4 1966171168
        %v2489 = vunpack.c.0.s8 %v2488
        %v2490 = vlaneseq
        %v2491 = vshrl.u32 %v2490, 7
        %v2492 = vsub.s32 %v2489, %v2491
        %v2493 = vrot.slane %v2450, %v2492
        %v2495 = vunpack.c.l.s4 1966171168
        %v2496 = vunpack.c.0.s8 %v2495
        %v2497 = vlaneseq
        %v2498 = vshrl.u32 %v2497, 7
        %v2499 = vsub.s32 %v2496, %v2498
        %v2500 = vrot.slane %v2449, %v2499
        %v2502 = vunpack.c.l.s4 1966171168
        %v2503 = vunpack.c.0.s8 %v2502
        %v2504 = vlaneseq
        %v2505 = vshrl.u32 %v2504, 7
        %v2506 = vsub.s32 %v2503, %v2505
        %v2507 = vrot.slane %v2451, %v2506
        %v2508 = vcombine.low %v2458, %v2486
        %v2509 = vcombine.high %v2458, %v2486
        %v2510 = vcombine.low %v2465, %v2493
        %v2511 = vcombine.high %v2465, %v2493
        %v2512 = vcombine.low %v2472, %v2500
        %v2513 = vcombine.high %v2472, %v2500
        %v2514 = vcombine.low %v2479, %v2507
        %v2515 = vcombine.high %v2479, %v2507
        %v2516 = vcombine.low %v2128, %v2130
        %v2517 = vcombine.low %v2132, %v2134
        %v2518 = vcombine.low %v2136, %v2138
        %v2519 = vcombine.low %v2140, %v2142
        %v2521 = vunpack.c.l.s4 1966171168
        %v2522 = vunpack.c.0.s8 %v2521
        %v2523 = vlaneseq
        %v2524 = vshrl.u32 %v2523, 7
        %v2525 = vsub.s32 %v2522, %v2524
        %v2526 = vrot.slane %v2516, %v2525
        %v2528 = vunpack.c.l.s4 1966171168
        %v2529 = vunpack.c.0.s8 %v2528
        %v2530 = vlaneseq
        %v2531 = vshrl.u32 %v2530, 7
        %v2532 = vsub.s32 %v2529, %v2531
        %v2533 = vrot.slane %v2517, %v2532
        %v2535 = vunpack.c.l.s4 1966171168
        %v2536 = vunpack.c.0.s8 %v2535
        %v2537 = vlaneseq
        %v2538 = vshrl.u32 %v2537, 7
        %v2539 = vsub.s32 %v2536, %v2538
        %v2540 = vrot.slane %v2518, %v2539
        %v2542 = vunpack.c.l.s4 1966171168
        %v2543 = vunpack.c.0.s8 %v2542
        %v2544 = vlaneseq
        %v2545 = vshrl.u32 %v2544, 7
        %v2546 = vsub.s32 %v2543, %v2545
        %v2547 = vrot.slane %v2519, %v2546
        %v2548 = vcombine.low %v2526, %v2533
        %v2549 = vcombine.low %v2540, %v2547
        %v2551 = vunpack.c.l.s4 1966171168
        %v2552 = vunpack.c.0.s8 %v2551
        %v2553 = vlaneseq
        %v2554 = vshrl.u32 %v2553, 7
        %v2555 = vsub.s32 %v2552, %v2554
        %v2556 = vrot.slane %v2548, %v2555
        %v2558 = vunpack.c.l.s4 1966171168
        %v2559 = vunpack.c.0.s8 %v2558
        %v2560 = vlaneseq
        %v2561 = vshrl.u32 %v2560, 7
        %v2562 = vsub.s32 %v2559, %v2561
        %v2563 = vrot.slane %v2549, %v2562
        %v2564 = vcombine.low %v2556, %v2563
        %v2565 = vcombine.low %v2143, %v2145
        %v2566 = vcombine.high %v2143, %v2145
        %v2567 = vcombine.low %v2147, %v2149
        %v2568 = vcombine.high %v2147, %v2149
        %v2569 = vcombine.low %v2151, %v2153
        %v2570 = vcombine.high %v2151, %v2153
        %v2571 = vcombine.low %v2155, %v2157
        %v2572 = vcombine.high %v2155, %v2157
        %v2574 = vunpack.c.l.s4 1966171168
        %v2575 = vunpack.c.0.s8 %v2574
        %v2576 = vlaneseq
        %v2577 = vshrl.u32 %v2576, 7
        %v2578 = vsub.s32 %v2575, %v2577
        %v2579 = vrot.slane %v2565, %v2578
        %v2581 = vunpack.c.l.s4 1966171168
        %v2582 = vunpack.c.0.s8 %v2581
        %v2583 = vlaneseq
        %v2584 = vshrl.u32 %v2583, 7
        %v2585 = vsub.s32 %v2582, %v2584
        %v2586 = vrot.slane %v2566, %v2585
        %v2588 = vunpack.c.l.s4 1966171168
        %v2589 = vunpack.c.0.s8 %v2588
        %v2590 = vlaneseq
        %v2591 = vshrl.u32 %v2590, 7
        %v2592 = vsub.s32 %v2589, %v2591
        %v2593 = vrot.slane %v2567, %v2592
        %v2595 = vunpack.c.l.s4 1966171168
        %v2596 = vunpack.c.0.s8 %v2595
        %v2597 = vlaneseq
        %v2598 = vshrl.u32 %v2597, 7
        %v2599 = vsub.s32 %v2596, %v2598
        %v2600 = vrot.slane %v2568, %v2599
        %v2602 = vunpack.c.l.s4 1966171168
        %v2603 = vunpack.c.0.s8 %v2602
        %v2604 = vlaneseq
        %v2605 = vshrl.u32 %v2604, 7
        %v2606 = vsub.s32 %v2603, %v2605
        %v2607 = vrot.slane %v2569, %v2606
        %v2609 = vunpack.c.l.s4 1966171168
        %v2610 = vunpack.c.0.s8 %v2609
        %v2611 = vlaneseq
        %v2612 = vshrl.u32 %v2611, 7
        %v2613 = vsub.s32 %v2610, %v2612
        %v2614 = vrot.slane %v2570, %v2613
        %v2616 = vunpack.c.l.s4 1966171168
        %v2617 = vunpack.c.0.s8 %v2616
        %v2618 = vlaneseq
        %v2619 = vshrl.u32 %v2618, 7
        %v2620 = vsub.s32 %v2617, %v2619
        %v2621 = vrot.slane %v2571, %v2620
        %v2623 = vunpack.c.l.s4 1966171168
        %v2624 = vunpack.c.0.s8 %v2623
        %v2625 = vlaneseq
        %v2626 = vshrl.u32 %v2625, 7
        %v2627 = vsub.s32 %v2624, %v2626
        %v2628 = vrot.slane %v2572, %v2627
        %v2629 = vcombine.low %v2579, %v2593
        %v2630 = vcombine.high %v2579, %v2593
        %v2631 = vcombine.low %v2586, %v2600
        %v2632 = vcombine.high %v2586, %v2600
        %v2633 = vcombine.low %v2607, %v2621
        %v2634 = vcombine.high %v2607, %v2621
        %v2635 = vcombine.low %v2614, %v2628
        %v2636 = vcombine.high %v2614, %v2628
        %v2638 = vunpack.c.l.s4 1966171168
        %v2639 = vunpack.c.0.s8 %v2638
        %v2640 = vlaneseq
        %v2641 = vshrl.u32 %v2640, 7
        %v2642 = vsub.s32 %v2639, %v2641
        %v2643 = vrot.slane %v2629, %v2642
        %v2645 = vunpack.c.l.s4 1966171168
        %v2646 = vunpack.c.0.s8 %v2645
        %v2647 = vlaneseq
        %v2648 = vshrl.u32 %v2647, 7
        %v2649 = vsub.s32 %v2646, %v2648
        %v2650 = vrot.slane %v2631, %v2649
        %v2652 = vunpack.c.l.s4 1966171168
        %v2653 = vunpack.c.0.s8 %v2652
        %v2654 = vlaneseq
        %v2655 = vshrl.u32 %v2654, 7
        %v2656 = vsub.s32 %v2653, %v2655
        %v2657 = vrot.slane %v2630, %v2656
        %v2659 = vunpack.c.l.s4 1966171168
        %v2660 = vunpack.c.0.s8 %v2659
        %v2661 = vlaneseq
        %v2662 = vshrl.u32 %v2661, 7
        %v2663 = vsub.s32 %v2660, %v2662
        %v2664 = vrot.slane %v2632, %v2663
        %v2666 = vunpack.c.l.s4 1966171168
        %v2667 = vunpack.c.0.s8 %v2666
        %v2668 = vlaneseq
        %v2669 = vshrl.u32 %v2668, 7
        %v2670 = vsub.s32 %v2667, %v2669
        %v2671 = vrot.slane %v2633, %v2670
        %v2673 = vunpack.c.l.s4 1966171168
        %v2674 = vunpack.c.0.s8 %v2673
        %v2675 = vlaneseq
        %v2676 = vshrl.u32 %v2675, 7
        %v2677 = vsub.s32 %v2674, %v2676
        %v2678 = vrot.slane %v2635, %v2677
        %v2680 = vunpack.c.l.s4 1966171168
        %v2681 = vunpack.c.0.s8 %v2680
        %v2682 = vlaneseq
        %v2683 = vshrl.u32 %v2682, 7
        %v2684 = vsub.s32 %v2681, %v2683
        %v2685 = vrot.slane %v2634, %v2684
        %v2687 = vunpack.c.l.s4 1966171168
        %v2688 = vunpack.c.0.s8 %v2687
        %v2689 = vlaneseq
        %v2690 = vshrl.u32 %v2689, 7
        %v2691 = vsub.s32 %v2688, %v2690
        %v2692 = vrot.slane %v2636, %v2691
        %v2693 = vcombine.low %v2643, %v2671
        %v2694 = vcombine.high %v2643, %v2671
        %v2695 = vcombine.low %v2650, %v2678
        %v2696 = vcombine.high %v2650, %v2678
        %v2697 = vcombine.low %v2657, %v2685
        %v2698 = vcombine.high %v2657, %v2685
        %v2699 = vcombine.low %v2664, %v2692
        %v2700 = vcombine.high %v2664, %v2692
        %v2701 = vcombine.low %v2144, %v2146
        %v2702 = vcombine.low %v2148, %v2150
        %v2703 = vcombine.low %v2152, %v2154
        %v2704 = vcombine.low %v2156, %v2158
        %v2706 = vunpack.c.l.s4 1966171168
        %v2707 = vunpack.c.0.s8 %v2706
        %v2708 = vlaneseq
        %v2709 = vshrl.u32 %v2708, 7
        %v2710 = vsub.s32 %v2707, %v2709
        %v2711 = vrot.slane %v2701, %v2710
        %v2713 = vunpack.c.l.s4 1966171168
        %v2714 = vunpack.c.0.s8 %v2713
        %v2715 = vlaneseq
        %v2716 = vshrl.u32 %v2715, 7
        %v2717 = vsub.s32 %v2714, %v2716
        %v2718 = vrot.slane %v2702, %v2717
        %v2720 = vunpack.c.l.s4 1966171168
        %v2721 = vunpack.c.0.s8 %v2720
        %v2722 = vlaneseq
        %v2723 = vshrl.u32 %v2722, 7
        %v2724 = vsub.s32 %v2721, %v2723
        %v2725 = vrot.slane %v2703, %v2724
        %v2727 = vunpack.c.l.s4 1966171168
        %v2728 = vunpack.c.0.s8 %v2727
        %v2729 = vlaneseq
        %v2730 = vshrl.u32 %v2729, 7
        %v2731 = vsub.s32 %v2728, %v2730
        %v2732 = vrot.slane %v2704, %v2731
        %v2733 = vcombine.low %v2711, %v2718
        %v2734 = vcombine.low %v2725, %v2732
        %v2736 = vunpack.c.l.s4 1966171168
        %v2737 = vunpack.c.0.s8 %v2736
        %v2738 = vlaneseq
        %v2739 = vshrl.u32 %v2738, 7
        %v2740 = vsub.s32 %v2737, %v2739
        %v2741 = vrot.slane %v2733, %v2740
        %v2743 = vunpack.c.l.s4 1966171168
        %v2744 = vunpack.c.0.s8 %v2743
        %v2745 = vlaneseq
        %v2746 = vshrl.u32 %v2745, 7
        %v2747 = vsub.s32 %v2744, %v2746
        %v2748 = vrot.slane %v2734, %v2747
        %v2749 = vcombine.low %v2741, %v2748
        %v2750 = vcombine.low %v2159, %v2161
        %v2751 = vcombine.high %v2159, %v2161
        %v2752 = vcombine.low %v2163, %v2165
        %v2753 = vcombine.high %v2163, %v2165
        %v2754 = vcombine.low %v2167, %v2169
        %v2755 = vcombine.high %v2167, %v2169
        %v2756 = vcombine.low %v2171, %v2173
        %v2757 = vcombine.high %v2171, %v2173
        %v2759 = vunpack.c.l.s4 1966171168
        %v2760 = vunpack.c.0.s8 %v2759
        %v2761 = vlaneseq
        %v2762 = vshrl.u32 %v2761, 7
        %v2763 = vsub.s32 %v2760, %v2762
        %v2764 = vrot.slane %v2750, %v2763
        %v2766 = vunpack.c.l.s4 1966171168
        %v2767 = vunpack.c.0.s8 %v2766
        %v2768 = vlaneseq
        %v2769 = vshrl.u32 %v2768, 7
        %v2770 = vsub.s32 %v2767, %v2769
        %v2771 = vrot.slane %v2751, %v2770
        %v2773 = vunpack.c.l.s4 1966171168
        %v2774 = vunpack.c.0.s8 %v2773
        %v2775 = vlaneseq
        %v2776 = vshrl.u32 %v2775, 7
        %v2777 = vsub.s32 %v2774, %v2776
        %v2778 = vrot.slane %v2752, %v2777
        %v2780 = vunpack.c.l.s4 1966171168
        %v2781 = vunpack.c.0.s8 %v2780
        %v2782 = vlaneseq
        %v2783 = vshrl.u32 %v2782, 7
        %v2784 = vsub.s32 %v2781, %v2783
        %v2785 = vrot.slane %v2753, %v2784
        %v2787 = vunpack.c.l.s4 1966171168
        %v2788 = vunpack.c.0.s8 %v2787
        %v2789 = vlaneseq
        %v2790 = vshrl.u32 %v2789, 7
        %v2791 = vsub.s32 %v2788, %v2790
        %v2792 = vrot.slane %v2754, %v2791
        %v2794 = vunpack.c.l.s4 1966171168
        %v2795 = vunpack.c.0.s8 %v2794
        %v2796 = vlaneseq
        %v2797 = vshrl.u32 %v2796, 7
        %v2798 = vsub.s32 %v2795, %v2797
        %v2799 = vrot.slane %v2755, %v2798
        %v2801 = vunpack.c.l.s4 1966171168
        %v2802 = vunpack.c.0.s8 %v2801
        %v2803 = vlaneseq
        %v2804 = vshrl.u32 %v2803, 7
        %v2805 = vsub.s32 %v2802, %v2804
        %v2806 = vrot.slane %v2756, %v2805
        %v2808 = vunpack.c.l.s4 1966171168
        %v2809 = vunpack.c.0.s8 %v2808
        %v2810 = vlaneseq
        %v2811 = vshrl.u32 %v2810, 7
        %v2812 = vsub.s32 %v2809, %v2811
        %v2813 = vrot.slane %v2757, %v2812
        %v2814 = vcombine.low %v2764, %v2778
        %v2815 = vcombine.high %v2764, %v2778
        %v2816 = vcombine.low %v2771, %v2785
        %v2817 = vcombine.high %v2771, %v2785
        %v2818 = vcombine.low %v2792, %v2806
        %v2819 = vcombine.high %v2792, %v2806
        %v2820 = vcombine.low %v2799, %v2813
        %v2821 = vcombine.high %v2799, %v2813
        %v2823 = vunpack.c.l.s4 1966171168
        %v2824 = vunpack.c.0.s8 %v2823
        %v2825 = vlaneseq
        %v2826 = vshrl.u32 %v2825, 7
        %v2827 = vsub.s32 %v2824, %v2826
        %v2828 = vrot.slane %v2814, %v2827
        %v2830 = vunpack.c.l.s4 1966171168
        %v2831 = vunpack.c.0.s8 %v2830
        %v2832 = vlaneseq
        %v2833 = vshrl.u32 %v2832, 7
        %v2834 = vsub.s32 %v2831, %v2833
        %v2835 = vrot.slane %v2816, %v2834
        %v2837 = vunpack.c.l.s4 1966171168
        %v2838 = vunpack.c.0.s8 %v2837
        %v2839 = vlaneseq
        %v2840 = vshrl.u32 %v2839, 7
        %v2841 = vsub.s32 %v2838, %v2840
        %v2842 = vrot.slane %v2815, %v2841
        %v2844 = vunpack.c.l.s4 1966171168
        %v2845 = vunpack.c.0.s8 %v2844
        %v2846 = vlaneseq
        %v2847 = vshrl.u32 %v2846, 7
        %v2848 = vsub.s32 %v2845, %v2847
        %v2849 = vrot.slane %v2817, %v2848
        %v2851 = vunpack.c.l.s4 1966171168
        %v2852 = vunpack.c.0.s8 %v2851
        %v2853 = vlaneseq
        %v2854 = vshrl.u32 %v2853, 7
        %v2855 = vsub.s32 %v2852, %v2854
        %v2856 = vrot.slane %v2818, %v2855
        %v2858 = vunpack.c.l.s4 1966171168
        %v2859 = vunpack.c.0.s8 %v2858
        %v2860 = vlaneseq
        %v2861 = vshrl.u32 %v2860, 7
        %v2862 = vsub.s32 %v2859, %v2861
        %v2863 = vrot.slane %v2820, %v2862
        %v2865 = vunpack.c.l.s4 1966171168
        %v2866 = vunpack.c.0.s8 %v2865
        %v2867 = vlaneseq
        %v2868 = vshrl.u32 %v2867, 7
        %v2869 = vsub.s32 %v2866, %v2868
        %v2870 = vrot.slane %v2819, %v2869
        %v2872 = vunpack.c.l.s4 1966171168
        %v2873 = vunpack.c.0.s8 %v2872
        %v2874 = vlaneseq
        %v2875 = vshrl.u32 %v2874, 7
        %v2876 = vsub.s32 %v2873, %v2875
        %v2877 = vrot.slane %v2821, %v2876
        %v2878 = vcombine.low %v2828, %v2856
        %v2879 = vcombine.high %v2828, %v2856
        %v2880 = vcombine.low %v2835, %v2863
        %v2881 = vcombine.high %v2835, %v2863
        %v2882 = vcombine.low %v2842, %v2870
        %v2883 = vcombine.high %v2842, %v2870
        %v2884 = vcombine.low %v2849, %v2877
        %v2885 = vcombine.high %v2849, %v2877
        %v2886 = vcombine.low %v2160, %v2162
        %v2887 = vcombine.low %v2164, %v2166
        %v2888 = vcombine.low %v2168, %v2170
        %v2889 = vcombine.low %v2172, %v2174
        %v2891 = vunpack.c.l.s4 1966171168
        %v2892 = vunpack.c.0.s8 %v2891
        %v2893 = vlaneseq
        %v2894 = vshrl.u32 %v2893, 7
        %v2895 = vsub.s32 %v2892, %v2894
        %v2896 = vrot.slane %v2886, %v2895
        %v2898 = vunpack.c.l.s4 1966171168
        %v2899 = vunpack.c.0.s8 %v2898
        %v2900 = vlaneseq
        %v2901 = vshrl.u32 %v2900, 7
        %v2902 = vsub.s32 %v2899, %v2901
        %v2903 = vrot.slane %v2887, %v2902
        %v2905 = vunpack.c.l.s4 1966171168
        %v2906 = vunpack.c.0.s8 %v2905
        %v2907 = vlaneseq
        %v2908 = vshrl.u32 %v2907, 7
        %v2909 = vsub.s32 %v2906, %v2908
        %v2910 = vrot.slane %v2888, %v2909
        %v2912 = vunpack.c.l.s4 1966171168
        %v2913 = vunpack.c.0.s8 %v2912
        %v2914 = vlaneseq
        %v2915 = vshrl.u32 %v2914, 7
        %v2916 = vsub.s32 %v2913, %v2915
        %v2917 = vrot.slane %v2889, %v2916
        %v2918 = vcombine.low %v2896, %v2903
        %v2919 = vcombine.low %v2910, %v2917
        %v2921 = vunpack.c.l.s4 1966171168
        %v2922 = vunpack.c.0.s8 %v2921
        %v2923 = vlaneseq
        %v2924 = vshrl.u32 %v2923, 7
        %v2925 = vsub.s32 %v2922, %v2924
        %v2926 = vrot.slane %v2918, %v2925
        %v2928 = vunpack.c.l.s4 1966171168
        %v2929 = vunpack.c.0.s8 %v2928
        %v2930 = vlaneseq
        %v2931 = vshrl.u32 %v2930, 7
        %v2932 = vsub.s32 %v2929, %v2931
        %v2933 = vrot.slane %v2919, %v2932
        %v2934 = vcombine.low %v2926, %v2933
        %v2935 = vcombine.low %v2175, %v2177
        %v2936 = vcombine.high %v2175, %v2177
        %v2937 = vcombine.low %v2179, %v2181
        %v2938 = vcombine.high %v2179, %v2181
        %v2939 = vcombine.low %v2183, %v2185
        %v2940 = vcombine.high %v2183, %v2185
        %v2941 = vcombine.low %v2187, %v2189
        %v2942 = vcombine.high %v2187, %v2189
        %v2944 = vunpack.c.l.s4 1966171168
        %v2945 = vunpack.c.0.s8 %v2944
        %v2946 = vlaneseq
        %v2947 = vshrl.u32 %v2946, 7
        %v2948 = vsub.s32 %v2945, %v2947
        %v2949 = vrot.slane %v2935, %v2948
        %v2951 = vunpack.c.l.s4 1966171168
        %v2952 = vunpack.c.0.s8 %v2951
        %v2953 = vlaneseq
        %v2954 = vshrl.u32 %v2953, 7
        %v2955 = vsub.s32 %v2952, %v2954
        %v2956 = vrot.slane %v2936, %v2955
        %v2958 = vunpack.c.l.s4 1966171168
        %v2959 = vunpack.c.0.s8 %v2958
        %v2960 = vlaneseq
        %v2961 = vshrl.u32 %v2960, 7
        %v2962 = vsub.s32 %v2959, %v2961
        %v2963 = vrot.slane %v2937, %v2962
        %v2965 = vunpack.c.l.s4 1966171168
        %v2966 = vunpack.c.0.s8 %v2965
        %v2967 = vlaneseq
        %v2968 = vshrl.u32 %v2967, 7
        %v2969 = vsub.s32 %v2966, %v2968
        %v2970 = vrot.slane %v2938, %v2969
        %v2972 = vunpack.c.l.s4 1966171168
        %v2973 = vunpack.c.0.s8 %v2972
        %v2974 = vlaneseq
        %v2975 = vshrl.u32 %v2974, 7
        %v2976 = vsub.s32 %v2973, %v2975
        %v2977 = vrot.slane %v2939, %v2976
        %v2979 = vunpack.c.l.s4 1966171168
        %v2980 = vunpack.c.0.s8 %v2979
        %v2981 = vlaneseq
        %v2982 = vshrl.u32 %v2981, 7
        %v2983 = vsub.s32 %v2980, %v2982
        %v2984 = vrot.slane %v2940, %v2983
        %v2986 = vunpack.c.l.s4 1966171168
        %v2987 = vunpack.c.0.s8 %v2986
        %v2988 = vlaneseq
        %v2989 = vshrl.u32 %v2988, 7
        %v2990 = vsub.s32 %v2987, %v2989
        %v2991 = vrot.slane %v2941, %v2990
        %v2993 = vunpack.c.l.s4 1966171168
        %v2994 = vunpack.c.0.s8 %v2993
        %v2995 = vlaneseq
        %v2996 = vshrl.u32 %v2995, 7
        %v2997 = vsub.s32 %v2994, %v2996
        %v2998 = vrot.slane %v2942, %v2997
        %v2999 = vcombine.low %v2949, %v2963
        %v3000 = vcombine.high %v2949, %v2963
        %v3001 = vcombine.low %v2956, %v2970
        %v3002 = vcombine.high %v2956, %v2970
        %v3003 = vcombine.low %v2977, %v2991
        %v3004 = vcombine.high %v2977, %v2991
        %v3005 = vcombine.low %v2984, %v2998
        %v3006 = vcombine.high %v2984, %v2998
        %v3008 = vunpack.c.l.s4 1966171168
        %v3009 = vunpack.c.0.s8 %v3008
        %v3010 = vlaneseq
        %v3011 = vshrl.u32 %v3010, 7
        %v3012 = vsub.s32 %v3009, %v3011
        %v3013 = vrot.slane %v2999, %v3012
        %v3015 = vunpack.c.l.s4 1966171168
        %v3016 = vunpack.c.0.s8 %v3015
        %v3017 = vlaneseq
        %v3018 = vshrl.u32 %v3017, 7
        %v3019 = vsub.s32 %v3016, %v3018
        %v3020 = vrot.slane %v3001, %v3019
        %v3022 = vunpack.c.l.s4 1966171168
        %v3023 = vunpack.c.0.s8 %v3022
        %v3024 = vlaneseq
        %v3025 = vshrl.u32 %v3024, 7
        %v3026 = vsub.s32 %v3023, %v3025
        %v3027 = vrot.slane %v3000, %v3026
        %v3029 = vunpack.c.l.s4 1966171168
        %v3030 = vunpack.c.0.s8 %v3029
        %v3031 = vlaneseq
        %v3032 = vshrl.u32 %v3031, 7
        %v3033 = vsub.s32 %v3030, %v3032
        %v3034 = vrot.slane %v3002, %v3033
        %v3036 = vunpack.c.l.s4 1966171168
        %v3037 = vunpack.c.0.s8 %v3036
        %v3038 = vlaneseq
        %v3039 = vshrl.u32 %v3038, 7
        %v3040 = vsub.s32 %v3037, %v3039
        %v3041 = vrot.slane %v3003, %v3040
        %v3043 = vunpack.c.l.s4 1966171168
        %v3044 = vunpack.c.0.s8 %v3043
        %v3045 = vlaneseq
        %v3046 = vshrl.u32 %v3045, 7
        %v3047 = vsub.s32 %v3044, %v3046
        %v3048 = vrot.slane %v3005, %v3047
        %v3050 = vunpack.c.l.s4 1966171168
        %v3051 = vunpack.c.0.s8 %v3050
        %v3052 = vlaneseq
        %v3053 = vshrl.u32 %v3052, 7
        %v3054 = vsub.s32 %v3051, %v3053
        %v3055 = vrot.slane %v3004, %v3054
        %v3057 = vunpack.c.l.s4 1966171168
        %v3058 = vunpack.c.0.s8 %v3057
        %v3059 = vlaneseq
        %v3060 = vshrl.u32 %v3059, 7
        %v3061 = vsub.s32 %v3058, %v3060
        %v3062 = vrot.slane %v3006, %v3061
        %v3063 = vcombine.low %v3013, %v3041
        %v3064 = vcombine.high %v3013, %v3041
        %v3065 = vcombine.low %v3020, %v3048
        %v3066 = vcombine.high %v3020, %v3048
        %v3067 = vcombine.low %v3027, %v3055
        %v3068 = vcombine.high %v3027, %v3055
        %v3069 = vcombine.low %v3034, %v3062
        %v3070 = vcombine.high %v3034, %v3062
        %v3071 = vcombine.low %v2176, %v2178
        %v3072 = vcombine.low %v2180, %v2182
        %v3073 = vcombine.low %v2184, %v2186
        %v3074 = vcombine.low %v2188, %v2190
        %v3076 = vunpack.c.l.s4 1966171168
        %v3077 = vunpack.c.0.s8 %v3076
        %v3078 = vlaneseq
        %v3079 = vshrl.u32 %v3078, 7
        %v3080 = vsub.s32 %v3077, %v3079
        %v3081 = vrot.slane %v3071, %v3080
        %v3083 = vunpack.c.l.s4 1966171168
        %v3084 = vunpack.c.0.s8 %v3083
        %v3085 = vlaneseq
        %v3086 = vshrl.u32 %v3085, 7
        %v3087 = vsub.s32 %v3084, %v3086
        %v3088 = vrot.slane %v3072, %v3087
        %v3090 = vunpack.c.l.s4 1966171168
        %v3091 = vunpack.c.0.s8 %v3090
        %v3092 = vlaneseq
        %v3093 = vshrl.u32 %v3092, 7
        %v3094 = vsub.s32 %v3091, %v3093
        %v3095 = vrot.slane %v3073, %v3094
        %v3097 = vunpack.c.l.s4 1966171168
        %v3098 = vunpack.c.0.s8 %v3097
        %v3099 = vlaneseq
        %v3100 = vshrl.u32 %v3099, 7
        %v3101 = vsub.s32 %v3098, %v3100
        %v3102 = vrot.slane %v3074, %v3101
        %v3103 = vcombine.low %v3081, %v3088
        %v3104 = vcombine.low %v3095, %v3102
        %v3106 = vunpack.c.l.s4 1966171168
        %v3107 = vunpack.c.0.s8 %v3106
        %v3108 = vlaneseq
        %v3109 = vshrl.u32 %v3108, 7
        %v3110 = vsub.s32 %v3107, %v3109
        %v3111 = vrot.slane %v3103, %v3110
        %v3113 = vunpack.c.l.s4 1966171168
        %v3114 = vunpack.c.0.s8 %v3113
        %v3115 = vlaneseq
        %v3116 = vshrl.u32 %v3115, 7
        %v3117 = vsub.s32 %v3114, %v3116
        %v3118 = vrot.slane %v3104, %v3117
        %v3119 = vcombine.low %v3111, %v3118
        %v3120 = vcombine.low %v2191, %v2193
        %v3121 = vcombine.high %v2191, %v2193
        %v3123 = vunpack.c.l.s4 1966171168
        %v3124 = vunpack.c.0.s8 %v3123
        %v3125 = vlaneseq
        %v3126 = vshrl.u32 %v3125, 7
        %v3127 = vsub.s32 %v3124, %v3126
        %v3128 = vrot.slane %v3120, %v3127
        %v3130 = vunpack.c.l.s4 1966171168
        %v3131 = vunpack.c.0.s8 %v3130
        %v3132 = vlaneseq
        %v3133 = vshrl.u32 %v3132, 7
        %v3134 = vsub.s32 %v3131, %v3133
        %v3135 = vrot.slane %v3121, %v3134
        %v3136 = vcombine.high %v3128, %v3128
        %v3137 = vcombine.high %v3135, %v3135
        %v3139 = vunpack.c.l.s4 1966171168
        %v3140 = vunpack.c.0.s8 %v3139
        %v3141 = vlaneseq
        %v3142 = vshrl.u32 %v3141, 7
        %v3143 = vsub.s32 %v3140, %v3142
        %v3144 = vrot.slane %v3128, %v3143
        %v3146 = vunpack.c.l.s4 1966171168
        %v3147 = vunpack.c.0.s8 %v3146
        %v3148 = vlaneseq
        %v3149 = vshrl.u32 %v3148, 7
        %v3150 = vsub.s32 %v3147, %v3149
        %v3151 = vrot.slane %v3135, %v3150
        %v3153 = vunpack.c.l.s4 1966171168
        %v3154 = vunpack.c.0.s8 %v3153
        %v3155 = vlaneseq
        %v3156 = vshrl.u32 %v3155, 7
        %v3157 = vsub.s32 %v3154, %v3156
        %v3158 = vrot.slane %v3136, %v3157
        %v3160 = vunpack.c.l.s4 1966171168
        %v3161 = vunpack.c.0.s8 %v3160
        %v3162 = vlaneseq
        %v3163 = vshrl.u32 %v3162, 7
        %v3164 = vsub.s32 %v3161, %v3163
        %v3165 = vrot.slane %v3137, %v3164
        %v3166 = vcombine.high %v3144, %v3144
        %v3167 = vcombine.high %v3151, %v3151
        %v3168 = vcombine.high %v3158, %v3158
        %v3169 = vcombine.high %v3165, %v3165
        %v3170 = vcombine.low %v2192, %v2194
        %v3172 = vunpack.c.l.s4 1966171168
        %v3173 = vunpack.c.0.s8 %v3172
        %v3174 = vlaneseq
        %v3175 = vshrl.u32 %v3174, 7
        %v3176 = vsub.s32 %v3173, %v3175
        %v3177 = vrot.slane %v3170, %v3176
        %v3179 = vunpack.c.l.s4 1966171168
        %v3180 = vunpack.c.0.s8 %v3179
        %v3181 = vlaneseq
        %v3182 = vshrl.u32 %v3181, 7
        %v3183 = vsub.s32 %v3180, %v3182
        %v3184 = vrot.slane %v3177, %v3183
        %v3383 = vunpack.c.l.b16 %v1967
        %v3384 = vunpack.c.l.b16 %v1968
        %v3385 = vunpack.c.l.b16 %v1969
        %v3386 = vunpack.c.l.b16 %v1970
        %v3387 = vunpack.c.l.b16 %v1971
        %v3388 = vunpack.c.l.b16 %v1972
        %v3389 = vunpack.c.l.b16 %v1973
        %v3390 = vunpack.c.l.b16 %v1974
        %v3391 = vunpack.c.l.b16 %v1975
        %v3392 = vunpack.c.l.b16 %v1976
        %v3393 = vunpack.c.l.b16 %v1977
        %v3394 = vunpack.c.l.b16 %v1978
        %v3395 = vunpack.c.l.b16 %v1979
        %v3396 = vunpack.c.l.b16 %v1980
        %v3397 = vunpack.c.l.b16 %v1981
        %v3398 = vunpack.c.l.b16 %v1982
        %v3399 = vunpack.c.l.b16 %v1983
        %v3400 = vunpack.c.l.b16 %v1984
        %v3401 = vunpack.c.l.b16 %v1985
        %v3402 = vunpack.c.l.b16 %v1986
        %v3403 = vunpack.c.l.b16 %v1987
        %v3404 = vunpack.c.l.b16 %v1988
        %v3405 = vunpack.c.l.b16 %v1989
        %v3406 = vunpack.c.l.b16 %v1990
        %v3407 = vunpack.c.l.b16 %v1991
        %v3408 = vunpack.c.l.b16 %v1992
        %v3409 = vunpack.c.l.b16 %v1993
        %v3410 = vunpack.c.l.b16 %v1994
        %v3411 = vunpack.c.l.b16 %v1995
        %v3412 = vunpack.c.l.b16 %v1996
        %v3413 = vunpack.c.l.b16 %v1997
        %v3414 = vunpack.c.l.b16 %v1998
        %v3415 = vunpack.c.l.b16 %v1999
        %v3416 = vunpack.c.l.b16 %v2000
        %v3417 = vunpack.c.l.b16 %v2001
        %v3418 = vunpack.c.l.b16 %v2002
        %v3419 = vunpack.c.l.b16 %v2003
        %v3420 = vunpack.c.l.b16 %v2004
        %v3421 = vunpack.c.l.b16 %v2005
        %v3422 = vunpack.c.l.b16 %v2006
        %v3423 = vunpack.c.l.b16 %v2007
        %v3424 = vunpack.c.l.b16 %v2008
        %v3425 = vunpack.c.l.b16 %v2009
        %v3426 = vunpack.c.l.b16 %v2010
        %v3427 = vunpack.c.l.b16 %v2011
        %v3428 = vunpack.c.l.b16 %v2012
        %v3429 = vunpack.c.l.b16 %v2013
        %v3430 = vunpack.c.l.b16 %v2014
        %v3431 = vunpack.c.l.b16 %v2015
        %v3432 = vunpack.c.l.b16 %v2016
        %v3433 = vunpack.c.l.b16 %v2017
        %v3434 = vunpack.c.l.b16 %v2018
        %v3435 = vunpack.c.l.b16 %v2019
        %v3436 = vunpack.c.l.b16 %v2020
        %v3437 = vunpack.c.l.b16 %v2021
        %v3438 = vunpack.c.l.b16 %v2022
        %v3439 = vunpack.c.l.b16 %v2023
        %v3440 = vunpack.c.l.b16 %v2024
        %v3441 = vunpack.c.l.b16 %v2025
        %v3442 = vunpack.c.l.b16 %v2026
        %v3443 = vunpack.c.l.b16 %v2027
        %v3444 = vunpack.c.l.b16 %v2028
        %v3445 = vunpack.c.l.b16 %v2029
        %v3446 = vunpack.c.l.b16 %v2030
        %v3447 = vunpack.c.l.b16 %v2031
        %v3448 = vunpack.c.l.b16 %v2032
        %v3449 = vunpack.c.l.b16 %v2033
        %v3450 = vunpack.c.l.b16 %v2034
        %v3451 = vunpack.c.l.b16 %v2035
        %v3452 = vunpack.c.l.b16 %v2036
        %v3453 = vunpack.c.l.b16 %v2037
        %v3454 = vunpack.c.l.b16 %v2038
        %v3455 = vunpack.c.l.b16 %v2039
        %v3456 = vunpack.c.l.b16 %v2040
        %v3457 = vunpack.c.l.b16 %v2041
        %v3458 = vunpack.c.l.b16 %v2042
        %v3459 = vunpack.c.l.b16 %v2043
        %v3460 = vunpack.c.l.b16 %v2044
        %v3461 = vunpack.c.l.b16 %v2045
        %v3462 = vunpack.c.l.b16 %v2046
        %v3463 = vunpack.c.l.b16 %v2047
        %v3464 = vunpack.c.l.b16 %v2048
        %v3465 = vunpack.c.l.b16 %v2049
        %v3466 = vunpack.c.l.b16 %v2050
        %v3467 = vunpack.c.l.b16 %v2051
        %v3468 = vunpack.c.l.b16 %v2052
        %v3469 = vunpack.c.l.b16 %v2053
        %v3470 = vunpack.c.l.b16 %v2054
        %v3471 = vunpack.c.l.b16 %v2055
        %v3472 = vunpack.c.l.b16 %v2056
        %v3473 = vunpack.c.l.b16 %v2057
        %v3474 = vunpack.c.l.b16 %v2058
        %v3475 = vunpack.c.l.b16 %v2059
        %v3476 = vunpack.c.l.b16 %v2060
        %v3477 = vunpack.c.l.b16 %v2061
        %v3478 = vunpack.c.l.b16 %v2062
        %v3479 = vunpack.c.l.b16 %v2063
        %v3480 = vunpack.c.l.b16 %v2064
        %v3481 = vunpack.c.l.b16 %v2065
        %v3482 = vunpack.c.l.b16 %v2066
        %v3483 = vunpack.c.l.b16 %v2067
        %v3484 = vunpack.c.l.b16 %v2068
        %v3485 = vunpack.c.l.b16 %v2069
        %v3486 = vunpack.c.l.b16 %v2070
        %v3487 = vunpack.c.l.b16 %v2071
        %v3488 = vunpack.c.l.b16 %v2072
        %v3489 = vunpack.c.l.b16 %v2073
        %v3490 = vunpack.c.l.b16 %v2074
        %v3491 = vunpack.c.l.b16 %v2075
        %v3492 = vunpack.c.l.b16 %v2076
        %v3493 = vunpack.c.l.b16 %v2077
        %v3494 = vunpack.c.l.b16 %v2078
        %v3495 = vunpack.c.l.b16 %v2079
        %v3496 = vunpack.c.l.b16 %v2080
        %v3497 = vunpack.c.l.b16 %v2081
        %v3498 = vunpack.c.l.b16 %v2082
        %v3499 = vunpack.c.l.b16 %v2083
        %v3500 = vunpack.c.l.b16 %v2084
        %v3501 = vunpack.c.l.b16 %v2085
        %v3502 = vunpack.c.l.b16 %v2086
        %v3503 = vunpack.c.l.b16 %v2087
        %v3504 = vunpack.c.l.b16 %v2088
        %v3505 = vunpack.c.l.b16 %v2089
        %v3506 = vunpack.c.l.b16 %v2090
        %v3507 = vunpack.c.l.b16 %v2091
        %v3508 = vunpack.c.l.b16 %v2092
        %v3509 = vunpack.c.l.b16 %v2093
        %v3510 = vunpack.c.l.b16 %v2094
        %v3511 = vunpack.c.l.b16 %v2095
        %v3512 = vunpack.c.l.b16 %v2096
        %v3513 = vunpack.c.l.b16 %v2097
        %v3514 = vunpack.c.l.b16 %v2098
        %v3515 = vunpack.c.l.b16 %v2099
        %v3516 = vunpack.c.l.b16 %v2100
        %v3517 = vunpack.c.l.b16 %v2101
        %v3518 = vunpack.c.l.b16 %v2102
        %v3519 = vunpack.c.l.b16 %v2103
        %v3520 = vunpack.c.l.b16 %v2104
        %v3521 = vunpack.c.l.b16 %v2105
        %v3522 = vunpack.c.l.b16 %v2106
        %v3523 = vunpack.c.l.b16 %v2107
        %v3524 = vunpack.c.l.b16 %v2108
        %v3525 = vunpack.c.l.b16 %v2109
        %v3526 = vunpack.c.l.b16 %v2110
        %v3527 = vpack.c.b16 %v3384, %v3383
        %v3528 = vpack.c.b16 %v3386, %v3385
        %v3529 = vpack.c.b16 %v3388, %v3387
        %v3530 = vpack.c.b16 %v3390, %v3389
        %v3531 = vpack.c.b16 %v3392, %v3391
        %v3532 = vpack.c.b16 %v3394, %v3393
        %v3533 = vpack.c.b16 %v3396, %v3395
        %v3534 = vpack.c.b16 %v3398, %v3397
        %v3535 = vpack.c.b16 %v3400, %v3399
        %v3536 = vpack.c.b16 %v3402, %v3401
        %v3537 = vpack.c.b16 %v3404, %v3403
        %v3538 = vpack.c.b16 %v3406, %v3405
        %v3539 = vpack.c.b16 %v3408, %v3407
        %v3540 = vpack.c.b16 %v3410, %v3409
        %v3541 = vpack.c.b16 %v3412, %v3411
        %v3542 = vpack.c.b16 %v3414, %v3413
        %v3543 = vpack.c.b16 %v3416, %v3415
        %v3544 = vpack.c.b16 %v3418, %v3417
        %v3545 = vpack.c.b16 %v3420, %v3419
        %v3546 = vpack.c.b16 %v3422, %v3421
        %v3547 = vpack.c.b16 %v3424, %v3423
        %v3548 = vpack.c.b16 %v3426, %v3425
        %v3549 = vpack.c.b16 %v3428, %v3427
        %v3550 = vpack.c.b16 %v3430, %v3429
        %v3551 = vpack.c.b16 %v3432, %v3431
        %v3552 = vpack.c.b16 %v3434, %v3433
        %v3553 = vpack.c.b16 %v3436, %v3435
        %v3554 = vpack.c.b16 %v3438, %v3437
        %v3555 = vpack.c.b16 %v3440, %v3439
        %v3556 = vpack.c.b16 %v3442, %v3441
        %v3557 = vpack.c.b16 %v3444, %v3443
        %v3558 = vpack.c.b16 %v3446, %v3445
        %v3559 = vpack.c.b16 %v3448, %v3447
        %v3560 = vpack.c.b16 %v3450, %v3449
        %v3561 = vpack.c.b16 %v3452, %v3451
        %v3562 = vpack.c.b16 %v3454, %v3453
        %v3563 = vpack.c.b16 %v3456, %v3455
        %v3564 = vpack.c.b16 %v3458, %v3457
        %v3565 = vpack.c.b16 %v3460, %v3459
        %v3566 = vpack.c.b16 %v3462, %v3461
        %v3567 = vpack.c.b16 %v3464, %v3463
        %v3568 = vpack.c.b16 %v3466, %v3465
        %v3569 = vpack.c.b16 %v3468, %v3467
        %v3570 = vpack.c.b16 %v3470, %v3469
        %v3571 = vpack.c.b16 %v3472, %v3471
        %v3572 = vpack.c.b16 %v3474, %v3473
        %v3573 = vpack.c.b16 %v3476, %v3475
        %v3574 = vpack.c.b16 %v3478, %v3477
        %v3575 = vpack.c.b16 %v3480, %v3479
        %v3576 = vpack.c.b16 %v3482, %v3481
        %v3577 = vpack.c.b16 %v3484, %v3483
        %v3578 = vpack.c.b16 %v3486, %v3485
        %v3579 = vpack.c.b16 %v3488, %v3487
        %v3580 = vpack.c.b16 %v3490, %v3489
        %v3581 = vpack.c.b16 %v3492, %v3491
        %v3582 = vpack.c.b16 %v3494, %v3493
        %v3583 = vpack.c.b16 %v3496, %v3495
        %v3584 = vpack.c.b16 %v3498, %v3497
        %v3585 = vpack.c.b16 %v3500, %v3499
        %v3586 = vpack.c.b16 %v3502, %v3501
        %v3587 = vpack.c.b16 %v3504, %v3503
        %v3588 = vpack.c.b16 %v3506, %v3505
        %v3589 = vpack.c.b16 %v3508, %v3507
        %v3590 = vpack.c.b16 %v3510, %v3509
        %v3591 = vpack.c.b16 %v3512, %v3511
        %v3592 = vpack.c.b16 %v3514, %v3513
        %v3593 = vpack.c.b16 %v3516, %v3515
        %v3594 = vpack.c.b16 %v3518, %v3517
        %v3595 = vpack.c.b16 %v3520, %v3519
        %v3596 = vpack.c.b16 %v3522, %v3521
        %v3597 = vpack.c.b16 %v3524, %v3523
        %v3598 = vpack.c.b16 %v3526, %v3525
        %3671 = vmatprep.subr.bf16.mxu0 0
        %3672 = vmatpush1.bf16.msra.mxu0 %v3527
        %3673 = vmatprep.subr.bf16.mxu0 0
        %3674 = vmatpush1.bf16.msra.mxu0 %v3528
        %3675 = vmatprep.subr.bf16.mxu0 0
        %3676 = vmatpush1.bf16.msra.mxu0 %v3529
        %3677 = vmatprep.subr.bf16.mxu0 0
        %3678 = vmatpush1.bf16.msra.mxu0 %v3530
        %3679 = vmatprep.subr.bf16.mxu0 0
        %3680 = vmatpush1.bf16.msra.mxu0 %v3531
        %3681 = vmatprep.subr.bf16.mxu0 0
        %3682 = vmatpush1.bf16.msra.mxu0 %v3532
        %3683 = vmatprep.subr.bf16.mxu0 0
        %3684 = vmatpush1.bf16.msra.mxu0 %v3533
        %3685 = vmatprep.subr.bf16.mxu0 0
        %3686 = vmatpush1.bf16.msra.mxu0 %v3534
        %3687 = vmatprep.subr.bf16.mxu0 0
        %3688 = vmatpush1.bf16.msra.mxu0 %v3535
        %3689 = vmatprep.subr.bf16.mxu0 0
        %3690 = vmatpush1.bf16.msra.mxu0 %v3536
        %3691 = vmatprep.subr.bf16.mxu0 0
        %3692 = vmatpush1.bf16.msra.mxu0 %v3537
        %3693 = vmatprep.subr.bf16.mxu0 0
        %3694 = vmatpush1.bf16.msra.mxu0 %v3538
        %3695 = vmatprep.subr.bf16.mxu0 0
        %3696 = vmatpush1.bf16.msra.mxu0 %v3539
        %3697 = vmatprep.subr.bf16.mxu0 0
        %3698 = vmatpush1.bf16.msra.mxu0 %v3540
        %3699 = vmatprep.subr.bf16.mxu0 0
        %3700 = vmatpush1.bf16.msra.mxu0 %v3541
        %3701 = vmatprep.subr.bf16.mxu0 0
        %3702 = vmatpush1.bf16.msra.mxu0 %v3542
        %3703 = vmatprep.mubr.bf16.mxu0 %v2327
        %3704 = vmatmul.mubr.bf16.gmra.mrb[0].mxu0 %v2323
        %v3705 = vpop.f32.mrb[0].mxu0
        %v3706 = vadd.f32 0.0, %v3705
        %v3707 = vpop.f32.mrb[0].mxu0
        %v3708 = vpop.f32.mrb[0].mxu0
        %v3709 = vadd.f32 0.0, %v3708
        %v3710 = vpop.f32.mrb[0].mxu0
        %3711 = vmatprep.mubr.bf16.mxu0 %v2512
        %3712 = vmatmul.mubr.bf16.gmra.mrb[0].mxu0 %v2508
        %v3713 = vpop.f32.mrb[0].mxu0
        %v3714 = vadd.f32 0.0, %v3713
        %v3715 = vpop.f32.mrb[0].mxu0
        %v3716 = vpop.f32.mrb[0].mxu0
        %v3717 = vadd.f32 0.0, %v3716
        %v3718 = vpop.f32.mrb[0].mxu0
        %3719 = vmatprep.mubr.bf16.mxu0 %v2697
        %3720 = vmatmul.mubr.bf16.gmra.mrb[0].mxu0 %v2693
        %v3721 = vpop.f32.mrb[0].mxu0
        %v3722 = vadd.f32 0.0, %v3721
        %v3723 = vpop.f32.mrb[0].mxu0
        %v3724 = vpop.f32.mrb[0].mxu0
        %v3725 = vadd.f32 0.0, %v3724
        %v3726 = vpop.f32.mrb[0].mxu0
        %3727 = vmatprep.mubr.bf16.mxu0 %v2882
        %3728 = vmatmul.mubr.bf16.gmra.mrb[0].mxu0 %v2878
        %v3729 = vpop.f32.mrb[0].mxu0
        %v3730 = vadd.f32 0.0, %v3729
        %v3731 = vpop.f32.mrb[0].mxu0
        %v3732 = vpop.f32.mrb[0].mxu0
        %v3733 = vadd.f32 0.0, %v3732
        %v3734 = vpop.f32.mrb[0].mxu0
        %3735 = vmatprep.mubr.bf16.mxu0 %v3067
        %3736 = vmatmul.mubr.bf16.gmra.mrb[0].mxu0 %v3063
        %v3737 = vpop.f32.mrb[0].mxu0
        %v3738 = vadd.f32 0.0, %v3737
        %v3739 = vpop.f32.mrb[0].mxu0
        %v3740 = vpop.f32.mrb[0].mxu0
        %v3741 = vadd.f32 0.0, %v3740
        %v3742 = vpop.f32.mrb[0].mxu0
        %3743 = vmatprep.mubr.bf16.mxu0 %v3158
        %3744 = vmatmul.mubr.bf16.gmra.mrb[0].mxu0 %v3144
        %v3745 = vpop.f32.mrb[0].mxu0
        %v3746 = vadd.f32 0.0, %v3745
        %v3747 = vpop.f32.mrb[0].mxu0
        %v3748 = vpop.f32.mrb[0].mxu0
        %v3749 = vpop.f32.mrb[0].mxu0
        %3750 = vdwg.mxu0
        %3751 = vmatprep.subr.bf16.mxu0 0
        %3752 = vmatpush1.bf16.msra.mxu0 %v3543
        %3753 = vmatprep.subr.bf16.mxu0 0
        %3754 = vmatpush1.bf16.msra.mxu0 %v3544
        %3755 = vmatprep.subr.bf16.mxu0 0
        %3756 = vmatpush1.bf16.msra.mxu0 %v3545
        %3757 = vmatprep.subr.bf16.mxu0 0
        %3758 = vmatpush1.bf16.msra.mxu0 %v3546
        %3759 = vmatprep.subr.bf16.mxu0 0
        %3760 = vmatpush1.bf16.msra.mxu0 %v3547
        %3761 = vmatprep.subr.bf16.mxu0 0
        %3762 = vmatpush1.bf16.msra.mxu0 %v3548
        %3763 = vmatprep.subr.bf16.mxu0 0
        %3764 = vmatpush1.bf16.msra.mxu0 %v3549
        %3765 = vmatprep.subr.bf16.mxu0 0
        %3766 = vmatpush1.bf16.msra.mxu0 %v3550
        %3767 = vmatprep.subr.bf16.mxu0 0
        %3768 = vmatpush1.bf16.msra.mxu0 %v3551
        %3769 = vmatprep.subr.bf16.mxu0 0
        %3770 = vmatpush1.bf16.msra.mxu0 %v3552
        %3771 = vmatprep.subr.bf16.mxu0 0
        %3772 = vmatpush1.bf16.msra.mxu0 %v3553
        %3773 = vmatprep.subr.bf16.mxu0 0
        %3774 = vmatpush1.bf16.msra.mxu0 %v3554
        %3775 = vmatprep.subr.bf16.mxu0 0
        %3776 = vmatpush1.bf16.msra.mxu0 %v3555
        %3777 = vmatprep.subr.bf16.mxu0 0
        %3778 = vmatpush1.bf16.msra.mxu0 %v3556
        %3779 = vmatprep.subr.bf16.mxu0 0
        %3780 = vmatpush1.bf16.msra.mxu0 %v3557
        %3781 = vmatprep.subr.bf16.mxu0 0
        %3782 = vmatpush1.bf16.msra.mxu0 %v3558
        %3783 = vmatprep.mubr.bf16.mxu0 %v2328
        %3784 = vmatmul.mubr.bf16.gmra.mrb[0].mxu0 %v2324
        %v3785 = vpop.f32.mrb[0].mxu0
        %v3786 = vadd.f32 %v3706, %v3785
        %v3787 = vpop.f32.mrb[0].mxu0
        %v3788 = vpop.f32.mrb[0].mxu0
        %v3789 = vadd.f32 %v3709, %v3788
        %v3790 = vpop.f32.mrb[0].mxu0
        %3791 = vmatprep.mubr.bf16.mxu0 %v2513
        %3792 = vmatmul.mubr.bf16.gmra.mrb[0].mxu0 %v2509
        %v3793 = vpop.f32.mrb[0].mxu0
        %v3794 = vadd.f32 %v3714, %v3793
        %v3795 = vpop.f32.mrb[0].mxu0
        %v3796 = vpop.f32.mrb[0].mxu0
        %v3797 = vadd.f32 %v3717, %v3796
        %v3798 = vpop.f32.mrb[0].mxu0
        %3799 = vmatprep.mubr.bf16.mxu0 %v2698
        %3800 = vmatmul.mubr.bf16.gmra.mrb[0].mxu0 %v2694
        %v3801 = vpop.f32.mrb[0].mxu0
        %v3802 = vadd.f32 %v3722, %v3801
        %v3803 = vpop.f32.mrb[0].mxu0
        %v3804 = vpop.f32.mrb[0].mxu0
        %v3805 = vadd.f32 %v3725, %v3804
        %v3806 = vpop.f32.mrb[0].mxu0
        %3807 = vmatprep.mubr.bf16.mxu0 %v2883
        %3808 = vmatmul.mubr.bf16.gmra.mrb[0].mxu0 %v2879
        %v3809 = vpop.f32.mrb[0].mxu0
        %v3810 = vadd.f32 %v3730, %v3809
        %v3811 = vpop.f32.mrb[0].mxu0
        %v3812 = vpop.f32.mrb[0].mxu0
        %v3813 = vadd.f32 %v3733, %v3812
        %v3814 = vpop.f32.mrb[0].mxu0
        %3815 = vmatprep.mubr.bf16.mxu0 %v3068
        %3816 = vmatmul.mubr.bf16.gmra.mrb[0].mxu0 %v3064
        %v3817 = vpop.f32.mrb[0].mxu0
        %v3818 = vadd.f32 %v3738, %v3817
        %v3819 = vpop.f32.mrb[0].mxu0
        %v3820 = vpop.f32.mrb[0].mxu0
        %v3821 = vadd.f32 %v3741, %v3820
        %v3822 = vpop.f32.mrb[0].mxu0
        %3823 = vmatprep.mubr.bf16.mxu0 %v3168
        %3824 = vmatmul.mubr.bf16.gmra.mrb[0].mxu0 %v3166
        %v3825 = vpop.f32.mrb[0].mxu0
        %v3826 = vadd.f32 %v3746, %v3825
        %v3827 = vpop.f32.mrb[0].mxu0
        %v3828 = vpop.f32.mrb[0].mxu0
        %v3829 = vpop.f32.mrb[0].mxu0
        %3830 = vdwg.mxu0
        %3831 = vmatprep.subr.bf16.mxu0 0
        %3832 = vmatpush1.bf16.msra.mxu0 %v3559
        %3833 = vmatprep.subr.bf16.mxu0 0
        %3834 = vmatpush1.bf16.msra.mxu0 %v3560
        %3835 = vmatprep.subr.bf16.mxu0 0
        %3836 = vmatpush1.bf16.msra.mxu0 %v3561
        %3837 = vmatprep.subr.bf16.mxu0 0
        %3838 = vmatpush1.bf16.msra.mxu0 %v3562
        %3839 = vmatprep.subr.bf16.mxu0 0
        %3840 = vmatpush1.bf16.msra.mxu0 %v3563
        %3841 = vmatprep.subr.bf16.mxu0 0
        %3842 = vmatpush1.bf16.msra.mxu0 %v3564
        %3843 = vmatprep.subr.bf16.mxu0 0
        %3844 = vmatpush1.bf16.msra.mxu0 %v3565
        %3845 = vmatprep.subr.bf16.mxu0 0
        %3846 = vmatpush1.bf16.msra.mxu0 %v3566
        %3847 = vmatprep.subr.bf16.mxu0 0
        %3848 = vmatpush1.bf16.msra.mxu0 %v3567
        %3849 = vmatprep.subr.bf16.mxu0 0
        %3850 = vmatpush1.bf16.msra.mxu0 %v3568
        %3851 = vmatprep.subr.bf16.mxu0 0
        %3852 = vmatpush1.bf16.msra.mxu0 %v3569
        %3853 = vmatprep.subr.bf16.mxu0 0
        %3854 = vmatpush1.bf16.msra.mxu0 %v3570
        %3855 = vmatprep.subr.bf16.mxu0 0
        %3856 = vmatpush1.bf16.msra.mxu0 %v3571
        %3857 = vmatprep.subr.bf16.mxu0 0
        %3858 = vmatpush1.bf16.msra.mxu0 %v3572
        %3859 = vmatprep.subr.bf16.mxu0 0
        %3860 = vmatpush1.bf16.msra.mxu0 %v3573
        %3861 = vmatprep.subr.bf16.mxu0 0
        %3862 = vmatpush1.bf16.msra.mxu0 %v3574
        %3863 = vmatprep.mubr.bf16.mxu0 %v2329
        %3864 = vmatmul.mubr.bf16.gmra.mrb[0].mxu0 %v2325
        %v3865 = vpop.f32.mrb[0].mxu0
        %v3866 = vadd.f32 %v3786, %v3865
        %v3867 = vpop.f32.mrb[0].mxu0
        %v3868 = vpop.f32.mrb[0].mxu0
        %v3869 = vadd.f32 %v3789, %v3868
        %v3870 = vpop.f32.mrb[0].mxu0
        %3871 = vmatprep.mubr.bf16.mxu0 %v2514
        %3872 = vmatmul.mubr.bf16.gmra.mrb[0].mxu0 %v2510
        %v3873 = vpop.f32.mrb[0].mxu0
        %v3874 = vadd.f32 %v3794, %v3873
        %v3875 = vpop.f32.mrb[0].mxu0
        %v3876 = vpop.f32.mrb[0].mxu0
        %v3877 = vadd.f32 %v3797, %v3876
        %v3878 = vpop.f32.mrb[0].mxu0
        %3879 = vmatprep.mubr.bf16.mxu0 %v2699
        %3880 = vmatmul.mubr.bf16.gmra.mrb[0].mxu0 %v2695
        %v3881 = vpop.f32.mrb[0].mxu0
        %v3882 = vadd.f32 %v3802, %v3881
        %v3883 = vpop.f32.mrb[0].mxu0
        %v3884 = vpop.f32.mrb[0].mxu0
        %v3885 = vadd.f32 %v3805, %v3884
        %v3886 = vpop.f32.mrb[0].mxu0
        %3887 = vmatprep.mubr.bf16.mxu0 %v2884
        %3888 = vmatmul.mubr.bf16.gmra.mrb[0].mxu0 %v2880
        %v3889 = vpop.f32.mrb[0].mxu0
        %v3890 = vadd.f32 %v3810, %v3889
        %v3891 = vpop.f32.mrb[0].mxu0
        %v3892 = vpop.f32.mrb[0].mxu0
        %v3893 = vadd.f32 %v3813, %v3892
        %v3894 = vpop.f32.mrb[0].mxu0
        %3895 = vmatprep.mubr.bf16.mxu0 %v3069
        %3896 = vmatmul.mubr.bf16.gmra.mrb[0].mxu0 %v3065
        %v3897 = vpop.f32.mrb[0].mxu0
        %v3898 = vadd.f32 %v3818, %v3897
        %v3899 = vpop.f32.mrb[0].mxu0
        %v3900 = vpop.f32.mrb[0].mxu0
        %v3901 = vadd.f32 %v3821, %v3900
        %v3902 = vpop.f32.mrb[0].mxu0
        %3903 = vmatprep.mubr.bf16.mxu0 %v3165
        %3904 = vmatmul.mubr.bf16.gmra.mrb[0].mxu0 %v3151
        %v3905 = vpop.f32.mrb[0].mxu0
        %v3906 = vadd.f32 %v3826, %v3905
        %v3907 = vpop.f32.mrb[0].mxu0
        %v3908 = vpop.f32.mrb[0].mxu0
        %v3909 = vpop.f32.mrb[0].mxu0
        %3910 = vdwg.mxu0
        %3911 = vmatprep.subr.bf16.mxu0 0
        %3912 = vmatpush1.bf16.msra.mxu0 %v3575
        %3913 = vmatprep.subr.bf16.mxu0 0
        %3914 = vmatpush1.bf16.msra.mxu0 %v3576
        %3915 = vmatprep.subr.bf16.mxu0 0
        %3916 = vmatpush1.bf16.msra.mxu0 %v3577
        %3917 = vmatprep.subr.bf16.mxu0 0
        %3918 = vmatpush1.bf16.msra.mxu0 %v3578
        %3919 = vmatprep.subr.bf16.mxu0 0
        %3920 = vmatpush1.bf16.msra.mxu0 %v3579
        %3921 = vmatprep.subr.bf16.mxu0 0
        %3922 = vmatpush1.bf16.msra.mxu0 %v3580
        %3923 = vmatprep.subr.bf16.mxu0 0
        %3924 = vmatpush1.bf16.msra.mxu0 %v3581
        %3925 = vmatprep.subr.bf16.mxu0 0
        %3926 = vmatpush1.bf16.msra.mxu0 %v3582
        %3927 = vmatprep.subr.bf16.mxu0 0
        %3928 = vmatpush1.bf16.msra.mxu0 %v3583
        %3929 = vmatprep.subr.bf16.mxu0 0
        %3930 = vmatpush1.bf16.msra.mxu0 %v3584
        %3931 = vmatprep.subr.bf16.mxu0 0
        %3932 = vmatpush1.bf16.msra.mxu0 %v3585
        %3933 = vmatprep.subr.bf16.mxu0 0
        %3934 = vmatpush1.bf16.msra.mxu0 %v3586
        %3935 = vmatprep.subr.bf16.mxu0 0
        %3936 = vmatpush1.bf16.msra.mxu0 %v3587
        %3937 = vmatprep.subr.bf16.mxu0 0
        %3938 = vmatpush1.bf16.msra.mxu0 %v3588
        %3939 = vmatprep.subr.bf16.mxu0 0
        %3940 = vmatpush1.bf16.msra.mxu0 %v3589
        %3941 = vmatprep.subr.bf16.mxu0 0
        %3942 = vmatpush1.bf16.msra.mxu0 %v3590
        %3943 = vmatprep.mubr.bf16.mxu0 %v2330
        %3944 = vmatmul.mubr.bf16.gmra.mrb[0].mxu0 %v2326
        %v3945 = vpop.f32.mrb[0].mxu0
        %v3946 = vadd.f32 %v3866, %v3945
        %v3947 = vpop.f32.mrb[0].mxu0
        %v3948 = vpop.f32.mrb[0].mxu0
        %v3949 = vadd.f32 %v3869, %v3948
        %v3950 = vpop.f32.mrb[0].mxu0
        %3951 = vmatprep.mubr.bf16.mxu0 %v2515
        %3952 = vmatmul.mubr.bf16.gmra.mrb[0].mxu0 %v2511
        %v3953 = vpop.f32.mrb[0].mxu0
        %v3954 = vadd.f32 %v3874, %v3953
        %v3955 = vpop.f32.mrb[0].mxu0
        %v3956 = vpop.f32.mrb[0].mxu0
        %v3957 = vadd.f32 %v3877, %v3956
        %v3958 = vpop.f32.mrb[0].mxu0
        %3959 = vmatprep.mubr.bf16.mxu0 %v2700
        %3960 = vmatmul.mubr.bf16.gmra.mrb[0].mxu0 %v2696
        %v3961 = vpop.f32.mrb[0].mxu0
        %v3962 = vadd.f32 %v3882, %v3961
        %v3963 = vpop.f32.mrb[0].mxu0
        %v3964 = vpop.f32.mrb[0].mxu0
        %v3965 = vadd.f32 %v3885, %v3964
        %v3966 = vpop.f32.mrb[0].mxu0
        %3967 = vmatprep.mubr.bf16.mxu0 %v2885
        %3968 = vmatmul.mubr.bf16.gmra.mrb[0].mxu0 %v2881
        %v3969 = vpop.f32.mrb[0].mxu0
        %v3970 = vadd.f32 %v3890, %v3969
        %v3971 = vpop.f32.mrb[0].mxu0
        %v3972 = vpop.f32.mrb[0].mxu0
        %v3973 = vadd.f32 %v3893, %v3972
        %v3974 = vpop.f32.mrb[0].mxu0
        %3975 = vmatprep.mubr.bf16.mxu0 %v3070
        %3976 = vmatmul.mubr.bf16.gmra.mrb[0].mxu0 %v3066
        %v3977 = vpop.f32.mrb[0].mxu0
        %v3978 = vadd.f32 %v3898, %v3977
        %v3979 = vpop.f32.mrb[0].mxu0
        %v3980 = vpop.f32.mrb[0].mxu0
        %v3981 = vadd.f32 %v3901, %v3980
        %v3982 = vpop.f32.mrb[0].mxu0
        %3983 = vmatprep.mubr.bf16.mxu0 %v3169
        %3984 = vmatmul.mubr.bf16.gmra.mrb[0].mxu0 %v3167
        %v3985 = vpop.f32.mrb[0].mxu0
        %v3986 = vadd.f32 %v3906, %v3985
        %v3987 = vpop.f32.mrb[0].mxu0
        %v3988 = vpop.f32.mrb[0].mxu0
        %v3989 = vpop.f32.mrb[0].mxu0
        %3990 = vdwg.mxu0
        %3991 = vmatprep.subr.bf16.mxu0 0
        %3992 = vmatpush1.bf16.msra.mxu0 %v3591
        %3993 = vmatprep.subr.bf16.mxu0 0
        %3994 = vmatpush1.bf16.msra.mxu0 %v3592
        %3995 = vmatprep.subr.bf16.mxu0 0
        %3996 = vmatpush1.bf16.msra.mxu0 %v3593
        %3997 = vmatprep.subr.bf16.mxu0 0
        %3998 = vmatpush1.bf16.msra.mxu0 %v3594
        %3999 = vmatprep.subr.bf16.mxu0 0
        %4000 = vmatpush1.bf16.msra.mxu0 %v3595
        %4001 = vmatprep.subr.bf16.mxu0 0
        %4002 = vmatpush1.bf16.msra.mxu0 %v3596
        %4003 = vmatprep.subr.bf16.mxu0 0
        %4004 = vmatpush1.bf16.msra.mxu0 %v3597
        %4005 = vmatprep.subr.bf16.mxu0 0
        %4006 = vmatpush1.bf16.msra.mxu0 %v3598
        %4007 = vmatprep.subr.bf16.mxu0 0
        %4008 = vmatpush1.bf16.msra.mxu0 0
        %4009 = vmatprep.subr.bf16.mxu0 0
        %4010 = vmatpush1.bf16.msra.mxu0 0
        %4011 = vmatprep.subr.bf16.mxu0 0
        %4012 = vmatpush1.bf16.msra.mxu0 0
        %4013 = vmatprep.subr.bf16.mxu0 0
        %4014 = vmatpush1.bf16.msra.mxu0 0
        %4015 = vmatprep.subr.bf16.mxu0 0
        %4016 = vmatpush1.bf16.msra.mxu0 0
        %4017 = vmatprep.subr.bf16.mxu0 0
        %4018 = vmatpush1.bf16.msra.mxu0 0
        %4019 = vmatprep.subr.bf16.mxu0 0
        %4020 = vmatpush1.bf16.msra.mxu0 0
        %4021 = vmatprep.subr.bf16.mxu0 0
        %4022 = vmatpush1.bf16.msra.mxu0 0
        %4023 = vmatprep.mubr.bf16.mxu0 0
        %4024 = vmatmul.mubr.bf16.gmra.mrb[0].mxu0 %v2379
        %v4025 = vpop.f32.mrb[0].mxu0
        %v4026 = vadd.f32 %v3946, %v4025
        %v4027 = vpop.f32.mrb[0].mxu0
        %v4028 = vpop.f32.mrb[0].mxu0
        %v4029 = vadd.f32 %v3949, %v4028
        %v4030 = vpop.f32.mrb[0].mxu0
        %4031 = vmatprep.mubr.bf16.mxu0 0
        %4032 = vmatmul.mubr.bf16.gmra.mrb[0].mxu0 %v2564
        %v4033 = vpop.f32.mrb[0].mxu0
        %v4034 = vadd.f32 %v3954, %v4033
        %v4035 = vpop.f32.mrb[0].mxu0
        %v4036 = vpop.f32.mrb[0].mxu0
        %v4037 = vadd.f32 %v3957, %v4036
        %v4038 = vpop.f32.mrb[0].mxu0
        %4039 = vmatprep.mubr.bf16.mxu0 0
        %4040 = vmatmul.mubr.bf16.gmra.mrb[0].mxu0 %v2749
        %v4041 = vpop.f32.mrb[0].mxu0
        %v4042 = vadd.f32 %v3962, %v4041
        %v4043 = vpop.f32.mrb[0].mxu0
        %v4044 = vpop.f32.mrb[0].mxu0
        %v4045 = vadd.f32 %v3965, %v4044
        %v4046 = vpop.f32.mrb[0].mxu0
        %4047 = vmatprep.mubr.bf16.mxu0 0
        %4048 = vmatmul.mubr.bf16.gmra.mrb[0].mxu0 %v2934
        %v4049 = vpop.f32.mrb[0].mxu0
        %v4050 = vadd.f32 %v3970, %v4049
        %v4051 = vpop.f32.mrb[0].mxu0
        %v4052 = vpop.f32.mrb[0].mxu0
        %v4053 = vadd.f32 %v3973, %v4052
        %v4054 = vpop.f32.mrb[0].mxu0
        %4055 = vmatprep.mubr.bf16.mxu0 0
        %4056 = vmatmul.mubr.bf16.gmra.mrb[0].mxu0 %v3119
        %v4057 = vpop.f32.mrb[0].mxu0
        %v4058 = vadd.f32 %v3978, %v4057
        %v4059 = vpop.f32.mrb[0].mxu0
        %v4060 = vpop.f32.mrb[0].mxu0
        %v4061 = vadd.f32 %v3981, %v4060
        %v4062 = vpop.f32.mrb[0].mxu0
        %4063 = vmatprep.mubr.bf16.mxu0 0
        %4064 = vmatmul.mubr.bf16.gmra.mrb[0].mxu0 %v3184
        %v4065 = vpop.f32.mrb[0].mxu0
        %v4066 = vadd.f32 %v3986, %v4065
        %v4067 = vpop.f32.mrb[0].mxu0
        %v4068 = vpop.f32.mrb[0].mxu0
        %v4069 = vpop.f32.mrb[0].mxu0
        %4070 = vdwg.mxu0
        %v4082 = vcombine.high %v4026, %v4026
        %v4084 = vunpack.c.l.s4 1966171168
        %v4085 = vunpack.c.0.s8 %v4084
        %v4086 = vlaneseq
        %v4087 = vshrl.u32 %v4086, 7
        %v4088 = vsub.s32 %v4085, %v4087
        %v4089 = vrot.slane %v4026, %v4088
        %v4091 = vunpack.c.l.s4 1966171168
        %v4092 = vunpack.c.0.s8 %v4091
        %v4093 = vlaneseq
        %v4094 = vshrl.u32 %v4093, 7
        %v4095 = vsub.s32 %v4092, %v4094
        %v4096 = vrot.slane %v4082, %v4095
        %v4097 = vcombine.high %v4089, %v4089
        %v4098 = vcombine.high %v4096, %v4096
        %v4100 = vunpack.c.l.s4 1966171168
        %v4101 = vunpack.c.0.s8 %v4100
        %v4102 = vlaneseq
        %v4103 = vshrl.u32 %v4102, 7
        %v4104 = vsub.s32 %v4101, %v4103
        %v4105 = vrot.slane %v4089, %v4104
        %v4107 = vunpack.c.l.s4 1966171168
        %v4108 = vunpack.c.0.s8 %v4107
        %v4109 = vlaneseq
        %v4110 = vshrl.u32 %v4109, 7
        %v4111 = vsub.s32 %v4108, %v4110
        %v4112 = vrot.slane %v4096, %v4111
        %v4114 = vunpack.c.l.s4 1966171168
        %v4115 = vunpack.c.0.s8 %v4114
        %v4116 = vlaneseq
        %v4117 = vshrl.u32 %v4116, 7
        %v4118 = vsub.s32 %v4115, %v4117
        %v4119 = vrot.slane %v4097, %v4118
        %v4121 = vunpack.c.l.s4 1966171168
        %v4122 = vunpack.c.0.s8 %v4121
        %v4123 = vlaneseq
        %v4124 = vshrl.u32 %v4123, 7
        %v4125 = vsub.s32 %v4122, %v4124
        %v4126 = vrot.slane %v4098, %v4125
        %v4127 = vcombine.high %v4105, %v4105
        %v4128 = vcombine.high %v4112, %v4112
        %v4129 = vcombine.high %v4119, %v4119
        %v4130 = vcombine.high %v4126, %v4126
        %v4131 = vcombine.high %v4029, %v4029
        %v4133 = vunpack.c.l.s4 1966171168
        %v4134 = vunpack.c.0.s8 %v4133
        %v4135 = vlaneseq
        %v4136 = vshrl.u32 %v4135, 7
        %v4137 = vsub.s32 %v4134, %v4136
        %v4138 = vrot.slane %v4029, %v4137
        %v4140 = vunpack.c.l.s4 1966171168
        %v4141 = vunpack.c.0.s8 %v4140
        %v4142 = vlaneseq
        %v4143 = vshrl.u32 %v4142, 7
        %v4144 = vsub.s32 %v4141, %v4143
        %v4145 = vrot.slane %v4131, %v4144
        %v4146 = vcombine.high %v4138, %v4138
        %v4147 = vcombine.high %v4145, %v4145
        %v4149 = vunpack.c.l.s4 1966171168
        %v4150 = vunpack.c.0.s8 %v4149
        %v4151 = vlaneseq
        %v4152 = vshrl.u32 %v4151, 7
        %v4153 = vsub.s32 %v4150, %v4152
        %v4154 = vrot.slane %v4138, %v4153
        %v4156 = vunpack.c.l.s4 1966171168
        %v4157 = vunpack.c.0.s8 %v4156
        %v4158 = vlaneseq
        %v4159 = vshrl.u32 %v4158, 7
        %v4160 = vsub.s32 %v4157, %v4159
        %v4161 = vrot.slane %v4145, %v4160
        %v4163 = vunpack.c.l.s4 1966171168
        %v4164 = vunpack.c.0.s8 %v4163
        %v4165 = vlaneseq
        %v4166 = vshrl.u32 %v4165, 7
        %v4167 = vsub.s32 %v4164, %v4166
        %v4168 = vrot.slane %v4146, %v4167
        %v4170 = vunpack.c.l.s4 1966171168
        %v4171 = vunpack.c.0.s8 %v4170
        %v4172 = vlaneseq
        %v4173 = vshrl.u32 %v4172, 7
        %v4174 = vsub.s32 %v4171, %v4173
        %v4175 = vrot.slane %v4147, %v4174
        %v4176 = vcombine.high %v4154, %v4154
        %v4177 = vcombine.high %v4161, %v4161
        %v4178 = vcombine.high %v4168, %v4168
        %v4179 = vcombine.high %v4175, %v4175
        %v4180 = vcombine.high %v4034, %v4034
        %v4182 = vunpack.c.l.s4 1966171168
        %v4183 = vunpack.c.0.s8 %v4182
        %v4184 = vlaneseq
        %v4185 = vshrl.u32 %v4184, 7
        %v4186 = vsub.s32 %v4183, %v4185
        %v4187 = vrot.slane %v4034, %v4186
        %v4189 = vunpack.c.l.s4 1966171168
        %v4190 = vunpack.c.0.s8 %v4189
        %v4191 = vlaneseq
        %v4192 = vshrl.u32 %v4191, 7
        %v4193 = vsub.s32 %v4190, %v4192
        %v4194 = vrot.slane %v4180, %v4193
        %v4195 = vcombine.high %v4187, %v4187
        %v4196 = vcombine.high %v4194, %v4194
        %v4198 = vunpack.c.l.s4 1966171168
        %v4199 = vunpack.c.0.s8 %v4198
        %v4200 = vlaneseq
        %v4201 = vshrl.u32 %v4200, 7
        %v4202 = vsub.s32 %v4199, %v4201
        %v4203 = vrot.slane %v4187, %v4202
        %v4205 = vunpack.c.l.s4 1966171168
        %v4206 = vunpack.c.0.s8 %v4205
        %v4207 = vlaneseq
        %v4208 = vshrl.u32 %v4207, 7
        %v4209 = vsub.s32 %v4206, %v4208
        %v4210 = vrot.slane %v4194, %v4209
        %v4212 = vunpack.c.l.s4 1966171168
        %v4213 = vunpack.c.0.s8 %v4212
        %v4214 = vlaneseq
        %v4215 = vshrl.u32 %v4214, 7
        %v4216 = vsub.s32 %v4213, %v4215
        %v4217 = vrot.slane %v4195, %v4216
        %v4219 = vunpack.c.l.s4 1966171168
        %v4220 = vunpack.c.0.s8 %v4219
        %v4221 = vlaneseq
        %v4222 = vshrl.u32 %v4221, 7
        %v4223 = vsub.s32 %v4220, %v4222
        %v4224 = vrot.slane %v4196, %v4223
        %v4225 = vcombine.high %v4203, %v4203
        %v4226 = vcombine.high %v4210, %v4210
        %v4227 = vcombine.high %v4217, %v4217
        %v4228 = vcombine.high %v4224, %v4224
        %v4229 = vcombine.high %v4037, %v4037
        %v4231 = vunpack.c.l.s4 1966171168
        %v4232 = vunpack.c.0.s8 %v4231
        %v4233 = vlaneseq
        %v4234 = vshrl.u32 %v4233, 7
        %v4235 = vsub.s32 %v4232, %v4234
        %v4236 = vrot.slane %v4037, %v4235
        %v4238 = vunpack.c.l.s4 1966171168
        %v4239 = vunpack.c.0.s8 %v4238
        %v4240 = vlaneseq
        %v4241 = vshrl.u32 %v4240, 7
        %v4242 = vsub.s32 %v4239, %v4241
        %v4243 = vrot.slane %v4229, %v4242
        %v4244 = vcombine.high %v4236, %v4236
        %v4245 = vcombine.high %v4243, %v4243
        %v4247 = vunpack.c.l.s4 1966171168
        %v4248 = vunpack.c.0.s8 %v4247
        %v4249 = vlaneseq
        %v4250 = vshrl.u32 %v4249, 7
        %v4251 = vsub.s32 %v4248, %v4250
        %v4252 = vrot.slane %v4236, %v4251
        %v4254 = vunpack.c.l.s4 1966171168
        %v4255 = vunpack.c.0.s8 %v4254
        %v4256 = vlaneseq
        %v4257 = vshrl.u32 %v4256, 7
        %v4258 = vsub.s32 %v4255, %v4257
        %v4259 = vrot.slane %v4243, %v4258
        %v4261 = vunpack.c.l.s4 1966171168
        %v4262 = vunpack.c.0.s8 %v4261
        %v4263 = vlaneseq
        %v4264 = vshrl.u32 %v4263, 7
        %v4265 = vsub.s32 %v4262, %v4264
        %v4266 = vrot.slane %v4244, %v4265
        %v4268 = vunpack.c.l.s4 1966171168
        %v4269 = vunpack.c.0.s8 %v4268
        %v4270 = vlaneseq
        %v4271 = vshrl.u32 %v4270, 7
        %v4272 = vsub.s32 %v4269, %v4271
        %v4273 = vrot.slane %v4245, %v4272
        %v4274 = vcombine.high %v4252, %v4252
        %v4275 = vcombine.high %v4259, %v4259
        %v4276 = vcombine.high %v4266, %v4266
        %v4277 = vcombine.high %v4273, %v4273
        %v4278 = vcombine.high %v4042, %v4042
        %v4280 = vunpack.c.l.s4 1966171168
        %v4281 = vunpack.c.0.s8 %v4280
        %v4282 = vlaneseq
        %v4283 = vshrl.u32 %v4282, 7
        %v4284 = vsub.s32 %v4281, %v4283
        %v4285 = vrot.slane %v4042, %v4284
        %v4287 = vunpack.c.l.s4 1966171168
        %v4288 = vunpack.c.0.s8 %v4287
        %v4289 = vlaneseq
        %v4290 = vshrl.u32 %v4289, 7
        %v4291 = vsub.s32 %v4288, %v4290
        %v4292 = vrot.slane %v4278, %v4291
        %v4293 = vcombine.high %v4285, %v4285
        %v4294 = vcombine.high %v4292, %v4292
        %v4296 = vunpack.c.l.s4 1966171168
        %v4297 = vunpack.c.0.s8 %v4296
        %v4298 = vlaneseq
        %v4299 = vshrl.u32 %v4298, 7
        %v4300 = vsub.s32 %v4297, %v4299
        %v4301 = vrot.slane %v4285, %v4300
        %v4303 = vunpack.c.l.s4 1966171168
        %v4304 = vunpack.c.0.s8 %v4303
        %v4305 = vlaneseq
        %v4306 = vshrl.u32 %v4305, 7
        %v4307 = vsub.s32 %v4304, %v4306
        %v4308 = vrot.slane %v4292, %v4307
        %v4310 = vunpack.c.l.s4 1966171168
        %v4311 = vunpack.c.0.s8 %v4310
        %v4312 = vlaneseq
        %v4313 = vshrl.u32 %v4312, 7
        %v4314 = vsub.s32 %v4311, %v4313
        %v4315 = vrot.slane %v4293, %v4314
        %v4317 = vunpack.c.l.s4 1966171168
        %v4318 = vunpack.c.0.s8 %v4317
        %v4319 = vlaneseq
        %v4320 = vshrl.u32 %v4319, 7
        %v4321 = vsub.s32 %v4318, %v4320
        %v4322 = vrot.slane %v4294, %v4321
        %v4323 = vcombine.high %v4301, %v4301
        %v4324 = vcombine.high %v4308, %v4308
        %v4325 = vcombine.high %v4315, %v4315
        %v4326 = vcombine.high %v4322, %v4322
        %v4327 = vcombine.high %v4045, %v4045
        %v4329 = vunpack.c.l.s4 1966171168
        %v4330 = vunpack.c.0.s8 %v4329
        %v4331 = vlaneseq
        %v4332 = vshrl.u32 %v4331, 7
        %v4333 = vsub.s32 %v4330, %v4332
        %v4334 = vrot.slane %v4045, %v4333
        %v4336 = vunpack.c.l.s4 1966171168
        %v4337 = vunpack.c.0.s8 %v4336
        %v4338 = vlaneseq
        %v4339 = vshrl.u32 %v4338, 7
        %v4340 = vsub.s32 %v4337, %v4339
        %v4341 = vrot.slane %v4327, %v4340
        %v4342 = vcombine.high %v4334, %v4334
        %v4343 = vcombine.high %v4341, %v4341
        %v4345 = vunpack.c.l.s4 1966171168
        %v4346 = vunpack.c.0.s8 %v4345
        %v4347 = vlaneseq
        %v4348 = vshrl.u32 %v4347, 7
        %v4349 = vsub.s32 %v4346, %v4348
        %v4350 = vrot.slane %v4334, %v4349
        %v4352 = vunpack.c.l.s4 1966171168
        %v4353 = vunpack.c.0.s8 %v4352
        %v4354 = vlaneseq
        %v4355 = vshrl.u32 %v4354, 7
        %v4356 = vsub.s32 %v4353, %v4355
        %v4357 = vrot.slane %v4341, %v4356
        %v4359 = vunpack.c.l.s4 1966171168
        %v4360 = vunpack.c.0.s8 %v4359
        %v4361 = vlaneseq
        %v4362 = vshrl.u32 %v4361, 7
        %v4363 = vsub.s32 %v4360, %v4362
        %v4364 = vrot.slane %v4342, %v4363
        %v4366 = vunpack.c.l.s4 1966171168
        %v4367 = vunpack.c.0.s8 %v4366
        %v4368 = vlaneseq
        %v4369 = vshrl.u32 %v4368, 7
        %v4370 = vsub.s32 %v4367, %v4369
        %v4371 = vrot.slane %v4343, %v4370
        %v4372 = vcombine.high %v4350, %v4350
        %v4373 = vcombine.high %v4357, %v4357
        %v4374 = vcombine.high %v4364, %v4364
        %v4375 = vcombine.high %v4371, %v4371
        %v4376 = vcombine.high %v4050, %v4050
        %v4378 = vunpack.c.l.s4 1966171168
        %v4379 = vunpack.c.0.s8 %v4378
        %v4380 = vlaneseq
        %v4381 = vshrl.u32 %v4380, 7
        %v4382 = vsub.s32 %v4379, %v4381
        %v4383 = vrot.slane %v4050, %v4382
        %v4385 = vunpack.c.l.s4 1966171168
        %v4386 = vunpack.c.0.s8 %v4385
        %v4387 = vlaneseq
        %v4388 = vshrl.u32 %v4387, 7
        %v4389 = vsub.s32 %v4386, %v4388
        %v4390 = vrot.slane %v4376, %v4389
        %v4391 = vcombine.high %v4383, %v4383
        %v4392 = vcombine.high %v4390, %v4390
        %v4394 = vunpack.c.l.s4 1966171168
        %v4395 = vunpack.c.0.s8 %v4394
        %v4396 = vlaneseq
        %v4397 = vshrl.u32 %v4396, 7
        %v4398 = vsub.s32 %v4395, %v4397
        %v4399 = vrot.slane %v4383, %v4398
        %v4401 = vunpack.c.l.s4 1966171168
        %v4402 = vunpack.c.0.s8 %v4401
        %v4403 = vlaneseq
        %v4404 = vshrl.u32 %v4403, 7
        %v4405 = vsub.s32 %v4402, %v4404
        %v4406 = vrot.slane %v4390, %v4405
        %v4408 = vunpack.c.l.s4 1966171168
        %v4409 = vunpack.c.0.s8 %v4408
        %v4410 = vlaneseq
        %v4411 = vshrl.u32 %v4410, 7
        %v4412 = vsub.s32 %v4409, %v4411
        %v4413 = vrot.slane %v4391, %v4412
        %v4415 = vunpack.c.l.s4 1966171168
        %v4416 = vunpack.c.0.s8 %v4415
        %v4417 = vlaneseq
        %v4418 = vshrl.u32 %v4417, 7
        %v4419 = vsub.s32 %v4416, %v4418
        %v4420 = vrot.slane %v4392, %v4419
        %v4421 = vcombine.high %v4399, %v4399
        %v4422 = vcombine.high %v4406, %v4406
        %v4423 = vcombine.high %v4413, %v4413
        %v4424 = vcombine.high %v4420, %v4420
        %v4425 = vcombine.high %v4053, %v4053
        %v4427 = vunpack.c.l.s4 1966171168
        %v4428 = vunpack.c.0.s8 %v4427
        %v4429 = vlaneseq
        %v4430 = vshrl.u32 %v4429, 7
        %v4431 = vsub.s32 %v4428, %v4430
        %v4432 = vrot.slane %v4053, %v4431
        %v4434 = vunpack.c.l.s4 1966171168
        %v4435 = vunpack.c.0.s8 %v4434
        %v4436 = vlaneseq
        %v4437 = vshrl.u32 %v4436, 7
        %v4438 = vsub.s32 %v4435, %v4437
        %v4439 = vrot.slane %v4425, %v4438
        %v4440 = vcombine.high %v4432, %v4432
        %v4441 = vcombine.high %v4439, %v4439
        %v4443 = vunpack.c.l.s4 1966171168
        %v4444 = vunpack.c.0.s8 %v4443
        %v4445 = vlaneseq
        %v4446 = vshrl.u32 %v4445, 7
        %v4447 = vsub.s32 %v4444, %v4446
        %v4448 = vrot.slane %v4432, %v4447
        %v4450 = vunpack.c.l.s4 1966171168
        %v4451 = vunpack.c.0.s8 %v4450
        %v4452 = vlaneseq
        %v4453 = vshrl.u32 %v4452, 7
        %v4454 = vsub.s32 %v4451, %v4453
        %v4455 = vrot.slane %v4439, %v4454
        %v4457 = vunpack.c.l.s4 1966171168
        %v4458 = vunpack.c.0.s8 %v4457
        %v4459 = vlaneseq
        %v4460 = vshrl.u32 %v4459, 7
        %v4461 = vsub.s32 %v4458, %v4460
        %v4462 = vrot.slane %v4440, %v4461
        %v4464 = vunpack.c.l.s4 1966171168
        %v4465 = vunpack.c.0.s8 %v4464
        %v4466 = vlaneseq
        %v4467 = vshrl.u32 %v4466, 7
        %v4468 = vsub.s32 %v4465, %v4467
        %v4469 = vrot.slane %v4441, %v4468
        %v4470 = vcombine.high %v4448, %v4448
        %v4471 = vcombine.high %v4455, %v4455
        %v4472 = vcombine.high %v4462, %v4462
        %v4473 = vcombine.high %v4469, %v4469
        %v4474 = vcombine.high %v4058, %v4058
        %v4476 = vunpack.c.l.s4 1966171168
        %v4477 = vunpack.c.0.s8 %v4476
        %v4478 = vlaneseq
        %v4479 = vshrl.u32 %v4478, 7
        %v4480 = vsub.s32 %v4477, %v4479
        %v4481 = vrot.slane %v4058, %v4480
        %v4483 = vunpack.c.l.s4 1966171168
        %v4484 = vunpack.c.0.s8 %v4483
        %v4485 = vlaneseq
        %v4486 = vshrl.u32 %v4485, 7
        %v4487 = vsub.s32 %v4484, %v4486
        %v4488 = vrot.slane %v4474, %v4487
        %v4489 = vcombine.high %v4481, %v4481
        %v4490 = vcombine.high %v4488, %v4488
        %v4492 = vunpack.c.l.s4 1966171168
        %v4493 = vunpack.c.0.s8 %v4492
        %v4494 = vlaneseq
        %v4495 = vshrl.u32 %v4494, 7
        %v4496 = vsub.s32 %v4493, %v4495
        %v4497 = vrot.slane %v4481, %v4496
        %v4499 = vunpack.c.l.s4 1966171168
        %v4500 = vunpack.c.0.s8 %v4499
        %v4501 = vlaneseq
        %v4502 = vshrl.u32 %v4501, 7
        %v4503 = vsub.s32 %v4500, %v4502
        %v4504 = vrot.slane %v4488, %v4503
        %v4506 = vunpack.c.l.s4 1966171168
        %v4507 = vunpack.c.0.s8 %v4506
        %v4508 = vlaneseq
        %v4509 = vshrl.u32 %v4508, 7
        %v4510 = vsub.s32 %v4507, %v4509
        %v4511 = vrot.slane %v4489, %v4510
        %v4513 = vunpack.c.l.s4 1966171168
        %v4514 = vunpack.c.0.s8 %v4513
        %v4515 = vlaneseq
        %v4516 = vshrl.u32 %v4515, 7
        %v4517 = vsub.s32 %v4514, %v4516
        %v4518 = vrot.slane %v4490, %v4517
        %v4519 = vcombine.high %v4497, %v4497
        %v4520 = vcombine.high %v4504, %v4504
        %v4521 = vcombine.high %v4511, %v4511
        %v4522 = vcombine.high %v4518, %v4518
        %v4523 = vcombine.high %v4061, %v4061
        %v4525 = vunpack.c.l.s4 1966171168
        %v4526 = vunpack.c.0.s8 %v4525
        %v4527 = vlaneseq
        %v4528 = vshrl.u32 %v4527, 7
        %v4529 = vsub.s32 %v4526, %v4528
        %v4530 = vrot.slane %v4061, %v4529
        %v4532 = vunpack.c.l.s4 1966171168
        %v4533 = vunpack.c.0.s8 %v4532
        %v4534 = vlaneseq
        %v4535 = vshrl.u32 %v4534, 7
        %v4536 = vsub.s32 %v4533, %v4535
        %v4537 = vrot.slane %v4523, %v4536
        %v4538 = vcombine.high %v4530, %v4530
        %v4539 = vcombine.high %v4537, %v4537
        %v4541 = vunpack.c.l.s4 1966171168
        %v4542 = vunpack.c.0.s8 %v4541
        %v4543 = vlaneseq
        %v4544 = vshrl.u32 %v4543, 7
        %v4545 = vsub.s32 %v4542, %v4544
        %v4546 = vrot.slane %v4530, %v4545
        %v4548 = vunpack.c.l.s4 1966171168
        %v4549 = vunpack.c.0.s8 %v4548
        %v4550 = vlaneseq
        %v4551 = vshrl.u32 %v4550, 7
        %v4552 = vsub.s32 %v4549, %v4551
        %v4553 = vrot.slane %v4537, %v4552
        %v4555 = vunpack.c.l.s4 1966171168
        %v4556 = vunpack.c.0.s8 %v4555
        %v4557 = vlaneseq
        %v4558 = vshrl.u32 %v4557, 7
        %v4559 = vsub.s32 %v4556, %v4558
        %v4560 = vrot.slane %v4538, %v4559
        %v4562 = vunpack.c.l.s4 1966171168
        %v4563 = vunpack.c.0.s8 %v4562
        %v4564 = vlaneseq
        %v4565 = vshrl.u32 %v4564, 7
        %v4566 = vsub.s32 %v4563, %v4565
        %v4567 = vrot.slane %v4539, %v4566
        %v4568 = vcombine.high %v4546, %v4546
        %v4569 = vcombine.high %v4553, %v4553
        %v4570 = vcombine.high %v4560, %v4560
        %v4571 = vcombine.high %v4567, %v4567
        %v4573 = vunpack.c.l.s4 1966171168
        %v4574 = vunpack.c.0.s8 %v4573
        %v4575 = vlaneseq
        %v4576 = vshrl.u32 %v4575, 7
        %v4577 = vsub.s32 %v4574, %v4576
        %v4578 = vrot.slane %v4066, %v4577
        %v4579 = vcombine.high %v4578, %v4578
        %v4581 = vunpack.c.l.s4 1966171168
        %v4582 = vunpack.c.0.s8 %v4581
        %v4583 = vlaneseq
        %v4584 = vshrl.u32 %v4583, 7
        %v4585 = vsub.s32 %v4582, %v4584
        %v4586 = vrot.slane %v4578, %v4585
        %v4588 = vunpack.c.l.s4 1966171168
        %v4589 = vunpack.c.0.s8 %v4588
        %v4590 = vlaneseq
        %v4591 = vshrl.u32 %v4590, 7
        %v4592 = vsub.s32 %v4589, %v4591
        %v4593 = vrot.slane %v4579, %v4592
        %v4594 = vcombine.high %v4586, %v4586
        %v4595 = vcombine.high %v4593, %v4593
        %v4596 = vcombine.low %v4105, %v4119
        %v4597 = vcombine.low %v4127, %v4129
        %v4598 = vcombine.low %v4112, %v4126
        %v4600 = vunpack.c.l.s4 1966171168
        %v4601 = vunpack.c.0.s8 %v4600
        %v4602 = vlaneseq
        %v4603 = vshrl.u32 %v4602, 7
        %v4604 = vsub.s32 %v4601, %v4603
        %v4605 = vrot.slane %v4596, %v4604
        %v4607 = vunpack.c.l.s4 1966171168
        %v4608 = vunpack.c.0.s8 %v4607
        %v4609 = vlaneseq
        %v4610 = vshrl.u32 %v4609, 7
        %v4611 = vsub.s32 %v4608, %v4610
        %v4612 = vrot.slane %v4597, %v4611
        %v4614 = vunpack.c.l.s4 1966171168
        %v4615 = vunpack.c.0.s8 %v4614
        %v4616 = vlaneseq
        %v4617 = vshrl.u32 %v4616, 7
        %v4618 = vsub.s32 %v4615, %v4617
        %v4619 = vrot.slane %v4598, %v4618
        %v4621 = vunpack.c.l.s4 1966171168
        %v4622 = vunpack.c.0.s8 %v4621
        %v4623 = vlaneseq
        %v4624 = vshrl.u32 %v4623, 7
        %v4625 = vsub.s32 %v4622, %v4624
        %v4626 = vrot.slane %v4128, %v4625
        %v4627 = vcombine.low %v4605, %v4612
        %v4628 = vcombine.low %v4619, %v4626
        %v4630 = vunpack.c.l.s4 1966171168
        %v4631 = vunpack.c.0.s8 %v4630
        %v4632 = vlaneseq
        %v4633 = vshrl.u32 %v4632, 7
        %v4634 = vsub.s32 %v4631, %v4633
        %v4635 = vrot.slane %v4627, %v4634
        %v4637 = vunpack.c.l.s4 1966171168
        %v4638 = vunpack.c.0.s8 %v4637
        %v4639 = vlaneseq
        %v4640 = vshrl.u32 %v4639, 7
        %v4641 = vsub.s32 %v4638, %v4640
        %v4642 = vrot.slane %v4628, %v4641
        %v4643 = vcombine.low %v4635, %v4642
        %v4644 = vcombine.low %v4130, %v4154
        %v4645 = vcombine.low %v4168, %v4176
        %v4646 = vcombine.low %v4178, %v4161
        %v4648 = vunpack.c.l.s4 1966171168
        %v4649 = vunpack.c.0.s8 %v4648
        %v4650 = vlaneseq
        %v4651 = vshrl.u32 %v4650, 7
        %v4652 = vsub.s32 %v4649, %v4651
        %v4653 = vrot.slane %v4644, %v4652
        %v4655 = vunpack.c.l.s4 1966171168
        %v4656 = vunpack.c.0.s8 %v4655
        %v4657 = vlaneseq
        %v4658 = vshrl.u32 %v4657, 7
        %v4659 = vsub.s32 %v4656, %v4658
        %v4660 = vrot.slane %v4645, %v4659
        %v4662 = vunpack.c.l.s4 1966171168
        %v4663 = vunpack.c.0.s8 %v4662
        %v4664 = vlaneseq
        %v4665 = vshrl.u32 %v4664, 7
        %v4666 = vsub.s32 %v4663, %v4665
        %v4667 = vrot.slane %v4646, %v4666
        %v4669 = vunpack.c.l.s4 1966171168
        %v4670 = vunpack.c.0.s8 %v4669
        %v4671 = vlaneseq
        %v4672 = vshrl.u32 %v4671, 7
        %v4673 = vsub.s32 %v4670, %v4672
        %v4674 = vrot.slane %v4175, %v4673
        %v4675 = vcombine.low %v4653, %v4660
        %v4676 = vcombine.low %v4667, %v4674
        %v4678 = vunpack.c.l.s4 1966171168
        %v4679 = vunpack.c.0.s8 %v4678
        %v4680 = vlaneseq
        %v4681 = vshrl.u32 %v4680, 7
        %v4682 = vsub.s32 %v4679, %v4681
        %v4683 = vrot.slane %v4675, %v4682
        %v4685 = vunpack.c.l.s4 1966171168
        %v4686 = vunpack.c.0.s8 %v4685
        %v4687 = vlaneseq
        %v4688 = vshrl.u32 %v4687, 7
        %v4689 = vsub.s32 %v4686, %v4688
        %v4690 = vrot.slane %v4676, %v4689
        %v4691 = vcombine.low %v4683, %v4690
        %v4692 = vcombine.low %v4177, %v4179
        %v4693 = vcombine.low %v4203, %v4217
        %v4694 = vcombine.low %v4225, %v4227
        %v4696 = vunpack.c.l.s4 1966171168
        %v4697 = vunpack.c.0.s8 %v4696
        %v4698 = vlaneseq
        %v4699 = vshrl.u32 %v4698, 7
        %v4700 = vsub.s32 %v4697, %v4699
        %v4701 = vrot.slane %v4692, %v4700
        %v4703 = vunpack.c.l.s4 1966171168
        %v4704 = vunpack.c.0.s8 %v4703
        %v4705 = vlaneseq
        %v4706 = vshrl.u32 %v4705, 7
        %v4707 = vsub.s32 %v4704, %v4706
        %v4708 = vrot.slane %v4693, %v4707
        %v4710 = vunpack.c.l.s4 1966171168
        %v4711 = vunpack.c.0.s8 %v4710
        %v4712 = vlaneseq
        %v4713 = vshrl.u32 %v4712, 7
        %v4714 = vsub.s32 %v4711, %v4713
        %v4715 = vrot.slane %v4694, %v4714
        %v4717 = vunpack.c.l.s4 1966171168
        %v4718 = vunpack.c.0.s8 %v4717
        %v4719 = vlaneseq
        %v4720 = vshrl.u32 %v4719, 7
        %v4721 = vsub.s32 %v4718, %v4720
        %v4722 = vrot.slane %v4210, %v4721
        %v4723 = vcombine.low %v4701, %v4708
        %v4724 = vcombine.low %v4715, %v4722
        %v4726 = vunpack.c.l.s4 1966171168
        %v4727 = vunpack.c.0.s8 %v4726
        %v4728 = vlaneseq
        %v4729 = vshrl.u32 %v4728, 7
        %v4730 = vsub.s32 %v4727, %v4729
        %v4731 = vrot.slane %v4723, %v4730
        %v4733 = vunpack.c.l.s4 1966171168
        %v4734 = vunpack.c.0.s8 %v4733
        %v4735 = vlaneseq
        %v4736 = vshrl.u32 %v4735, 7
        %v4737 = vsub.s32 %v4734, %v4736
        %v4738 = vrot.slane %v4724, %v4737
        %v4739 = vcombine.low %v4731, %v4738
        %v4740 = vcombine.low %v4224, %v4226
        %v4741 = vcombine.low %v4228, %v4252
        %v4742 = vcombine.low %v4266, %v4274
        %v4744 = vunpack.c.l.s4 1966171168
        %v4745 = vunpack.c.0.s8 %v4744
        %v4746 = vlaneseq
        %v4747 = vshrl.u32 %v4746, 7
        %v4748 = vsub.s32 %v4745, %v4747
        %v4749 = vrot.slane %v4740, %v4748
        %v4751 = vunpack.c.l.s4 1966171168
        %v4752 = vunpack.c.0.s8 %v4751
        %v4753 = vlaneseq
        %v4754 = vshrl.u32 %v4753, 7
        %v4755 = vsub.s32 %v4752, %v4754
        %v4756 = vrot.slane %v4741, %v4755
        %v4758 = vunpack.c.l.s4 1966171168
        %v4759 = vunpack.c.0.s8 %v4758
        %v4760 = vlaneseq
        %v4761 = vshrl.u32 %v4760, 7
        %v4762 = vsub.s32 %v4759, %v4761
        %v4763 = vrot.slane %v4742, %v4762
        %v4765 = vunpack.c.l.s4 1966171168
        %v4766 = vunpack.c.0.s8 %v4765
        %v4767 = vlaneseq
        %v4768 = vshrl.u32 %v4767, 7
        %v4769 = vsub.s32 %v4766, %v4768
        %v4770 = vrot.slane %v4276, %v4769
        %v4771 = vcombine.low %v4749, %v4756
        %v4772 = vcombine.low %v4763, %v4770
        %v4774 = vunpack.c.l.s4 1966171168
        %v4775 = vunpack.c.0.s8 %v4774
        %v4776 = vlaneseq
        %v4777 = vshrl.u32 %v4776, 7
        %v4778 = vsub.s32 %v4775, %v4777
        %v4779 = vrot.slane %v4771, %v4778
        %v4781 = vunpack.c.l.s4 1966171168
        %v4782 = vunpack.c.0.s8 %v4781
        %v4783 = vlaneseq
        %v4784 = vshrl.u32 %v4783, 7
        %v4785 = vsub.s32 %v4782, %v4784
        %v4786 = vrot.slane %v4772, %v4785
        %v4787 = vcombine.low %v4779, %v4786
        %v4788 = vcombine.low %v4259, %v4273
        %v4789 = vcombine.low %v4275, %v4277
        %v4790 = vcombine.low %v4301, %v4315
        %v4792 = vunpack.c.l.s4 1966171168
        %v4793 = vunpack.c.0.s8 %v4792
        %v4794 = vlaneseq
        %v4795 = vshrl.u32 %v4794, 7
        %v4796 = vsub.s32 %v4793, %v4795
        %v4797 = vrot.slane %v4788, %v4796
        %v4799 = vunpack.c.l.s4 1966171168
        %v4800 = vunpack.c.0.s8 %v4799
        %v4801 = vlaneseq
        %v4802 = vshrl.u32 %v4801, 7
        %v4803 = vsub.s32 %v4800, %v4802
        %v4804 = vrot.slane %v4789, %v4803
        %v4806 = vunpack.c.l.s4 1966171168
        %v4807 = vunpack.c.0.s8 %v4806
        %v4808 = vlaneseq
        %v4809 = vshrl.u32 %v4808, 7
        %v4810 = vsub.s32 %v4807, %v4809
        %v4811 = vrot.slane %v4790, %v4810
        %v4813 = vunpack.c.l.s4 1966171168
        %v4814 = vunpack.c.0.s8 %v4813
        %v4815 = vlaneseq
        %v4816 = vshrl.u32 %v4815, 7
        %v4817 = vsub.s32 %v4814, %v4816
        %v4818 = vrot.slane %v4323, %v4817
        %v4819 = vcombine.low %v4797, %v4804
        %v4820 = vcombine.low %v4811, %v4818
        %v4822 = vunpack.c.l.s4 1966171168
        %v4823 = vunpack.c.0.s8 %v4822
        %v4824 = vlaneseq
        %v4825 = vshrl.u32 %v4824, 7
        %v4826 = vsub.s32 %v4823, %v4825
        %v4827 = vrot.slane %v4819, %v4826
        %v4829 = vunpack.c.l.s4 1966171168
        %v4830 = vunpack.c.0.s8 %v4829
        %v4831 = vlaneseq
        %v4832 = vshrl.u32 %v4831, 7
        %v4833 = vsub.s32 %v4830, %v4832
        %v4834 = vrot.slane %v4820, %v4833
        %v4835 = vcombine.low %v4827, %v4834
        %v4836 = vcombine.low %v4325, %v4308
        %v4837 = vcombine.low %v4322, %v4324
        %v4838 = vcombine.low %v4326, %v4350
        %v4840 = vunpack.c.l.s4 1966171168
        %v4841 = vunpack.c.0.s8 %v4840
        %v4842 = vlaneseq
        %v4843 = vshrl.u32 %v4842, 7
        %v4844 = vsub.s32 %v4841, %v4843
        %v4845 = vrot.slane %v4836, %v4844
        %v4847 = vunpack.c.l.s4 1966171168
        %v4848 = vunpack.c.0.s8 %v4847
        %v4849 = vlaneseq
        %v4850 = vshrl.u32 %v4849, 7
        %v4851 = vsub.s32 %v4848, %v4850
        %v4852 = vrot.slane %v4837, %v4851
        %v4854 = vunpack.c.l.s4 1966171168
        %v4855 = vunpack.c.0.s8 %v4854
        %v4856 = vlaneseq
        %v4857 = vshrl.u32 %v4856, 7
        %v4858 = vsub.s32 %v4855, %v4857
        %v4859 = vrot.slane %v4838, %v4858
        %v4861 = vunpack.c.l.s4 1966171168
        %v4862 = vunpack.c.0.s8 %v4861
        %v4863 = vlaneseq
        %v4864 = vshrl.u32 %v4863, 7
        %v4865 = vsub.s32 %v4862, %v4864
        %v4866 = vrot.slane %v4364, %v4865
        %v4867 = vcombine.low %v4845, %v4852
        %v4868 = vcombine.low %v4859, %v4866
        %v4870 = vunpack.c.l.s4 1966171168
        %v4871 = vunpack.c.0.s8 %v4870
        %v4872 = vlaneseq
        %v4873 = vshrl.u32 %v4872, 7
        %v4874 = vsub.s32 %v4871, %v4873
        %v4875 = vrot.slane %v4867, %v4874
        %v4877 = vunpack.c.l.s4 1966171168
        %v4878 = vunpack.c.0.s8 %v4877
        %v4879 = vlaneseq
        %v4880 = vshrl.u32 %v4879, 7
        %v4881 = vsub.s32 %v4878, %v4880
        %v4882 = vrot.slane %v4868, %v4881
        %v4883 = vcombine.low %v4875, %v4882
        %v4884 = vcombine.low %v4372, %v4374
        %v4885 = vcombine.low %v4357, %v4371
        %v4886 = vcombine.low %v4373, %v4375
        %v4888 = vunpack.c.l.s4 1966171168
        %v4889 = vunpack.c.0.s8 %v4888
        %v4890 = vlaneseq
        %v4891 = vshrl.u32 %v4890, 7
        %v4892 = vsub.s32 %v4889, %v4891
        %v4893 = vrot.slane %v4884, %v4892
        %v4895 = vunpack.c.l.s4 1966171168
        %v4896 = vunpack.c.0.s8 %v4895
        %v4897 = vlaneseq
        %v4898 = vshrl.u32 %v4897, 7
        %v4899 = vsub.s32 %v4896, %v4898
        %v4900 = vrot.slane %v4885, %v4899
        %v4902 = vunpack.c.l.s4 1966171168
        %v4903 = vunpack.c.0.s8 %v4902
        %v4904 = vlaneseq
        %v4905 = vshrl.u32 %v4904, 7
        %v4906 = vsub.s32 %v4903, %v4905
        %v4907 = vrot.slane %v4886, %v4906
        %v4909 = vunpack.c.l.s4 1966171168
        %v4910 = vunpack.c.0.s8 %v4909
        %v4911 = vlaneseq
        %v4912 = vshrl.u32 %v4911, 7
        %v4913 = vsub.s32 %v4910, %v4912
        %v4914 = vrot.slane %v4399, %v4913
        %v4915 = vcombine.low %v4893, %v4900
        %v4916 = vcombine.low %v4907, %v4914
        %v4918 = vunpack.c.l.s4 1966171168
        %v4919 = vunpack.c.0.s8 %v4918
        %v4920 = vlaneseq
        %v4921 = vshrl.u32 %v4920, 7
        %v4922 = vsub.s32 %v4919, %v4921
        %v4923 = vrot.slane %v4915, %v4922
        %v4925 = vunpack.c.l.s4 1966171168
        %v4926 = vunpack.c.0.s8 %v4925
        %v4927 = vlaneseq
        %v4928 = vshrl.u32 %v4927, 7
        %v4929 = vsub.s32 %v4926, %v4928
        %v4930 = vrot.slane %v4916, %v4929
        %v4931 = vcombine.low %v4923, %v4930
        %v4932 = vcombine.low %v4413, %v4421
        %v4933 = vcombine.low %v4423, %v4406
        %v4934 = vcombine.low %v4420, %v4422
        %v4936 = vunpack.c.l.s4 1966171168
        %v4937 = vunpack.c.0.s8 %v4936
        %v4938 = vlaneseq
        %v4939 = vshrl.u32 %v4938, 7
        %v4940 = vsub.s32 %v4937, %v4939
        %v4941 = vrot.slane %v4932, %v4940
        %v4943 = vunpack.c.l.s4 1966171168
        %v4944 = vunpack.c.0.s8 %v4943
        %v4945 = vlaneseq
        %v4946 = vshrl.u32 %v4945, 7
        %v4947 = vsub.s32 %v4944, %v4946
        %v4948 = vrot.slane %v4933, %v4947
        %v4950 = vunpack.c.l.s4 1966171168
        %v4951 = vunpack.c.0.s8 %v4950
        %v4952 = vlaneseq
        %v4953 = vshrl.u32 %v4952, 7
        %v4954 = vsub.s32 %v4951, %v4953
        %v4955 = vrot.slane %v4934, %v4954
        %v4957 = vunpack.c.l.s4 1966171168
        %v4958 = vunpack.c.0.s8 %v4957
        %v4959 = vlaneseq
        %v4960 = vshrl.u32 %v4959, 7
        %v4961 = vsub.s32 %v4958, %v4960
        %v4962 = vrot.slane %v4424, %v4961
        %v4963 = vcombine.low %v4941, %v4948
        %v4964 = vcombine.low %v4955, %v4962
        %v4966 = vunpack.c.l.s4 1966171168
        %v4967 = vunpack.c.0.s8 %v4966
        %v4968 = vlaneseq
        %v4969 = vshrl.u32 %v4968, 7
        %v4970 = vsub.s32 %v4967, %v4969
        %v4971 = vrot.slane %v4963, %v4970
        %v4973 = vunpack.c.l.s4 1966171168
        %v4974 = vunpack.c.0.s8 %v4973
        %v4975 = vlaneseq
        %v4976 = vshrl.u32 %v4975, 7
        %v4977 = vsub.s32 %v4974, %v4976
        %v4978 = vrot.slane %v4964, %v4977
        %v4979 = vcombine.low %v4971, %v4978
        %v4980 = vcombine.low %v4448, %v4462
        %v4981 = vcombine.low %v4470, %v4472
        %v4982 = vcombine.low %v4455, %v4469
        %v4984 = vunpack.c.l.s4 1966171168
        %v4985 = vunpack.c.0.s8 %v4984
        %v4986 = vlaneseq
        %v4987 = vshrl.u32 %v4986, 7
        %v4988 = vsub.s32 %v4985, %v4987
        %v4989 = vrot.slane %v4980, %v4988
        %v4991 = vunpack.c.l.s4 1966171168
        %v4992 = vunpack.c.0.s8 %v4991
        %v4993 = vlaneseq
        %v4994 = vshrl.u32 %v4993, 7
        %v4995 = vsub.s32 %v4992, %v4994
        %v4996 = vrot.slane %v4981, %v4995
        %v4998 = vunpack.c.l.s4 1966171168
        %v4999 = vunpack.c.0.s8 %v4998
        %v5000 = vlaneseq
        %v5001 = vshrl.u32 %v5000, 7
        %v5002 = vsub.s32 %v4999, %v5001
        %v5003 = vrot.slane %v4982, %v5002
        %v5005 = vunpack.c.l.s4 1966171168
        %v5006 = vunpack.c.0.s8 %v5005
        %v5007 = vlaneseq
        %v5008 = vshrl.u32 %v5007, 7
        %v5009 = vsub.s32 %v5006, %v5008
        %v5010 = vrot.slane %v4471, %v5009
        %v5011 = vcombine.low %v4989, %v4996
        %v5012 = vcombine.low %v5003, %v5010
        %v5014 = vunpack.c.l.s4 1966171168
        %v5015 = vunpack.c.0.s8 %v5014
        %v5016 = vlaneseq
        %v5017 = vshrl.u32 %v5016, 7
        %v5018 = vsub.s32 %v5015, %v5017
        %v5019 = vrot.slane %v5011, %v5018
        %v5021 = vunpack.c.l.s4 1966171168
        %v5022 = vunpack.c.0.s8 %v5021
        %v5023 = vlaneseq
        %v5024 = vshrl.u32 %v5023, 7
        %v5025 = vsub.s32 %v5022, %v5024
        %v5026 = vrot.slane %v5012, %v5025
        %v5027 = vcombine.low %v5019, %v5026
        %v5028 = vcombine.low %v4473, %v4497
        %v5029 = vcombine.low %v4511, %v4519
        %v5030 = vcombine.low %v4521, %v4504
        %v5032 = vunpack.c.l.s4 1966171168
        %v5033 = vunpack.c.0.s8 %v5032
        %v5034 = vlaneseq
        %v5035 = vshrl.u32 %v5034, 7
        %v5036 = vsub.s32 %v5033, %v5035
        %v5037 = vrot.slane %v5028, %v5036
        %v5039 = vunpack.c.l.s4 1966171168
        %v5040 = vunpack.c.0.s8 %v5039
        %v5041 = vlaneseq
        %v5042 = vshrl.u32 %v5041, 7
        %v5043 = vsub.s32 %v5040, %v5042
        %v5044 = vrot.slane %v5029, %v5043
        %v5046 = vunpack.c.l.s4 1966171168
        %v5047 = vunpack.c.0.s8 %v5046
        %v5048 = vlaneseq
        %v5049 = vshrl.u32 %v5048, 7
        %v5050 = vsub.s32 %v5047, %v5049
        %v5051 = vrot.slane %v5030, %v5050
        %v5053 = vunpack.c.l.s4 1966171168
        %v5054 = vunpack.c.0.s8 %v5053
        %v5055 = vlaneseq
        %v5056 = vshrl.u32 %v5055, 7
        %v5057 = vsub.s32 %v5054, %v5056
        %v5058 = vrot.slane %v4518, %v5057
        %v5059 = vcombine.low %v5037, %v5044
        %v5060 = vcombine.low %v5051, %v5058
        %v5062 = vunpack.c.l.s4 1966171168
        %v5063 = vunpack.c.0.s8 %v5062
        %v5064 = vlaneseq
        %v5065 = vshrl.u32 %v5064, 7
        %v5066 = vsub.s32 %v5063, %v5065
        %v5067 = vrot.slane %v5059, %v5066
        %v5069 = vunpack.c.l.s4 1966171168
        %v5070 = vunpack.c.0.s8 %v5069
        %v5071 = vlaneseq
        %v5072 = vshrl.u32 %v5071, 7
        %v5073 = vsub.s32 %v5070, %v5072
        %v5074 = vrot.slane %v5060, %v5073
        %v5075 = vcombine.low %v5067, %v5074
        %v5076 = vcombine.low %v4520, %v4522
        %v5077 = vcombine.low %v4546, %v4560
        %v5078 = vcombine.low %v4568, %v4570
        %v5080 = vunpack.c.l.s4 1966171168
        %v5081 = vunpack.c.0.s8 %v5080
        %v5082 = vlaneseq
        %v5083 = vshrl.u32 %v5082, 7
        %v5084 = vsub.s32 %v5081, %v5083
        %v5085 = vrot.slane %v5076, %v5084
        %v5087 = vunpack.c.l.s4 1966171168
        %v5088 = vunpack.c.0.s8 %v5087
        %v5089 = vlaneseq
        %v5090 = vshrl.u32 %v5089, 7
        %v5091 = vsub.s32 %v5088, %v5090
        %v5092 = vrot.slane %v5077, %v5091
        %v5094 = vunpack.c.l.s4 1966171168
        %v5095 = vunpack.c.0.s8 %v5094
        %v5096 = vlaneseq
        %v5097 = vshrl.u32 %v5096, 7
        %v5098 = vsub.s32 %v5095, %v5097
        %v5099 = vrot.slane %v5078, %v5098
        %v5101 = vunpack.c.l.s4 1966171168
        %v5102 = vunpack.c.0.s8 %v5101
        %v5103 = vlaneseq
        %v5104 = vshrl.u32 %v5103, 7
        %v5105 = vsub.s32 %v5102, %v5104
        %v5106 = vrot.slane %v4553, %v5105
        %v5107 = vcombine.low %v5085, %v5092
        %v5108 = vcombine.low %v5099, %v5106
        %v5110 = vunpack.c.l.s4 1966171168
        %v5111 = vunpack.c.0.s8 %v5110
        %v5112 = vlaneseq
        %v5113 = vshrl.u32 %v5112, 7
        %v5114 = vsub.s32 %v5111, %v5113
        %v5115 = vrot.slane %v5107, %v5114
        %v5117 = vunpack.c.l.s4 1966171168
        %v5118 = vunpack.c.0.s8 %v5117
        %v5119 = vlaneseq
        %v5120 = vshrl.u32 %v5119, 7
        %v5121 = vsub.s32 %v5118, %v5120
        %v5122 = vrot.slane %v5108, %v5121
        %v5123 = vcombine.low %v5115, %v5122
        %v5124 = vcombine.low %v4567, %v4569
        %v5125 = vcombine.low %v4571, %v4586
        %v5126 = vcombine.low %v4593, %v4594
        %v5128 = vunpack.c.l.s4 1966171168
        %v5129 = vunpack.c.0.s8 %v5128
        %v5130 = vlaneseq
        %v5131 = vshrl.u32 %v5130, 7
        %v5132 = vsub.s32 %v5129, %v5131
        %v5133 = vrot.slane %v5124, %v5132
        %v5135 = vunpack.c.l.s4 1966171168
        %v5136 = vunpack.c.0.s8 %v5135
        %v5137 = vlaneseq
        %v5138 = vshrl.u32 %v5137, 7
        %v5139 = vsub.s32 %v5136, %v5138
        %v5140 = vrot.slane %v5125, %v5139
        %v5142 = vunpack.c.l.s4 1966171168
        %v5143 = vunpack.c.0.s8 %v5142
        %v5144 = vlaneseq
        %v5145 = vshrl.u32 %v5144, 7
        %v5146 = vsub.s32 %v5143, %v5145
        %v5147 = vrot.slane %v5126, %v5146
        %v5149 = vunpack.c.l.s4 1966171168
        %v5150 = vunpack.c.0.s8 %v5149
        %v5151 = vlaneseq
        %v5152 = vshrl.u32 %v5151, 7
        %v5153 = vsub.s32 %v5150, %v5152
        %v5154 = vrot.slane %v4595, %v5153
        %v5155 = vcombine.low %v5133, %v5140
        %v5156 = vcombine.low %v5147, %v5154
        %v5158 = vunpack.c.l.s4 1966171168
        %v5159 = vunpack.c.0.s8 %v5158
        %v5160 = vlaneseq
        %v5161 = vshrl.u32 %v5160, 7
        %v5162 = vsub.s32 %v5159, %v5161
        %v5163 = vrot.slane %v5155, %v5162
        %v5165 = vunpack.c.l.s4 1966171168
        %v5166 = vunpack.c.0.s8 %v5165
        %v5167 = vlaneseq
        %v5168 = vshrl.u32 %v5167, 7
        %v5169 = vsub.s32 %v5166, %v5168
        %v5170 = vrot.slane %v5156, %v5169
        %v5171 = vcombine.low %v5163, %v5170
        %5184 = vst [vmem:[%s188] sm:$0x7f] %v4643
        %5185 = vst [vmem:[%s188 + $0x8] sm:$0x7f] %v4691
        %5186 = vst [vmem:[%s188 + $0x10] sm:$0x7f] %v4739
        %5187 = vst [vmem:[%s188 + $0x18] sm:$0x7f] %v4787
        %5188 = vst [vmem:[%s188 + $0x20] sm:$0x7f] %v4835
        %5189 = vst [vmem:[%s188 + $0x28] sm:$0x7f] %v4883
        %5190 = vst [vmem:[%s188 + $0x30] sm:$0x7f] %v4931
        %5191 = vst [vmem:[%s188 + $0x38] sm:$0x7f] %v4979
        %5192 = vst [vmem:[%s188 + $0x40] sm:$0x7f] %v5027
        %5193 = vst [vmem:[%s188 + $0x48] sm:$0x7f] %v5075
        %5194 = vst [vmem:[%s188 + $0x50] sm:$0x7f] %v5123
        %5195 = vst [vmem:[%s188 + $0x58] sm:$0x7f] %v5171
        %v5196 = vadd.f32 %v4026, %v4029
        %v5197 = vadd.f32 %v5196, %v4034
        %v5198 = vadd.f32 %v5197, %v4037
        %v5199 = vadd.f32 %v5198, %v4042
        %v5200 = vadd.f32 %v5199, %v4045
        %v5201 = vadd.f32 %v5200, %v4050
        %v5202 = vadd.f32 %v5201, %v4053
        %v5203 = vadd.f32 %v5202, %v4058
        %v5204 = vadd.f32 %v5203, %v4061
        %vm5205 = vcmask 1043456
        %v5206 = vsel %vm5205, %v4066, 0.0
        %v5207 = vadd.f32 %v5204, %v5206
        %v5208 = vrot.slane %v5207, 4
        %v5209 = vadd.f32 %v5207, %v5208
        %v5210 = vrot.slane %v5209, 2
        %v5211 = vadd.f32 %v5209, %v5210
        %v5212 = vrot.slane %v5211, 1
        %v5213 = vadd.f32 %v5211, %v5212
        %v5214 = vmul.f32 %v4026, %v4026
        %v5215 = vmul.f32 %v4029, %v4029
        %v5216 = vmul.f32 %v4034, %v4034
        %v5217 = vmul.f32 %v4037, %v4037
        %v5218 = vmul.f32 %v4042, %v4042
        %v5219 = vmul.f32 %v4045, %v4045
        %v5220 = vmul.f32 %v4050, %v4050
        %v5221 = vmul.f32 %v4053, %v4053
        %v5222 = vmul.f32 %v4058, %v4058
        %v5223 = vmul.f32 %v4061, %v4061
        %v5224 = vmul.f32 %v4066, %v4066
        %v5225 = vadd.f32 %v5214, %v5215
        %v5226 = vadd.f32 %v5225, %v5216
        %v5227 = vadd.f32 %v5226, %v5217
        %v5228 = vadd.f32 %v5227, %v5218
        %v5229 = vadd.f32 %v5228, %v5219
        %v5230 = vadd.f32 %v5229, %v5220
        %v5231 = vadd.f32 %v5230, %v5221
        %v5232 = vadd.f32 %v5231, %v5222
        %v5233 = vadd.f32 %v5232, %v5223
        %v5234 = vsel %vm5205, %v5224, 0.0
        %v5235 = vadd.f32 %v5233, %v5234
        %v5236 = vrot.slane %v5235, 4
        %v5237 = vadd.f32 %v5235, %v5236
        %v5238 = vrot.slane %v5237, 2
        %v5239 = vadd.f32 %v5237, %v5238
        %v5240 = vrot.slane %v5239, 1
        %v5241 = vadd.f32 %v5239, %v5240
        %5242 = vst [vmem:[%s175] sm:$0x1] %v5213
        %5243 = vst [vmem:[%s175 + $0x1] sm:$0x1] %v5241
        %s5244 = smul.u32 2, %s18
        %p5245 = scmp.lt.s32.totalorder %s5244, 7
        %s5246 = scalar_select %p5245, %s5244, 7
        %s5247 = smul.addr %s5246, 6
        %s5248 = smul.addr %s5247, 8
        %s5249 = scalar_lea.vmem %s2, %s5248
        %s5250 = sand.u32 %s99, 1
        %s5251 = scalar_lea.sflag [#allocation4], %s5250
        %s5252 = sand.u32 %s99, 1
        %s5253 = smul.addr %s5252, 2
        %s5254 = scalar_lea.vmem [#allocation3], %s5253
        // Predicated region
        $region29: #{tpu_custom_call.1} parent=27 // pred_check
          %p5255 = pneg %p83
        $region30: #{tpu_custom_call.1} parent=27 // pred_check_branch
          %5257 = sbr.rel (%p5255) target = $region32
        $region31: #{tpu_custom_call.1} parent=27 // pred_region
          %s5258 = smul.u32 2, %s18
        $region32: #{tpu_custom_call.1} parent=27 // pred_fallthru
          _
        // Predicated region
        $region33: #{tpu_custom_call.1} parent=27 // pred_check
          %p5259 = pneg %p109
        $region34: #{tpu_custom_call.1} parent=27 // pred_check_branch
          %5261 = sbr.rel (%p5259) target = $region36
        $region35: #{tpu_custom_call.1} parent=27 // pred_region
          %s5263 = ssub.s32 32, 32
          %5264 = vsyncadd %s5251, %s5263
          %s5265 = smul.addr %s18, 32
          %s5266 = scalar_lea.hbm %s3, %s5265
          %s5268 = sshll.u32 %s5254, 4
          %s5269 = int_to_ptr.vmem [resolvable:$true] %s5268
          %5271 = dma.vmem_to_hbm [thread:$0]  %s5269, 32, %s5266, %s5251
        $region36: #{tpu_custom_call.1} parent=27 // pred_fallthru
          _
      $region28: #{tpu_custom_call.1} parent=5 // pred_fallthru
        _
      %p5272 = scmp.le.s32.totalorder 2, %s13
      // Predicated region
      $region37: #{tpu_custom_call.1} parent=5 // pred_check
        %p5273 = pneg %p5272
      $region38: #{tpu_custom_call.1} parent=5 // pred_check_branch
        %5275 = sbr.rel (%p5273) target = $region40
      $region39: #{tpu_custom_call.1} parent=5 // pred_region
        %s5276 = ssub.s32 %s13, 2
        // Predicated region
        $region41: #{tpu_custom_call.1} parent=39 // pred_check
          %p5277 = pneg %p89
        $region42: #{tpu_custom_call.1} parent=39 // pred_check_branch
          %5279 = sbr.rel (%p5277) target = $region44
        $region43: #{tpu_custom_call.1} parent=39 // pred_region
          %s5280 = smul.u32 2, %s19
          %p5281 = scmp.lt.s32.totalorder %s5280, 7
          %s5282 = scalar_select %p5281, %s5280, 7
          %s5283 = smul.addr %s5282, 6
          %s5284 = smul.addr %s5283, 8
          %s5285 = scalar_lea.vmem %s2, %s5284
        $region44: #{tpu_custom_call.1} parent=39 // pred_fallthru
          _
        // Predicated region
        $region45: #{tpu_custom_call.1} parent=39 // pred_check
          %p5286 = pneg %p115
        $region46: #{tpu_custom_call.1} parent=39 // pred_check_branch
          %5288 = sbr.rel (%p5286) target = $region48
        $region47: #{tpu_custom_call.1} parent=39 // pred_region
          %s5289 = sand.u32 %s100, 1
          %s5290 = scalar_lea.sflag [#allocation4], %s5289
          %s5291 = sand.u32 %s100, 1
          %s5292 = smul.addr %s5291, 2
          %s5293 = scalar_lea.vmem [#allocation3], %s5292
          %5294 = dma.done %s5290, 32
        $region48: #{tpu_custom_call.1} parent=39 // pred_fallthru
          _
      $region40: #{tpu_custom_call.1} parent=5 // pred_fallthru
        _
    $region6: #{tpu_custom_call.1} parent=1 // loop_footer
      %s17 = sadd.s32 1, %s13
    $region7: #{tpu_custom_call.1} parent=1 // loop_footer_branch
      %12 = sbr.rel target = $region3
    $region8: #{tpu_custom_call.1} parent=1 // loop_exit
      _
    %5295 = vsyncpa [#allocation4], 1
    %s5296 = scalar_lea.sflag [#allocation4], 1
    %5297 = vsyncpa %s5296, 1

</llo_original>
